<compile_context>
chip_gen: v5e
topology: v5e:2x2
jax: 0.10.0
libtpu: 0.0.40
codegen_flags: <defaults>
</compile_context>

<pallas_src>
import functools
import math

import jax
import jax.numpy as jnp
from jax.experimental import pallas as pl
from jax.experimental.pallas import tpu as pltpu

NUM_HEADS = 4
LN_EPS = 1e-5
LANE = 128
SUBLANE = 8
NEG_INF = -1e30

PACKED_ORDER = ("wx", "bx", "kt", "vb", "sbias", "wo", "bo", "wh", "bh",
                "wrg", "brg", "lng", "lnb", "wgu", "bgu", "wd", "bd")


def _round_up(v, m):
    return (v + m - 1) // m * m


# --------------------------------------------------------------------------
# Kernel
# --------------------------------------------------------------------------
def _logical_reasoning_kernel(
    x_ref,
    wx_ref, bx_ref,            # fused x projection: [i | o | u | q*scale | premises]
    kt_ref, vb_ref, sb_ref,    # block-diagonal K^T, V, score bias (pad keys -> -1e30)
    wo_ref, bo_ref,            # attention output projection
    wh_ref, bh_ref,            # hypothesis encoder
    wrg_ref, brg_ref,          # fused [rule linear | reasoning gate], split along K
    lng_ref, lnb_ref,          # LayerNorm gamma / beta (zero in padded lanes)
    wgu_ref, bgu_ref,          # fused SwiGLU [gate | up]
    wd_ref, bd_ref,            # SwiGLU down projection
    out_ref,
    *, H, HP, MP, num_heads,
):
    f32 = jnp.float32
    bf16 = jnp.bfloat16

    def mm(a, b):  # MXU matmul, bf16 operands, f32 accumulation
        return jnp.dot(a.astype(bf16), b, preferred_element_type=f32)

    x = x_ref[...]                                            # (TB, HP) f32

    # ---- fused x projection (single wide MXU pass) ----
    xw = mm(x, wx_ref[...]) + bx_ref[...]                     # (TB, 5*HP) f32
    i_g = jax.nn.sigmoid(xw[:, 0:HP])
    o_g = jax.nn.sigmoid(xw[:, HP:2 * HP])
    u_g = jnp.tanh(xw[:, 2 * HP:3 * HP])
    tree = o_g * jnp.tanh(i_g * u_g)                          # TreeLSTM leaf cell
    q = xw[:, 3 * HP:4 * HP]                                  # already scaled by 1/sqrt(hd)
    premises = xw[:, 4 * HP:5 * HP]

    # ---- MemoryBank attention: two wide block-diagonal matmuls ----
    s = mm(q, kt_ref[...]) + sb_ref[...]                      # (TB, NH*MP) f32
    probs = []
    for h in range(num_heads):                                # static unroll, aligned slices
        sh = s[:, h * MP:(h + 1) * MP]
        sh = sh - jnp.max(sh, axis=-1, keepdims=True)
        ph = jnp.exp(sh)
        ph = ph * pl.reciprocal(jnp.sum(ph, axis=-1, keepdims=True), approx=True)
        probs.append(ph)
    p_all = jnp.concatenate(probs, axis=-1)                   # (TB, NH*MP)
    ctx = mm(p_all, vb_ref[...])                              # (TB, HP), dense head concat
    knowledge = mm(ctx, wo_ref[...]) + bo_ref[...]            # single fused W_o pass

    # ---- hypothesis encoder ----
    hypothesis = mm(tree, wh_ref[...]) + bh_ref[...]          # (TB, HP)

    # ---- fused [rule linear | gate logits] without materializing rv ----
    racc = (mm(premises, wrg_ref[0:HP, :])
            + mm(hypothesis, wrg_ref[HP:2 * HP, :])
            + mm(knowledge, wrg_ref[2 * HP:3 * HP, :])
            + brg_ref[...])                                   # (TB, HP + 128) f32
    r = racc[:, 0:HP]
    glog = racc[:, HP:HP + 3]                                 # (TB, 3) gate logits

    # reasoning-gate softmax over 3 branches — exact divide (scales final output)
    glog = glog - jnp.max(glog, axis=-1, keepdims=True)
    ge = jnp.exp(glog)
    gw = ge / jnp.sum(ge, axis=-1, keepdims=True)

    # ---- LayerNorm over the real H lanes ----
    if HP != H:
        lane_idx = jax.lax.broadcasted_iota(jnp.int32, r.shape, 1)
        lane_mask = lane_idx < H
        r = jnp.where(lane_mask, r, 0.0)
    mu = jnp.sum(r, axis=-1, keepdims=True) * (1.0 / H)
    cent = r - mu
    if HP != H:
        cent = jnp.where(lane_mask, cent, 0.0)
    var = jnp.sum(cent * cent, axis=-1, keepdims=True) * (1.0 / H)
    r_ln = cent * jax.lax.rsqrt(var + LN_EPS) * lng_ref[...] + lnb_ref[...]

    # ---- SwiGLU: fused [gate | up] then down projection ----
    gu = mm(r_ln, wgu_ref[...]) + bgu_ref[...]                # (TB, 2*HP)
    gate = gu[:, 0:HP]
    up = gu[:, HP:2 * HP]
    swi = (gate * jax.nn.sigmoid(gate)) * up
    rule = mm(swi, wd_ref[...]) + bd_ref[...]                 # (TB, HP)

    # ---- weighted mixture of the three branches ----
    out_ref[...] = (gw[:, 0:1] * premises
                    + gw[:, 1:2] * hypothesis
                    + gw[:, 2:3] * rule)


# --------------------------------------------------------------------------
# Parameter packing: pad to lane-aligned shapes, hoist K/V projection,
# fuse shared-LHS weights, cast MXU operands to bf16 (biases / LN stay f32).
# --------------------------------------------------------------------------
def _pack_params(p, H, M, head_dim, num_heads):
    f32, bf16 = jnp.float32, jnp.bfloat16
    HP = _round_up(H, LANE)
    MP = _round_up(M, LANE)
    scale = 1.0 / math.sqrt(head_dim)

    def pad_w(w, rows, cols):
        w = jnp.asarray(w, f32)
        return jnp.pad(w, ((0, rows - w.shape[0]), (0, cols - w.shape[1])))

    def pad_b(b, cols=HP):
        b = jnp.asarray(b, f32).reshape(1, -1)
        return jnp.pad(b, ((0, 0), (0, cols - b.shape[1])))

    w_iou = jnp.asarray(p["w_iou"], f32)
    b_iou = jnp.asarray(p["b_iou"], f32)
    wx = jnp.concatenate([
        pad_w(w_iou[:, 0:H], HP, HP),
        pad_w(w_iou[:, H:2 * H], HP, HP),
        pad_w(w_iou[:, 2 * H:3 * H], HP, HP),
        pad_w(jnp.asarray(p["wq"], f32) * scale, HP, HP),     # fold 1/sqrt(hd) into q
        pad_w(p["wp"], HP, HP)], axis=1)
    bx = jnp.concatenate([
        pad_b(b_iou[0:H]), pad_b(b_iou[H:2 * H]), pad_b(b_iou[2 * H:3 * H]),
        pad_b(jnp.asarray(p["bq"], f32) * scale), pad_b(p["bp"])], axis=1)

    # ---- K/V projection hoisted out of the kernel (x-independent) ----
    k = jnp.asarray(p["memory"], f32) @ jnp.asarray(p["wk"], f32) + jnp.asarray(p["bk"], f32)
    v = jnp.asarray(p["memory"], f32) @ jnp.asarray(p["wv"], f32) + jnp.asarray(p["bv"], f32)
    kt = jnp.zeros((HP, num_heads * MP), f32)     # block-diagonal K^T (dense head lanes)
    vb = jnp.zeros((num_heads * MP, HP), f32)     # block-diagonal V
    for h in range(num_heads):
        kh = k[:, h * head_dim:(h + 1) * head_dim]            # (M, hd)
        vh = v[:, h * head_dim:(h + 1) * head_dim]
        kt = kt.at[h * head_dim:(h + 1) * head_dim, h * MP:h * MP + M].set(kh.T)
        vb = vb.at[h * MP:h * MP + M, h * head_dim:(h + 1) * head_dim].set(vh)
    col = jnp.arange(num_heads * MP) % MP
    sbias = jnp.where(col < M, 0.0, NEG_INF).astype(f32).reshape(1, -1)

    wo, bo = pad_w(p["wo"], HP, HP), pad_b(p["bo"])
    wh, bh = pad_w(p["wh"], HP, HP), pad_b(p["bh"])

    wr = jnp.asarray(p["wr"], f32)
    wg = jnp.asarray(p["wg"], f32)
    wrg = jnp.zeros((3 * HP, HP + LANE), f32)     # [rule linear | 3 gate logits (padded)]
    for blk in range(3):                          # K-blocks: premises / hypothesis / knowledge
        wrg = wrg.at[blk * HP:blk * HP + H, 0:H].set(wr[blk * H:(blk + 1) * H, :])
        wrg = wrg.at[blk * HP:blk * HP + H, HP:HP + 3].set(wg[blk * H:(blk + 1) * H, :])
    brg = jnp.zeros((1, HP + LANE), f32)
    brg = brg.at[0, 0:H].set(jnp.asarray(p["br"], f32))
    brg = brg.at[0, HP:HP + 3].set(jnp.asarray(p["bg"], f32))

    lng, lnb = pad_b(p["ln_g"]), pad_b(p["ln_b"])
    wgu = jnp.concatenate([pad_w(p["w_gate"], HP, HP), pad_w(p["w_up"], HP, HP)], axis=1)
    bgu = jnp.concatenate([pad_b(p["b_gate"]), pad_b(p["b_up"])], axis=1)
    wd, bd = pad_w(p["w_down"], HP, HP), pad_b(p["b_down"])

    return dict(wx=wx.astype(bf16), bx=bx,
                kt=kt.astype(bf16), vb=vb.astype(bf16), sbias=sbias,
                wo=wo.astype(bf16), bo=bo, wh=wh.astype(bf16), bh=bh,
                wrg=wrg.astype(bf16), brg=brg, lng=lng, lnb=lnb,
                wgu=wgu.astype(bf16), bgu=bgu, wd=wd.astype(bf16), bd=bd)


# --------------------------------------------------------------------------
# Wrapper
# --------------------------------------------------------------------------
def enhanced_logical_reasoning(x, params, *, num_heads=NUM_HEADS):
    B, H = x.shape
    assert H % num_heads == 0, "hidden_size must be divisible by num_heads"
    head_dim = H // num_heads
    HP = _round_up(H, LANE)
    M = params["memory"].shape[0]
    MP = _round_up(M, LANE)

    packed = _pack_params(params, H, M, head_dim, num_heads)
    args = [packed[k] for k in PACKED_ORDER]
    weight_bytes = sum(int(a.size) * a.dtype.itemsize for a in args)

    # --- per-generation VMEM budget (v7x: 64 MiB/TC, v5e/v6e: 128 MiB) ---
    try:
        vmem_cap = int(pltpu.get_tpu_info().vmem_capacity_bytes)
    except Exception:
        vmem_cap = 64 * 1024 * 1024
    budget = int(vmem_cap * 0.75)

    def footprint(tb, weight_bufs):
        # f32 activation slabs: xw(5HP) + scores/probs(2*NH*MP) + ~12 HP-wide temps
        act = 4 * tb * (5 * HP + 2 * num_heads * MP + 12 * HP + 2 * LANE)
        io = 2 * 2 * tb * HP * 4                   # double-buffered x / out tiles
        return weight_bufs * weight_bytes + act + io

    tile_b = min(512, max(SUBLANE, _round_up(B, SUBLANE)))
    while tile_b > SUBLANE and footprint(tile_b, 1) > budget:
        tile_b = max(SUBLANE, _round_up(tile_b // 2, SUBLANE))
    # prefer >=2 grid steps so v7x's two TensorCores both get work
    if _round_up(B, SUBLANE) // tile_b < 2 and _round_up(B, SUBLANE) >= 2 * SUBLANE:
        tile_b = max(SUBLANE, _round_up(pl.cdiv(_round_up(B, SUBLANE), 2), SUBLANE))
    B_pad = _round_up(B, tile_b)
    n_steps = B_pad // tile_b

    x_p = jnp.pad(x.astype(jnp.float32), ((0, B_pad - B), (0, HP - H)))

    flops = 2 * B_pad * (HP * 5 * HP                      # fused x projection
                         + HP * num_heads * MP * 2        # attention scores + context
                         + HP * HP * 2                    # W_o + hypothesis
                         + 3 * HP * (HP + LANE)           # rule / gate fused
                         + HP * 2 * HP + HP * HP)         # SwiGLU
    transcendentals = B_pad * (7 * HP + num_heads * MP + 8)
    bytes_accessed = int(B_pad * HP * 4 * 2 + weight_bytes)

    kernel = functools.partial(_logical_reasoning_kernel,
                               H=H, HP=HP, MP=MP, num_heads=num_heads)

    def run(single_buffer):
        in_specs = [pl.BlockSpec((tile_b, HP), lambda i: (i, 0))]
        for a in args:
            if single_buffer:
                # constant index_map -> weight never changes block; single buffer
                in_specs.append(pl.BlockSpec(a.shape, lambda i: (0, 0),
                                             pipeline_mode=pl.Buffered(1)))
            else:
                in_specs.append(pl.BlockSpec(a.shape, lambda i: (0, 0)))
        vmem_limit = int(min(vmem_cap * 0.95,
                             max(32 * 1024 * 1024,
                                 footprint(tile_b, 1 if single_buffer else 2) * 1.5)))
        return pl.pallas_call(
            kernel,
            out_shape=jax.ShapeDtypeStruct((B_pad, HP), jnp.float32),
            grid=(n_steps,),
            in_specs=in_specs,
            out_specs=pl.BlockSpec((tile_b, HP), lambda i: (i, 0)),
            compiler_params=pltpu.CompilerParams(
                dimension_semantics=("parallel",),
                vmem_limit_bytes=vmem_limit),
            cost_estimate=pl.CostEstimate(
                flops=int(flops), transcendentals=int(transcendentals),
                bytes_accessed=int(bytes_accessed)),
        )(x_p, *args)

    try:
        out = run(single_buffer=True)
    except Exception:
        # TODO(synk): pl.Buffered(1) single-buffering rejected on this jax build;
        # fall back to default double-buffered resident weights.
        out = run(single_buffer=False)
    return out[:B, :H]


# --------------------------------------------------------------------------
# Parameters + full-precision reference
# --------------------------------------------------------------------------
def init_params(key, hidden_size, memory_size):
    H, M = hidden_size, memory_size

    def lin(k, fan_in, fan_out):
        s = 1.0 / math.sqrt(fan_in)
        kw, kb = jax.random.split(k)
        w = jax.random.uniform(kw, (fan_in, fan_out), jnp.float32, -s, s)
        b = jax.random.uniform(kb, (fan_out,), jnp.float32, -s, s)
        return w, b

    keys = jax.random.split(key, 16)
    p = {}
    p["w_iou"], p["b_iou"] = lin(keys[0], H, 3 * H)
    p["memory"] = jax.random.normal(keys[1], (M, H), jnp.float32) * 0.1
    p["wq"], p["bq"] = lin(keys[2], H, H)
    p["wk"], p["bk"] = lin(keys[3], H, H)
    p["wv"], p["bv"] = lin(keys[4], H, H)
    p["wo"], p["bo"] = lin(keys[5], H, H)
    p["wp"], p["bp"] = lin(keys[6], H, H)
    p["wh"], p["bh"] = lin(keys[7], H, H)
    p["wg"], p["bg"] = lin(keys[8], 3 * H, 3)
    p["wr"], p["br"] = lin(keys[9], 3 * H, H)
    p["ln_g"] = jnp.ones((H,), jnp.float32)
    p["ln_b"] = jnp.zeros((H,), jnp.float32)
    p["w_gate"], p["b_gate"] = lin(keys[10], H, H)
    p["w_up"], p["b_up"] = lin(keys[11], H, H)
    p["w_down"], p["b_down"] = lin(keys[12], H, H)
    return p


def reference_forward(x, p, num_heads=NUM_HEADS):
    """Full-f32, unpadded mirror of the module semantics."""
    H = x.shape[1]
    iou = x @ p["w_iou"] + p["b_iou"]
    i_g = jax.nn.sigmoid(iou[:, 0:H])
    o_g = jax.nn.sigmoid(iou[:, H:2 * H])
    u_g = jnp.tanh(iou[:, 2 * H:3 * H])
    tree = o_g * jnp.tanh(i_g * u_g)

    q = x @ p["wq"] + p["bq"]
    k = p["memory"] @ p["wk"] + p["bk"]
    v = p["memory"] @ p["wv"] + p["bv"]
    hd = H // num_heads
    outs = []
    for h in range(num_heads):
        sl = slice(h * hd, (h + 1) * hd)
        s = (q[:, sl] @ k[:, sl].T) / math.sqrt(hd)
        outs.append(jax.nn.softmax(s, -1) @ v[:, sl])
    knowledge = jnp.concatenate(outs, -1) @ p["wo"] + p["bo"]

    premises = x @ p["wp"] + p["bp"]
    hypothesis = tree @ p["wh"] + p["bh"]
    rv = jnp.concatenate([premises, hypothesis, knowledge], -1)
    weights = jax.nn.softmax(rv @ p["wg"] + p["bg"], -1)

    r = rv @ p["wr"] + p["br"]
    mu = jnp.mean(r, -1, keepdims=True)
    var = jnp.mean((r - mu) ** 2, -1, keepdims=True)
    r_ln = (r - mu) * jax.lax.rsqrt(var + LN_EPS) * p["ln_g"] + p["ln_b"]
    gate = r_ln @ p["w_gate"] + p["b_gate"]
    up = r_ln @ p["w_up"] + p["b_up"]
    rule = ((gate * jax.nn.sigmoid(gate)) * up) @ p["w_down"] + p["b_down"]
    return (weights[:, 0:1] * premises + weights[:, 1:2] * hypothesis
            + weights[:, 2:3] * rule)


if __name__ == "__main__":
    B, H, M = 2, 32, 16
    key = jax.random.PRNGKey(0)
    kx, kp = jax.random.split(key)
    x = jax.random.normal(kx, (B, H), jnp.float32)
    params = init_params(kp, hidden_size=H, memory_size=M)

    out = jax.block_until_ready(enhanced_logical_reasoning(x, params))
    assert out.shape == (B, H), out.shape

    # semantic check vs the full-f32 unpadded module forward
    ref = reference_forward(x, params)
    err = float(jnp.max(jnp.abs(out - ref)))
    assert jnp.allclose(out, ref, rtol=5e-2, atol=5e-2), err

    print("KERNEL_OK")
</pallas_src>

<mosaic_0001>
module attributes {stable_mosaic.version = 11 : i64} {
  func.func @_logical_reasoning_kernel(%arg0: i32, %arg1: memref<8x128xf32, #tpu.memory_space<vmem>>, %arg2: memref<128x640xbf16, #tpu.memory_space<vmem>>, %arg3: memref<1x640xf32, #tpu.memory_space<vmem>>, %arg4: memref<128x512xbf16, #tpu.memory_space<vmem>>, %arg5: memref<512x128xbf16, #tpu.memory_space<vmem>>, %arg6: memref<1x512xf32, #tpu.memory_space<vmem>>, %arg7: memref<128x128xbf16, #tpu.memory_space<vmem>>, %arg8: memref<1x128xf32, #tpu.memory_space<vmem>>, %arg9: memref<128x128xbf16, #tpu.memory_space<vmem>>, %arg10: memref<1x128xf32, #tpu.memory_space<vmem>>, %arg11: memref<384x256xbf16, #tpu.memory_space<vmem>>, %arg12: memref<1x256xf32, #tpu.memory_space<vmem>>, %arg13: memref<1x128xf32, #tpu.memory_space<vmem>>, %arg14: memref<1x128xf32, #tpu.memory_space<vmem>>, %arg15: memref<128x256xbf16, #tpu.memory_space<vmem>>, %arg16: memref<1x256xf32, #tpu.memory_space<vmem>>, %arg17: memref<128x128xbf16, #tpu.memory_space<vmem>>, %arg18: memref<1x128xf32, #tpu.memory_space<vmem>>, %arg19: memref<8x128xf32, #tpu.memory_space<vmem>>) attributes {dimension_semantics = [#tpu.dimension_semantics<parallel>], iteration_bounds = array<i64: 1>, scalar_prefetch = 0 : i64, scratch_operands = 0 : i64, tpu.core_type = #tpu.core_type<tc>, window_params = [{transform_indices = @transform_0, window_bounds = array<i64: 8, 128>}, {pipeline_mode = #tpu.pipeline_mode<synchronous>, transform_indices = @transform_1, window_bounds = array<i64: 128, 640>}, {pipeline_mode = #tpu.pipeline_mode<synchronous>, transform_indices = @transform_2, window_bounds = array<i64: 1, 640>}, {pipeline_mode = #tpu.pipeline_mode<synchronous>, transform_indices = @transform_3, window_bounds = array<i64: 128, 512>}, {pipeline_mode = #tpu.pipeline_mode<synchronous>, transform_indices = @transform_4, window_bounds = array<i64: 512, 128>}, {pipeline_mode = #tpu.pipeline_mode<synchronous>, transform_indices = @transform_5, window_bounds = array<i64: 1, 512>}, {pipeline_mode = #tpu.pipeline_mode<synchronous>, transform_indices = @transform_6, window_bounds = array<i64: 128, 128>}, {pipeline_mode = #tpu.pipeline_mode<synchronous>, transform_indices = @transform_7, window_bounds = array<i64: 1, 128>}, {pipeline_mode = #tpu.pipeline_mode<synchronous>, transform_indices = @transform_8, window_bounds = array<i64: 128, 128>}, {pipeline_mode = #tpu.pipeline_mode<synchronous>, transform_indices = @transform_9, window_bounds = array<i64: 1, 128>}, {pipeline_mode = #tpu.pipeline_mode<synchronous>, transform_indices = @transform_10, window_bounds = array<i64: 384, 256>}, {pipeline_mode = #tpu.pipeline_mode<synchronous>, transform_indices = @transform_11, window_bounds = array<i64: 1, 256>}, {pipeline_mode = #tpu.pipeline_mode<synchronous>, transform_indices = @transform_12, window_bounds = array<i64: 1, 128>}, {pipeline_mode = #tpu.pipeline_mode<synchronous>, transform_indices = @transform_13, window_bounds = array<i64: 1, 128>}, {pipeline_mode = #tpu.pipeline_mode<synchronous>, transform_indices = @transform_14, window_bounds = array<i64: 128, 256>}, {pipeline_mode = #tpu.pipeline_mode<synchronous>, transform_indices = @transform_15, window_bounds = array<i64: 1, 256>}, {pipeline_mode = #tpu.pipeline_mode<synchronous>, transform_indices = @transform_16, window_bounds = array<i64: 128, 128>}, {pipeline_mode = #tpu.pipeline_mode<synchronous>, transform_indices = @transform_17, window_bounds = array<i64: 1, 128>}, {transform_indices = @transform_18, window_bounds = array<i64: 8, 128>}]} {
    %c0 = arith.constant 0 : index
    %c0_0 = arith.constant 0 : index
    %0 = vector.load %arg1[%c0, %c0_0] : memref<8x128xf32, #tpu.memory_space<vmem>>, vector<8x128xf32>
    %c0_1 = arith.constant 0 : index
    %c0_2 = arith.constant 0 : index
    %1 = vector.load %arg2[%c0_1, %c0_2] : memref<128x640xbf16, #tpu.memory_space<vmem>>, vector<128x640xbf16>
    %2 = arith.truncf %0 : vector<8x128xf32> to vector<8x128xbf16>
    %cst = arith.constant dense<0.000000e+00> : vector<8x640xf32>
    %3 = tpu.matmul %2, %1, %cst {dimension_numbers = #tpu.dot_dimension_numbers<[1], [0], [0], [1], [0, 0, 1, 1], [], []>} : vector<8x128xbf16>, vector<128x640xbf16>, vector<8x640xf32> -> vector<8x640xf32>
    %c0_3 = arith.constant 0 : index
    %c0_4 = arith.constant 0 : index
    %4 = vector.load %arg3[%c0_3, %c0_4] : memref<1x640xf32, #tpu.memory_space<vmem>>, vector<1x640xf32>
    %5 = vector.broadcast %4 : vector<1x640xf32> to vector<8x640xf32>
    %6 = arith.addf %3, %5 : vector<8x640xf32>
    %7 = vector.extract_strided_slice %6 {offsets = [0, 0], sizes = [8, 128], strides = [1, 1]} : vector<8x640xf32> to vector<8x128xf32>
    %8 = arith.negf %7 : vector<8x128xf32>
    %9 = math.exp %8 : vector<8x128xf32>
    %cst_5 = arith.constant 1.000000e+00 : f32
    %10 = vector.broadcast %cst_5 : f32 to vector<8x128xf32>
    %11 = arith.addf %10, %9 : vector<8x128xf32>
    %12 = arith.divf %10, %11 : vector<8x128xf32>
    %13 = vector.extract_strided_slice %6 {offsets = [0, 128], sizes = [8, 128], strides = [1, 1]} : vector<8x640xf32> to vector<8x128xf32>
    %14 = arith.negf %13 : vector<8x128xf32>
    %15 = math.exp %14 : vector<8x128xf32>
    %cst_6 = arith.constant 1.000000e+00 : f32
    %16 = vector.broadcast %cst_6 : f32 to vector<8x128xf32>
    %17 = arith.addf %16, %15 : vector<8x128xf32>
    %18 = arith.divf %16, %17 : vector<8x128xf32>
    %19 = vector.extract_strided_slice %6 {offsets = [0, 256], sizes = [8, 128], strides = [1, 1]} : vector<8x640xf32> to vector<8x128xf32>
    %20 = math.tanh %19 : vector<8x128xf32>
    %21 = arith.mulf %12, %20 : vector<8x128xf32>
    %22 = math.tanh %21 : vector<8x128xf32>
    %23 = arith.mulf %18, %22 : vector<8x128xf32>
    %24 = vector.extract_strided_slice %6 {offsets = [0, 384], sizes = [8, 128], strides = [1, 1]} : vector<8x640xf32> to vector<8x128xf32>
    %25 = vector.extract_strided_slice %6 {offsets = [0, 512], sizes = [8, 128], strides = [1, 1]} : vector<8x640xf32> to vector<8x128xf32>
    %c0_7 = arith.constant 0 : index
    %c0_8 = arith.constant 0 : index
    %26 = vector.load %arg4[%c0_7, %c0_8] : memref<128x512xbf16, #tpu.memory_space<vmem>>, vector<128x512xbf16>
    %27 = arith.truncf %24 : vector<8x128xf32> to vector<8x128xbf16>
    %cst_9 = arith.constant dense<0.000000e+00> : vector<8x512xf32>
    %28 = tpu.matmul %27, %26, %cst_9 {dimension_numbers = #tpu.dot_dimension_numbers<[1], [0], [0], [1], [0, 0, 1, 1], [], []>} : vector<8x128xbf16>, vector<128x512xbf16>, vector<8x512xf32> -> vector<8x512xf32>
    %c0_10 = arith.constant 0 : index
    %c0_11 = arith.constant 0 : index
    %29 = vector.load %arg6[%c0_10, %c0_11] : memref<1x512xf32, #tpu.memory_space<vmem>>, vector<1x512xf32>
    %30 = vector.broadcast %29 : vector<1x512xf32> to vector<8x512xf32>
    %31 = arith.addf %28, %30 : vector<8x512xf32>
    %32 = vector.extract_strided_slice %31 {offsets = [0, 0], sizes = [8, 128], strides = [1, 1]} : vector<8x512xf32> to vector<8x128xf32>
    %cst_12 = arith.constant dense<0xFF800000> : vector<8xf32>
    %33 = vector.multi_reduction <maximumf>, %32, %cst_12 [1] : vector<8x128xf32> to vector<8xf32>
    %34 = vector.shape_cast %33 : vector<8xf32> to vector<8x1xf32>
    %35 = vector.broadcast %34 : vector<8x1xf32> to vector<8x128xf32>
    %36 = arith.subf %32, %35 : vector<8x128xf32>
    %37 = math.exp %36 : vector<8x128xf32>
    %cst_13 = arith.constant dense<0.000000e+00> : vector<8xf32>
    %38 = vector.multi_reduction <add>, %37, %cst_13 [1] : vector<8x128xf32> to vector<8xf32>
    %39 = vector.shape_cast %38 : vector<8xf32> to vector<8x1xf32>
    %40 = tpu.reciprocal %39 {approx = true} : vector<8x1xf32> -> vector<8x1xf32>
    %41 = vector.broadcast %40 : vector<8x1xf32> to vector<8x128xf32>
    %42 = arith.mulf %37, %41 : vector<8x128xf32>
    %43 = vector.extract_strided_slice %31 {offsets = [0, 128], sizes = [8, 128], strides = [1, 1]} : vector<8x512xf32> to vector<8x128xf32>
    %cst_14 = arith.constant dense<0xFF800000> : vector<8xf32>
    %44 = vector.multi_reduction <maximumf>, %43, %cst_14 [1] : vector<8x128xf32> to vector<8xf32>
    %45 = vector.shape_cast %44 : vector<8xf32> to vector<8x1xf32>
    %46 = vector.broadcast %45 : vector<8x1xf32> to vector<8x128xf32>
    %47 = arith.subf %43, %46 : vector<8x128xf32>
    %48 = math.exp %47 : vector<8x128xf32>
    %cst_15 = arith.constant dense<0.000000e+00> : vector<8xf32>
    %49 = vector.multi_reduction <add>, %48, %cst_15 [1] : vector<8x128xf32> to vector<8xf32>
    %50 = vector.shape_cast %49 : vector<8xf32> to vector<8x1xf32>
    %51 = tpu.reciprocal %50 {approx = true} : vector<8x1xf32> -> vector<8x1xf32>
    %52 = vector.broadcast %51 : vector<8x1xf32> to vector<8x128xf32>
    %53 = arith.mulf %48, %52 : vector<8x128xf32>
    %54 = vector.extract_strided_slice %31 {offsets = [0, 256], sizes = [8, 128], strides = [1, 1]} : vector<8x512xf32> to vector<8x128xf32>
    %cst_16 = arith.constant dense<0xFF800000> : vector<8xf32>
    %55 = vector.multi_reduction <maximumf>, %54, %cst_16 [1] : vector<8x128xf32> to vector<8xf32>
    %56 = vector.shape_cast %55 : vector<8xf32> to vector<8x1xf32>
    %57 = vector.broadcast %56 : vector<8x1xf32> to vector<8x128xf32>
    %58 = arith.subf %54, %57 : vector<8x128xf32>
    %59 = math.exp %58 : vector<8x128xf32>
    %cst_17 = arith.constant dense<0.000000e+00> : vector<8xf32>
    %60 = vector.multi_reduction <add>, %59, %cst_17 [1] : vector<8x128xf32> to vector<8xf32>
    %61 = vector.shape_cast %60 : vector<8xf32> to vector<8x1xf32>
    %62 = tpu.reciprocal %61 {approx = true} : vector<8x1xf32> -> vector<8x1xf32>
    %63 = vector.broadcast %62 : vector<8x1xf32> to vector<8x128xf32>
    %64 = arith.mulf %59, %63 : vector<8x128xf32>
    %65 = vector.extract_strided_slice %31 {offsets = [0, 384], sizes = [8, 128], strides = [1, 1]} : vector<8x512xf32> to vector<8x128xf32>
    %cst_18 = arith.constant dense<0xFF800000> : vector<8xf32>
    %66 = vector.multi_reduction <maximumf>, %65, %cst_18 [1] : vector<8x128xf32> to vector<8xf32>
    %67 = vector.shape_cast %66 : vector<8xf32> to vector<8x1xf32>
    %68 = vector.broadcast %67 : vector<8x1xf32> to vector<8x128xf32>
    %69 = arith.subf %65, %68 : vector<8x128xf32>
    %70 = math.exp %69 : vector<8x128xf32>
    %cst_19 = arith.constant dense<0.000000e+00> : vector<8xf32>
    %71 = vector.multi_reduction <add>, %70, %cst_19 [1] : vector<8x128xf32> to vector<8xf32>
    %72 = vector.shape_cast %71 : vector<8xf32> to vector<8x1xf32>
    %73 = tpu.reciprocal %72 {approx = true} : vector<8x1xf32> -> vector<8x1xf32>
    %74 = vector.broadcast %73 : vector<8x1xf32> to vector<8x128xf32>
    %75 = arith.mulf %70, %74 : vector<8x128xf32>
    %76 = tpu.concatenate %42, %53, %64, %75 in 1 : vector<8x128xf32>, vector<8x128xf32>, vector<8x128xf32>, vector<8x128xf32> -> vector<8x512xf32>
    %c0_20 = arith.constant 0 : index
    %c0_21 = arith.constant 0 : index
    %77 = vector.load %arg5[%c0_20, %c0_21] : memref<512x128xbf16, #tpu.memory_space<vmem>>, vector<512x128xbf16>
    %78 = arith.truncf %76 : vector<8x512xf32> to vector<8x512xbf16>
    %cst_22 = arith.constant dense<0.000000e+00> : vector<8x128xf32>
    %79 = tpu.matmul %78, %77, %cst_22 {dimension_numbers = #tpu.dot_dimension_numbers<[1], [0], [0], [1], [0, 0, 1, 1], [], []>} : vector<8x512xbf16>, vector<512x128xbf16>, vector<8x128xf32> -> vector<8x128xf32>
    %c0_23 = arith.constant 0 : index
    %c0_24 = arith.constant 0 : index
    %80 = vector.load %arg7[%c0_23, %c0_24] : memref<128x128xbf16, #tpu.memory_space<vmem>>, vector<128x128xbf16>
    %81 = arith.truncf %79 : vector<8x128xf32> to vector<8x128xbf16>
    %cst_25 = arith.constant dense<0.000000e+00> : vector<8x128xf32>
    %82 = tpu.matmul %81, %80, %cst_25 {dimension_numbers = #tpu.dot_dimension_numbers<[1], [0], [0], [1], [0, 0, 1, 1], [], []>} : vector<8x128xbf16>, vector<128x128xbf16>, vector<8x128xf32> -> vector<8x128xf32>
    %c0_26 = arith.constant 0 : index
    %c0_27 = arith.constant 0 : index
    %83 = vector.load %arg8[%c0_26, %c0_27] : memref<1x128xf32, #tpu.memory_space<vmem>>, vector<1x128xf32>
    %84 = vector.broadcast %83 : vector<1x128xf32> to vector<8x128xf32>
    %85 = arith.addf %82, %84 : vector<8x128xf32>
    %c0_28 = arith.constant 0 : index
    %c0_29 = arith.constant 0 : index
    %86 = vector.load %arg9[%c0_28, %c0_29] : memref<128x128xbf16, #tpu.memory_space<vmem>>, vector<128x128xbf16>
    %87 = arith.truncf %23 : vector<8x128xf32> to vector<8x128xbf16>
    %cst_30 = arith.constant dense<0.000000e+00> : vector<8x128xf32>
    %88 = tpu.matmul %87, %86, %cst_30 {dimension_numbers = #tpu.dot_dimension_numbers<[1], [0], [0], [1], [0, 0, 1, 1], [], []>} : vector<8x128xbf16>, vector<128x128xbf16>, vector<8x128xf32> -> vector<8x128xf32>
    %c0_31 = arith.constant 0 : index
    %c0_32 = arith.constant 0 : index
    %89 = vector.load %arg10[%c0_31, %c0_32] : memref<1x128xf32, #tpu.memory_space<vmem>>, vector<1x128xf32>
    %90 = vector.broadcast %89 : vector<1x128xf32> to vector<8x128xf32>
    %91 = arith.addf %88, %90 : vector<8x128xf32>
    %c0_33 = arith.constant 0 : index
    %c0_34 = arith.constant 0 : index
    %92 = vector.load %arg11[%c0_33, %c0_34] : memref<384x256xbf16, #tpu.memory_space<vmem>>, vector<128x256xbf16>
    %93 = arith.truncf %25 : vector<8x128xf32> to vector<8x128xbf16>
    %cst_35 = arith.constant dense<0.000000e+00> : vector<8x256xf32>
    %94 = tpu.matmul %93, %92, %cst_35 {dimension_numbers = #tpu.dot_dimension_numbers<[1], [0], [0], [1], [0, 0, 1, 1], [], []>} : vector<8x128xbf16>, vector<128x256xbf16>, vector<8x256xf32> -> vector<8x256xf32>
    %c128 = arith.constant 128 : index
    %c0_36 = arith.constant 0 : index
    %95 = vector.load %arg11[%c128, %c0_36] : memref<384x256xbf16, #tpu.memory_space<vmem>>, vector<128x256xbf16>
    %96 = arith.truncf %91 : vector<8x128xf32> to vector<8x128xbf16>
    %cst_37 = arith.constant dense<0.000000e+00> : vector<8x256xf32>
    %97 = tpu.matmul %96, %95, %cst_37 {dimension_numbers = #tpu.dot_dimension_numbers<[1], [0], [0], [1], [0, 0, 1, 1], [], []>} : vector<8x128xbf16>, vector<128x256xbf16>, vector<8x256xf32> -> vector<8x256xf32>
    %98 = arith.addf %94, %97 : vector<8x256xf32>
    %c256 = arith.constant 256 : index
    %c0_38 = arith.constant 0 : index
    %99 = vector.load %arg11[%c256, %c0_38] : memref<384x256xbf16, #tpu.memory_space<vmem>>, vector<128x256xbf16>
    %100 = arith.truncf %85 : vector<8x128xf32> to vector<8x128xbf16>
    %cst_39 = arith.constant dense<0.000000e+00> : vector<8x256xf32>
    %101 = tpu.matmul %100, %99, %cst_39 {dimension_numbers = #tpu.dot_dimension_numbers<[1], [0], [0], [1], [0, 0, 1, 1], [], []>} : vector<8x128xbf16>, vector<128x256xbf16>, vector<8x256xf32> -> vector<8x256xf32>
    %102 = arith.addf %98, %101 : vector<8x256xf32>
    %c0_40 = arith.constant 0 : index
    %c0_41 = arith.constant 0 : index
    %103 = vector.load %arg12[%c0_40, %c0_41] : memref<1x256xf32, #tpu.memory_space<vmem>>, vector<1x256xf32>
    %104 = vector.broadcast %103 : vector<1x256xf32> to vector<8x256xf32>
    %105 = arith.addf %102, %104 : vector<8x256xf32>
    %106 = vector.extract_strided_slice %105 {offsets = [0, 0], sizes = [8, 128], strides = [1, 1]} : vector<8x256xf32> to vector<8x128xf32>
    %107 = vector.extract_strided_slice %105 {offsets = [0, 128], sizes = [8, 3], strides = [1, 1]} : vector<8x256xf32> to vector<8x3xf32>
    %cst_42 = arith.constant dense<0xFF800000> : vector<8xf32>
    %108 = vector.multi_reduction <maximumf>, %107, %cst_42 [1] : vector<8x3xf32> to vector<8xf32>
    %109 = vector.shape_cast %108 : vector<8xf32> to vector<8x1xf32>
    %110 = vector.broadcast %109 : vector<8x1xf32> to vector<8x3xf32>
    %111 = arith.subf %107, %110 : vector<8x3xf32>
    %112 = math.exp %111 : vector<8x3xf32>
    %cst_43 = arith.constant dense<0.000000e+00> : vector<8xf32>
    %113 = vector.multi_reduction <add>, %112, %cst_43 [1] : vector<8x3xf32> to vector<8xf32>
    %114 = vector.shape_cast %113 : vector<8xf32> to vector<8x1xf32>
    %115 = vector.broadcast %114 : vector<8x1xf32> to vector<8x3xf32>
    %116 = arith.divf %112, %115 : vector<8x3xf32>
    %117 = tpu.iota {dimensions = array<i32: 1>} : vector<8x128xi32>
    %c32_i32 = arith.constant 32 : i32
    %118 = vector.broadcast %c32_i32 : i32 to vector<8x128xi32>
    %119 = arith.cmpi slt, %117, %118 : vector<8x128xi32>
    %cst_44 = arith.constant 0.000000e+00 : f32
    %120 = vector.broadcast %cst_44 : f32 to vector<8x128xf32>
    %121 = arith.select %119, %106, %120 : vector<8x128xi1>, vector<8x128xf32>
    %cst_45 = arith.constant dense<0.000000e+00> : vector<8xf32>
    %122 = vector.multi_reduction <add>, %121, %cst_45 [1] : vector<8x128xf32> to vector<8xf32>
    %123 = vector.shape_cast %122 : vector<8xf32> to vector<8x1xf32>
    %cst_46 = arith.constant 3.125000e-02 : f32
    %124 = vector.broadcast %cst_46 : f32 to vector<8x1xf32>
    %125 = arith.mulf %123, %124 : vector<8x1xf32>
    %126 = vector.broadcast %125 : vector<8x1xf32> to vector<8x128xf32>
    %127 = arith.subf %121, %126 : vector<8x128xf32>
    %cst_47 = arith.constant 0.000000e+00 : f32
    %128 = vector.broadcast %cst_47 : f32 to vector<8x128xf32>
    %129 = arith.select %119, %127, %128 : vector<8x128xi1>, vector<8x128xf32>
    %130 = arith.mulf %129, %129 : vector<8x128xf32>
    %cst_48 = arith.constant dense<0.000000e+00> : vector<8xf32>
    %131 = vector.multi_reduction <add>, %130, %cst_48 [1] : vector<8x128xf32> to vector<8xf32>
    %132 = vector.shape_cast %131 : vector<8xf32> to vector<8x1xf32>
    %cst_49 = arith.constant 3.125000e-02 : f32
    %133 = vector.broadcast %cst_49 : f32 to vector<8x1xf32>
    %134 = arith.mulf %132, %133 : vector<8x1xf32>
    %cst_50 = arith.constant 9.99999974E-6 : f32
    %135 = vector.broadcast %cst_50 : f32 to vector<8x1xf32>
    %136 = arith.addf %134, %135 : vector<8x1xf32>
    %137 = math.rsqrt %136 : vector<8x1xf32>
    %138 = vector.broadcast %137 : vector<8x1xf32> to vector<8x128xf32>
    %139 = arith.mulf %129, %138 : vector<8x128xf32>
    %c0_51 = arith.constant 0 : index
    %c0_52 = arith.constant 0 : index
    %140 = vector.load %arg13[%c0_51, %c0_52] : memref<1x128xf32, #tpu.memory_space<vmem>>, vector<1x128xf32>
    %141 = vector.broadcast %140 : vector<1x128xf32> to vector<8x128xf32>
    %142 = arith.mulf %139, %141 : vector<8x128xf32>
    %c0_53 = arith.constant 0 : index
    %c0_54 = arith.constant 0 : index
    %143 = vector.load %arg14[%c0_53, %c0_54] : memref<1x128xf32, #tpu.memory_space<vmem>>, vector<1x128xf32>
    %144 = vector.broadcast %143 : vector<1x128xf32> to vector<8x128xf32>
    %145 = arith.addf %142, %144 : vector<8x128xf32>
    %c0_55 = arith.constant 0 : index
    %c0_56 = arith.constant 0 : index
    %146 = vector.load %arg15[%c0_55, %c0_56] : memref<128x256xbf16, #tpu.memory_space<vmem>>, vector<128x256xbf16>
    %147 = arith.truncf %145 : vector<8x128xf32> to vector<8x128xbf16>
    %cst_57 = arith.constant dense<0.000000e+00> : vector<8x256xf32>
    %148 = tpu.matmul %147, %146, %cst_57 {dimension_numbers = #tpu.dot_dimension_numbers<[1], [0], [0], [1], [0, 0, 1, 1], [], []>} : vector<8x128xbf16>, vector<128x256xbf16>, vector<8x256xf32> -> vector<8x256xf32>
    %c0_58 = arith.constant 0 : index
    %c0_59 = arith.constant 0 : index
    %149 = vector.load %arg16[%c0_58, %c0_59] : memref<1x256xf32, #tpu.memory_space<vmem>>, vector<1x256xf32>
    %150 = vector.broadcast %149 : vector<1x256xf32> to vector<8x256xf32>
    %151 = arith.addf %148, %150 : vector<8x256xf32>
    %152 = vector.extract_strided_slice %151 {offsets = [0, 0], sizes = [8, 128], strides = [1, 1]} : vector<8x256xf32> to vector<8x128xf32>
    %153 = vector.extract_strided_slice %151 {offsets = [0, 128], sizes = [8, 128], strides = [1, 1]} : vector<8x256xf32> to vector<8x128xf32>
    %154 = arith.negf %152 : vector<8x128xf32>
    %155 = math.exp %154 : vector<8x128xf32>
    %cst_60 = arith.constant 1.000000e+00 : f32
    %156 = vector.broadcast %cst_60 : f32 to vector<8x128xf32>
    %157 = arith.addf %156, %155 : vector<8x128xf32>
    %158 = arith.divf %156, %157 : vector<8x128xf32>
    %159 = arith.mulf %152, %158 : vector<8x128xf32>
    %160 = arith.mulf %159, %153 : vector<8x128xf32>
    %c0_61 = arith.constant 0 : index
    %c0_62 = arith.constant 0 : index
    %161 = vector.load %arg17[%c0_61, %c0_62] : memref<128x128xbf16, #tpu.memory_space<vmem>>, vector<128x128xbf16>
    %162 = arith.truncf %160 : vector<8x128xf32> to vector<8x128xbf16>
    %cst_63 = arith.constant dense<0.000000e+00> : vector<8x128xf32>
    %163 = tpu.matmul %162, %161, %cst_63 {dimension_numbers = #tpu.dot_dimension_numbers<[1], [0], [0], [1], [0, 0, 1, 1], [], []>} : vector<8x128xbf16>, vector<128x128xbf16>, vector<8x128xf32> -> vector<8x128xf32>
    %c0_64 = arith.constant 0 : index
    %c0_65 = arith.constant 0 : index
    %164 = vector.load %arg18[%c0_64, %c0_65] : memref<1x128xf32, #tpu.memory_space<vmem>>, vector<1x128xf32>
    %165 = vector.broadcast %164 : vector<1x128xf32> to vector<8x128xf32>
    %166 = arith.addf %163, %165 : vector<8x128xf32>
    %167 = vector.extract_strided_slice %116 {offsets = [0, 0], sizes = [8, 1], strides = [1, 1]} : vector<8x3xf32> to vector<8x1xf32>
    %168 = vector.broadcast %167 : vector<8x1xf32> to vector<8x128xf32>
    %169 = arith.mulf %168, %25 : vector<8x128xf32>
    %170 = vector.extract_strided_slice %116 {offsets = [0, 1], sizes = [8, 1], strides = [1, 1]} : vector<8x3xf32> to vector<8x1xf32>
    %171 = vector.broadcast %170 : vector<8x1xf32> to vector<8x128xf32>
    %172 = arith.mulf %171, %91 : vector<8x128xf32>
    %173 = arith.addf %169, %172 : vector<8x128xf32>
    %174 = vector.extract_strided_slice %116 {offsets = [0, 2], sizes = [8, 1], strides = [1, 1]} : vector<8x3xf32> to vector<8x1xf32>
    %175 = vector.broadcast %174 : vector<8x1xf32> to vector<8x128xf32>
    %176 = arith.mulf %175, %166 : vector<8x128xf32>
    %177 = arith.addf %173, %176 : vector<8x128xf32>
    %c0_66 = arith.constant 0 : index
    %c0_67 = arith.constant 0 : index
    %178 = vector.load %arg19[%c0_66, %c0_67] : memref<8x128xf32, #tpu.memory_space<vmem>>, vector<8x128xf32>
    tpu.vector_store %arg19[%c0_66, %c0_67], %177 {strides = array<i32>} : memref<8x128xf32, #tpu.memory_space<vmem>>, vector<8x128xf32>,
    return
  }
  func.func @transform_0(%arg0: i32) -> (i32, i32) {
    %c0_i32 = arith.constant 0 : i32
    %c0_i32_0 = arith.constant 0 : i32
    return %arg0, %c0_i32 : i32, i32
  }
  func.func @transform_1(%arg0: i32) -> (i32, i32) {
    %c0_i32 = arith.constant 0 : i32
    %c0_i32_0 = arith.constant 0 : i32
    %c0_i32_1 = arith.constant 0 : i32
    return %c0_i32, %c0_i32_0 : i32, i32
  }
  func.func @transform_2(%arg0: i32) -> (i32, i32) {
    %c0_i32 = arith.constant 0 : i32
    %c0_i32_0 = arith.constant 0 : i32
    %c0_i32_1 = arith.constant 0 : i32
    return %c0_i32, %c0_i32_0 : i32, i32
  }
  func.func @transform_3(%arg0: i32) -> (i32, i32) {
    %c0_i32 = arith.constant 0 : i32
    %c0_i32_0 = arith.constant 0 : i32
    %c0_i32_1 = arith.constant 0 : i32
    return %c0_i32, %c0_i32_0 : i32, i32
  }
  func.func @transform_4(%arg0: i32) -> (i32, i32) {
    %c0_i32 = arith.constant 0 : i32
    %c0_i32_0 = arith.constant 0 : i32
    %c0_i32_1 = arith.constant 0 : i32
    return %c0_i32, %c0_i32_0 : i32, i32
  }
  func.func @transform_5(%arg0: i32) -> (i32, i32) {
    %c0_i32 = arith.constant 0 : i32
    %c0_i32_0 = arith.constant 0 : i32
    %c0_i32_1 = arith.constant 0 : i32
    return %c0_i32, %c0_i32_0 : i32, i32
  }
  func.func @transform_6(%arg0: i32) -> (i32, i32) {
    %c0_i32 = arith.constant 0 : i32
    %c0_i32_0 = arith.constant 0 : i32
    %c0_i32_1 = arith.constant 0 : i32
    return %c0_i32, %c0_i32_0 : i32, i32
  }
  func.func @transform_7(%arg0: i32) -> (i32, i32) {
    %c0_i32 = arith.constant 0 : i32
    %c0_i32_0 = arith.constant 0 : i32
    %c0_i32_1 = arith.constant 0 : i32
    return %c0_i32, %c0_i32_0 : i32, i32
  }
  func.func @transform_8(%arg0: i32) -> (i32, i32) {
    %c0_i32 = arith.constant 0 : i32
    %c0_i32_0 = arith.constant 0 : i32
    %c0_i32_1 = arith.constant 0 : i32
    return %c0_i32, %c0_i32_0 : i32, i32
  }
  func.func @transform_9(%arg0: i32) -> (i32, i32) {
    %c0_i32 = arith.constant 0 : i32
    %c0_i32_0 = arith.constant 0 : i32
    %c0_i32_1 = arith.constant 0 : i32
    return %c0_i32, %c0_i32_0 : i32, i32
  }
  func.func @transform_10(%arg0: i32) -> (i32, i32) {
    %c0_i32 = arith.constant 0 : i32
    %c0_i32_0 = arith.constant 0 : i32
    %c0_i32_1 = arith.constant 0 : i32
    return %c0_i32, %c0_i32_0 : i32, i32
  }
  func.func @transform_11(%arg0: i32) -> (i32, i32) {
    %c0_i32 = arith.constant 0 : i32
    %c0_i32_0 = arith.constant 0 : i32
    %c0_i32_1 = arith.constant 0 : i32
    return %c0_i32, %c0_i32_0 : i32, i32
  }
  func.func @transform_12(%arg0: i32) -> (i32, i32) {
    %c0_i32 = arith.constant 0 : i32
    %c0_i32_0 = arith.constant 0 : i32
    %c0_i32_1 = arith.constant 0 : i32
    return %c0_i32, %c0_i32_0 : i32, i32
  }
  func.func @transform_13(%arg0: i32) -> (i32, i32) {
    %c0_i32 = arith.constant 0 : i32
    %c0_i32_0 = arith.constant 0 : i32
    %c0_i32_1 = arith.constant 0 : i32
    return %c0_i32, %c0_i32_0 : i32, i32
  }
  func.func @transform_14(%arg0: i32) -> (i32, i32) {
    %c0_i32 = arith.constant 0 : i32
    %c0_i32_0 = arith.constant 0 : i32
    %c0_i32_1 = arith.constant 0 : i32
    return %c0_i32, %c0_i32_0 : i32, i32
  }
  func.func @transform_15(%arg0: i32) -> (i32, i32) {
    %c0_i32 = arith.constant 0 : i32
    %c0_i32_0 = arith.constant 0 : i32
    %c0_i32_1 = arith.constant 0 : i32
    return %c0_i32, %c0_i32_0 : i32, i32
  }
  func.func @transform_16(%arg0: i32) -> (i32, i32) {
    %c0_i32 = arith.constant 0 : i32
    %c0_i32_0 = arith.constant 0 : i32
    %c0_i32_1 = arith.constant 0 : i32
    return %c0_i32, %c0_i32_0 : i32, i32
  }
  func.func @transform_17(%arg0: i32) -> (i32, i32) {
    %c0_i32 = arith.constant 0 : i32
    %c0_i32_0 = arith.constant 0 : i32
    %c0_i32_1 = arith.constant 0 : i32
    return %c0_i32, %c0_i32_0 : i32, i32
  }
  func.func @transform_18(%arg0: i32) -> (i32, i32) {
    %c0_i32 = arith.constant 0 : i32
    %c0_i32_0 = arith.constant 0 : i32
    return %arg0, %c0_i32 : i32, i32
  }
}

module attributes {stable_mosaic.version = 11 : i64} {
  func.func @_logical_reasoning_kernel(%arg0: i32, %arg1: memref<8x128xf32, #tpu.memory_space<vmem>>, %arg2: memref<128x640xbf16, #tpu.memory_space<vmem>>, %arg3: memref<1x640xf32, #tpu.memory_space<vmem>>, %arg4: memref<128x512xbf16, #tpu.memory_space<vmem>>, %arg5: memref<512x128xbf16, #tpu.memory_space<vmem>>, %arg6: memref<1x512xf32, #tpu.memory_space<vmem>>, %arg7: memref<128x128xbf16, #tpu.memory_space<vmem>>, %arg8: memref<1x128xf32, #tpu.memory_space<vmem>>, %arg9: memref<128x128xbf16, #tpu.memory_space<vmem>>, %arg10: memref<1x128xf32, #tpu.memory_space<vmem>>, %arg11: memref<384x256xbf16, #tpu.memory_space<vmem>>, %arg12: memref<1x256xf32, #tpu.memory_space<vmem>>, %arg13: memref<1x128xf32, #tpu.memory_space<vmem>>, %arg14: memref<1x128xf32, #tpu.memory_space<vmem>>, %arg15: memref<128x256xbf16, #tpu.memory_space<vmem>>, %arg16: memref<1x256xf32, #tpu.memory_space<vmem>>, %arg17: memref<128x128xbf16, #tpu.memory_space<vmem>>, %arg18: memref<1x128xf32, #tpu.memory_space<vmem>>, %arg19: memref<8x128xf32, #tpu.memory_space<vmem>>) attributes {dimension_semantics = [#tpu.dimension_semantics<parallel>], iteration_bounds = array<i64: 1>, scalar_prefetch = 0 : i64, scratch_operands = 0 : i64, tpu.core_type = #tpu.core_type<tc>, window_params = [{transform_indices = @transform_0, window_bounds = array<i64: 8, 128>}, {pipeline_mode = #tpu.pipeline_mode<synchronous>, transform_indices = @transform_1, window_bounds = array<i64: 128, 640>}, {pipeline_mode = #tpu.pipeline_mode<synchronous>, transform_indices = @transform_2, window_bounds = array<i64: 1, 640>}, {pipeline_mode = #tpu.pipeline_mode<synchronous>, transform_indices = @transform_3, window_bounds = array<i64: 128, 512>}, {pipeline_mode = #tpu.pipeline_mode<synchronous>, transform_indices = @transform_4, window_bounds = array<i64: 512, 128>}, {pipeline_mode = #tpu.pipeline_mode<synchronous>, transform_indices = @transform_5, window_bounds = array<i64: 1, 512>}, {pipeline_mode = #tpu.pipeline_mode<synchronous>, transform_indices = @transform_6, window_bounds = array<i64: 128, 128>}, {pipeline_mode = #tpu.pipeline_mode<synchronous>, transform_indices = @transform_7, window_bounds = array<i64: 1, 128>}, {pipeline_mode = #tpu.pipeline_mode<synchronous>, transform_indices = @transform_8, window_bounds = array<i64: 128, 128>}, {pipeline_mode = #tpu.pipeline_mode<synchronous>, transform_indices = @transform_9, window_bounds = array<i64: 1, 128>}, {pipeline_mode = #tpu.pipeline_mode<synchronous>, transform_indices = @transform_10, window_bounds = array<i64: 384, 256>}, {pipeline_mode = #tpu.pipeline_mode<synchronous>, transform_indices = @transform_11, window_bounds = array<i64: 1, 256>}, {pipeline_mode = #tpu.pipeline_mode<synchronous>, transform_indices = @transform_12, window_bounds = array<i64: 1, 128>}, {pipeline_mode = #tpu.pipeline_mode<synchronous>, transform_indices = @transform_13, window_bounds = array<i64: 1, 128>}, {pipeline_mode = #tpu.pipeline_mode<synchronous>, transform_indices = @transform_14, window_bounds = array<i64: 128, 256>}, {pipeline_mode = #tpu.pipeline_mode<synchronous>, transform_indices = @transform_15, window_bounds = array<i64: 1, 256>}, {pipeline_mode = #tpu.pipeline_mode<synchronous>, transform_indices = @transform_16, window_bounds = array<i64: 128, 128>}, {pipeline_mode = #tpu.pipeline_mode<synchronous>, transform_indices = @transform_17, window_bounds = array<i64: 1, 128>}, {transform_indices = @transform_18, window_bounds = array<i64: 8, 128>}]} {
    %c0 = arith.constant 0 : index
    %c0_0 = arith.constant 0 : index
    %0 = vector.load %arg1[%c0, %c0_0] : memref<8x128xf32, #tpu.memory_space<vmem>>, vector<8x128xf32>
    %c0_1 = arith.constant 0 : index
    %c0_2 = arith.constant 0 : index
    %1 = vector.load %arg2[%c0_1, %c0_2] : memref<128x640xbf16, #tpu.memory_space<vmem>>, vector<128x640xbf16>
    %2 = arith.truncf %0 : vector<8x128xf32> to vector<8x128xbf16>
    %cst = arith.constant dense<0.000000e+00> : vector<8x640xf32>
    %3 = tpu.matmul %2, %1, %cst {dimension_numbers = #tpu.dot_dimension_numbers<[1], [0], [0], [1], [0, 0, 1, 1], [], []>} : vector<8x128xbf16>, vector<128x640xbf16>, vector<8x640xf32> -> vector<8x640xf32>
    %c0_3 = arith.constant 0 : index
    %c0_4 = arith.constant 0 : index
    %4 = vector.load %arg3[%c0_3, %c0_4] : memref<1x640xf32, #tpu.memory_space<vmem>>, vector<1x640xf32>
    %5 = vector.broadcast %4 : vector<1x640xf32> to vector<8x640xf32>
    %6 = arith.addf %3, %5 : vector<8x640xf32>
    %7 = vector.extract_strided_slice %6 {offsets = [0, 0], sizes = [8, 128], strides = [1, 1]} : vector<8x640xf32> to vector<8x128xf32>
    %8 = arith.negf %7 : vector<8x128xf32>
    %9 = math.exp %8 : vector<8x128xf32>
    %cst_5 = arith.constant 1.000000e+00 : f32
    %10 = vector.broadcast %cst_5 : f32 to vector<8x128xf32>
    %11 = arith.addf %10, %9 : vector<8x128xf32>
    %12 = arith.divf %10, %11 : vector<8x128xf32>
    %13 = vector.extract_strided_slice %6 {offsets = [0, 128], sizes = [8, 128], strides = [1, 1]} : vector<8x640xf32> to vector<8x128xf32>
    %14 = arith.negf %13 : vector<8x128xf32>
    %15 = math.exp %14 : vector<8x128xf32>
    %cst_6 = arith.constant 1.000000e+00 : f32
    %16 = vector.broadcast %cst_6 : f32 to vector<8x128xf32>
    %17 = arith.addf %16, %15 : vector<8x128xf32>
    %18 = arith.divf %16, %17 : vector<8x128xf32>
    %19 = vector.extract_strided_slice %6 {offsets = [0, 256], sizes = [8, 128], strides = [1, 1]} : vector<8x640xf32> to vector<8x128xf32>
    %20 = math.tanh %19 : vector<8x128xf32>
    %21 = arith.mulf %12, %20 : vector<8x128xf32>
    %22 = math.tanh %21 : vector<8x128xf32>
    %23 = arith.mulf %18, %22 : vector<8x128xf32>
    %24 = vector.extract_strided_slice %6 {offsets = [0, 384], sizes = [8, 128], strides = [1, 1]} : vector<8x640xf32> to vector<8x128xf32>
    %25 = vector.extract_strided_slice %6 {offsets = [0, 512], sizes = [8, 128], strides = [1, 1]} : vector<8x640xf32> to vector<8x128xf32>
    %c0_7 = arith.constant 0 : index
    %c0_8 = arith.constant 0 : index
    %26 = vector.load %arg4[%c0_7, %c0_8] : memref<128x512xbf16, #tpu.memory_space<vmem>>, vector<128x512xbf16>
    %27 = arith.truncf %24 : vector<8x128xf32> to vector<8x128xbf16>
    %cst_9 = arith.constant dense<0.000000e+00> : vector<8x512xf32>
    %28 = tpu.matmul %27, %26, %cst_9 {dimension_numbers = #tpu.dot_dimension_numbers<[1], [0], [0], [1], [0, 0, 1, 1], [], []>} : vector<8x128xbf16>, vector<128x512xbf16>, vector<8x512xf32> -> vector<8x512xf32>
    %c0_10 = arith.constant 0 : index
    %c0_11 = arith.constant 0 : index
    %29 = vector.load %arg6[%c0_10, %c0_11] : memref<1x512xf32, #tpu.memory_space<vmem>>, vector<1x512xf32>
    %30 = vector.broadcast %29 : vector<1x512xf32> to vector<8x512xf32>
    %31 = arith.addf %28, %30 : vector<8x512xf32>
    %32 = vector.extract_strided_slice %31 {offsets = [0, 0], sizes = [8, 128], strides = [1, 1]} : vector<8x512xf32> to vector<8x128xf32>
    %cst_12 = arith.constant dense<0xFF800000> : vector<8xf32>
    %33 = vector.multi_reduction <maximumf>, %32, %cst_12 [1] : vector<8x128xf32> to vector<8xf32>
    %34 = vector.shape_cast %33 : vector<8xf32> to vector<8x1xf32>
    %35 = vector.broadcast %34 : vector<8x1xf32> to vector<8x128xf32>
    %36 = arith.subf %32, %35 : vector<8x128xf32>
    %37 = math.exp %36 : vector<8x128xf32>
    %cst_13 = arith.constant dense<0.000000e+00> : vector<8xf32>
    %38 = vector.multi_reduction <add>, %37, %cst_13 [1] : vector<8x128xf32> to vector<8xf32>
    %39 = vector.shape_cast %38 : vector<8xf32> to vector<8x1xf32>
    %40 = tpu.reciprocal %39 {approx = true} : vector<8x1xf32> -> vector<8x1xf32>
    %41 = vector.broadcast %40 : vector<8x1xf32> to vector<8x128xf32>
    %42 = arith.mulf %37, %41 : vector<8x128xf32>
    %43 = vector.extract_strided_slice %31 {offsets = [0, 128], sizes = [8, 128], strides = [1, 1]} : vector<8x512xf32> to vector<8x128xf32>
    %cst_14 = arith.constant dense<0xFF800000> : vector<8xf32>
    %44 = vector.multi_reduction <maximumf>, %43, %cst_14 [1] : vector<8x128xf32> to vector<8xf32>
    %45 = vector.shape_cast %44 : vector<8xf32> to vector<8x1xf32>
    %46 = vector.broadcast %45 : vector<8x1xf32> to vector<8x128xf32>
    %47 = arith.subf %43, %46 : vector<8x128xf32>
    %48 = math.exp %47 : vector<8x128xf32>
    %cst_15 = arith.constant dense<0.000000e+00> : vector<8xf32>
    %49 = vector.multi_reduction <add>, %48, %cst_15 [1] : vector<8x128xf32> to vector<8xf32>
    %50 = vector.shape_cast %49 : vector<8xf32> to vector<8x1xf32>
    %51 = tpu.reciprocal %50 {approx = true} : vector<8x1xf32> -> vector<8x1xf32>
    %52 = vector.broadcast %51 : vector<8x1xf32> to vector<8x128xf32>
    %53 = arith.mulf %48, %52 : vector<8x128xf32>
    %54 = vector.extract_strided_slice %31 {offsets = [0, 256], sizes = [8, 128], strides = [1, 1]} : vector<8x512xf32> to vector<8x128xf32>
    %cst_16 = arith.constant dense<0xFF800000> : vector<8xf32>
    %55 = vector.multi_reduction <maximumf>, %54, %cst_16 [1] : vector<8x128xf32> to vector<8xf32>
    %56 = vector.shape_cast %55 : vector<8xf32> to vector<8x1xf32>
    %57 = vector.broadcast %56 : vector<8x1xf32> to vector<8x128xf32>
    %58 = arith.subf %54, %57 : vector<8x128xf32>
    %59 = math.exp %58 : vector<8x128xf32>
    %cst_17 = arith.constant dense<0.000000e+00> : vector<8xf32>
    %60 = vector.multi_reduction <add>, %59, %cst_17 [1] : vector<8x128xf32> to vector<8xf32>
    %61 = vector.shape_cast %60 : vector<8xf32> to vector<8x1xf32>
    %62 = tpu.reciprocal %61 {approx = true} : vector<8x1xf32> -> vector<8x1xf32>
    %63 = vector.broadcast %62 : vector<8x1xf32> to vector<8x128xf32>
    %64 = arith.mulf %59, %63 : vector<8x128xf32>
    %65 = vector.extract_strided_slice %31 {offsets = [0, 384], sizes = [8, 128], strides = [1, 1]} : vector<8x512xf32> to vector<8x128xf32>
    %cst_18 = arith.constant dense<0xFF800000> : vector<8xf32>
    %66 = vector.multi_reduction <maximumf>, %65, %cst_18 [1] : vector<8x128xf32> to vector<8xf32>
    %67 = vector.shape_cast %66 : vector<8xf32> to vector<8x1xf32>
    %68 = vector.broadcast %67 : vector<8x1xf32> to vector<8x128xf32>
    %69 = arith.subf %65, %68 : vector<8x128xf32>
    %70 = math.exp %69 : vector<8x128xf32>
    %cst_19 = arith.constant dense<0.000000e+00> : vector<8xf32>
    %71 = vector.multi_reduction <add>, %70, %cst_19 [1] : vector<8x128xf32> to vector<8xf32>
    %72 = vector.shape_cast %71 : vector<8xf32> to vector<8x1xf32>
    %73 = tpu.reciprocal %72 {approx = true} : vector<8x1xf32> -> vector<8x1xf32>
    %74 = vector.broadcast %73 : vector<8x1xf32> to vector<8x128xf32>
    %75 = arith.mulf %70, %74 : vector<8x128xf32>
    %76 = tpu.concatenate %42, %53, %64, %75 in 1 : vector<8x128xf32>, vector<8x128xf32>, vector<8x128xf32>, vector<8x128xf32> -> vector<8x512xf32>
    %c0_20 = arith.constant 0 : index
    %c0_21 = arith.constant 0 : index
    %77 = vector.load %arg5[%c0_20, %c0_21] : memref<512x128xbf16, #tpu.memory_space<vmem>>, vector<512x128xbf16>
    %78 = arith.truncf %76 : vector<8x512xf32> to vector<8x512xbf16>
    %cst_22 = arith.constant dense<0.000000e+00> : vector<8x128xf32>
    %79 = tpu.matmul %78, %77, %cst_22 {dimension_numbers = #tpu.dot_dimension_numbers<[1], [0], [0], [1], [0, 0, 1, 1], [], []>} : vector<8x512xbf16>, vector<512x128xbf16>, vector<8x128xf32> -> vector<8x128xf32>
    %c0_23 = arith.constant 0 : index
    %c0_24 = arith.constant 0 : index
    %80 = vector.load %arg7[%c0_23, %c0_24] : memref<128x128xbf16, #tpu.memory_space<vmem>>, vector<128x128xbf16>
    %81 = arith.truncf %79 : vector<8x128xf32> to vector<8x128xbf16>
    %cst_25 = arith.constant dense<0.000000e+00> : vector<8x128xf32>
    %82 = tpu.matmul %81, %80, %cst_25 {dimension_numbers = #tpu.dot_dimension_numbers<[1], [0], [0], [1], [0, 0, 1, 1], [], []>} : vector<8x128xbf16>, vector<128x128xbf16>, vector<8x128xf32> -> vector<8x128xf32>
    %c0_26 = arith.constant 0 : index
    %c0_27 = arith.constant 0 : index
    %83 = vector.load %arg8[%c0_26, %c0_27] : memref<1x128xf32, #tpu.memory_space<vmem>>, vector<1x128xf32>
    %84 = vector.broadcast %83 : vector<1x128xf32> to vector<8x128xf32>
    %85 = arith.addf %82, %84 : vector<8x128xf32>
    %c0_28 = arith.constant 0 : index
    %c0_29 = arith.constant 0 : index
    %86 = vector.load %arg9[%c0_28, %c0_29] : memref<128x128xbf16, #tpu.memory_space<vmem>>, vector<128x128xbf16>
    %87 = arith.truncf %23 : vector<8x128xf32> to vector<8x128xbf16>
    %cst_30 = arith.constant dense<0.000000e+00> : vector<8x128xf32>
    %88 = tpu.matmul %87, %86, %cst_30 {dimension_numbers = #tpu.dot_dimension_numbers<[1], [0], [0], [1], [0, 0, 1, 1], [], []>} : vector<8x128xbf16>, vector<128x128xbf16>, vector<8x128xf32> -> vector<8x128xf32>
    %c0_31 = arith.constant 0 : index
    %c0_32 = arith.constant 0 : index
    %89 = vector.load %arg10[%c0_31, %c0_32] : memref<1x128xf32, #tpu.memory_space<vmem>>, vector<1x128xf32>
    %90 = vector.broadcast %89 : vector<1x128xf32> to vector<8x128xf32>
    %91 = arith.addf %88, %90 : vector<8x128xf32>
    %c0_33 = arith.constant 0 : index
    %c0_34 = arith.constant 0 : index
    %92 = vector.load %arg11[%c0_33, %c0_34] : memref<384x256xbf16, #tpu.memory_space<vmem>>, vector<128x256xbf16>
    %93 = arith.truncf %25 : vector<8x128xf32> to vector<8x128xbf16>
    %cst_35 = arith.constant dense<0.000000e+00> : vector<8x256xf32>
    %94 = tpu.matmul %93, %92, %cst_35 {dimension_numbers = #tpu.dot_dimension_numbers<[1], [0], [0], [1], [0, 0, 1, 1], [], []>} : vector<8x128xbf16>, vector<128x256xbf16>, vector<8x256xf32> -> vector<8x256xf32>
    %c128 = arith.constant 128 : index
    %c0_36 = arith.constant 0 : index
    %95 = vector.load %arg11[%c128, %c0_36] : memref<384x256xbf16, #tpu.memory_space<vmem>>, vector<128x256xbf16>
    %96 = arith.truncf %91 : vector<8x128xf32> to vector<8x128xbf16>
    %cst_37 = arith.constant dense<0.000000e+00> : vector<8x256xf32>
    %97 = tpu.matmul %96, %95, %cst_37 {dimension_numbers = #tpu.dot_dimension_numbers<[1], [0], [0], [1], [0, 0, 1, 1], [], []>} : vector<8x128xbf16>, vector<128x256xbf16>, vector<8x256xf32> -> vector<8x256xf32>
    %98 = arith.addf %94, %97 : vector<8x256xf32>
    %c256 = arith.constant 256 : index
    %c0_38 = arith.constant 0 : index
    %99 = vector.load %arg11[%c256, %c0_38] : memref<384x256xbf16, #tpu.memory_space<vmem>>, vector<128x256xbf16>
    %100 = arith.truncf %85 : vector<8x128xf32> to vector<8x128xbf16>
    %cst_39 = arith.constant dense<0.000000e+00> : vector<8x256xf32>
    %101 = tpu.matmul %100, %99, %cst_39 {dimension_numbers = #tpu.dot_dimension_numbers<[1], [0], [0], [1], [0, 0, 1, 1], [], []>} : vector<8x128xbf16>, vector<128x256xbf16>, vector<8x256xf32> -> vector<8x256xf32>
    %102 = arith.addf %98, %101 : vector<8x256xf32>
    %c0_40 = arith.constant 0 : index
    %c0_41 = arith.constant 0 : index
    %103 = vector.load %arg12[%c0_40, %c0_41] : memref<1x256xf32, #tpu.memory_space<vmem>>, vector<1x256xf32>
    %104 = vector.broadcast %103 : vector<1x256xf32> to vector<8x256xf32>
    %105 = arith.addf %102, %104 : vector<8x256xf32>
    %106 = vector.extract_strided_slice %105 {offsets = [0, 0], sizes = [8, 128], strides = [1, 1]} : vector<8x256xf32> to vector<8x128xf32>
    %107 = vector.extract_strided_slice %105 {offsets = [0, 128], sizes = [8, 3], strides = [1, 1]} : vector<8x256xf32> to vector<8x3xf32>
    %cst_42 = arith.constant dense<0xFF800000> : vector<8xf32>
    %108 = vector.multi_reduction <maximumf>, %107, %cst_42 [1] : vector<8x3xf32> to vector<8xf32>
    %109 = vector.shape_cast %108 : vector<8xf32> to vector<8x1xf32>
    %110 = vector.broadcast %109 : vector<8x1xf32> to vector<8x3xf32>
    %111 = arith.subf %107, %110 : vector<8x3xf32>
    %112 = math.exp %111 : vector<8x3xf32>
    %cst_43 = arith.constant dense<0.000000e+00> : vector<8xf32>
    %113 = vector.multi_reduction <add>, %112, %cst_43 [1] : vector<8x3xf32> to vector<8xf32>
    %114 = vector.shape_cast %113 : vector<8xf32> to vector<8x1xf32>
    %115 = vector.broadcast %114 : vector<8x1xf32> to vector<8x3xf32>
    %116 = arith.divf %112, %115 : vector<8x3xf32>
    %117 = tpu.iota {dimensions = array<i32: 1>} : vector<8x128xi32>
    %c32_i32 = arith.constant 32 : i32
    %118 = vector.broadcast %c32_i32 : i32 to vector<8x128xi32>
    %119 = arith.cmpi slt, %117, %118 : vector<8x128xi32>
    %cst_44 = arith.constant 0.000000e+00 : f32
    %120 = vector.broadcast %cst_44 : f32 to vector<8x128xf32>
    %121 = arith.select %119, %106, %120 : vector<8x128xi1>, vector<8x128xf32>
    %cst_45 = arith.constant dense<0.000000e+00> : vector<8xf32>
    %122 = vector.multi_reduction <add>, %121, %cst_45 [1] : vector<8x128xf32> to vector<8xf32>
    %123 = vector.shape_cast %122 : vector<8xf32> to vector<8x1xf32>
    %cst_46 = arith.constant 3.125000e-02 : f32
    %124 = vector.broadcast %cst_46 : f32 to vector<8x1xf32>
    %125 = arith.mulf %123, %124 : vector<8x1xf32>
    %126 = vector.broadcast %125 : vector<8x1xf32> to vector<8x128xf32>
    %127 = arith.subf %121, %126 : vector<8x128xf32>
    %cst_47 = arith.constant 0.000000e+00 : f32
    %128 = vector.broadcast %cst_47 : f32 to vector<8x128xf32>
    %129 = arith.select %119, %127, %128 : vector<8x128xi1>, vector<8x128xf32>
    %130 = arith.mulf %129, %129 : vector<8x128xf32>
    %cst_48 = arith.constant dense<0.000000e+00> : vector<8xf32>
    %131 = vector.multi_reduction <add>, %130, %cst_48 [1] : vector<8x128xf32> to vector<8xf32>
    %132 = vector.shape_cast %131 : vector<8xf32> to vector<8x1xf32>
    %cst_49 = arith.constant 3.125000e-02 : f32
    %133 = vector.broadcast %cst_49 : f32 to vector<8x1xf32>
    %134 = arith.mulf %132, %133 : vector<8x1xf32>
    %cst_50 = arith.constant 9.99999974E-6 : f32
    %135 = vector.broadcast %cst_50 : f32 to vector<8x1xf32>
    %136 = arith.addf %134, %135 : vector<8x1xf32>
    %137 = math.rsqrt %136 : vector<8x1xf32>
    %138 = vector.broadcast %137 : vector<8x1xf32> to vector<8x128xf32>
    %139 = arith.mulf %129, %138 : vector<8x128xf32>
    %c0_51 = arith.constant 0 : index
    %c0_52 = arith.constant 0 : index
    %140 = vector.load %arg13[%c0_51, %c0_52] : memref<1x128xf32, #tpu.memory_space<vmem>>, vector<1x128xf32>
    %141 = vector.broadcast %140 : vector<1x128xf32> to vector<8x128xf32>
    %142 = arith.mulf %139, %141 : vector<8x128xf32>
    %c0_53 = arith.constant 0 : index
    %c0_54 = arith.constant 0 : index
    %143 = vector.load %arg14[%c0_53, %c0_54] : memref<1x128xf32, #tpu.memory_space<vmem>>, vector<1x128xf32>
    %144 = vector.broadcast %143 : vector<1x128xf32> to vector<8x128xf32>
    %145 = arith.addf %142, %144 : vector<8x128xf32>
    %c0_55 = arith.constant 0 : index
    %c0_56 = arith.constant 0 : index
    %146 = vector.load %arg15[%c0_55, %c0_56] : memref<128x256xbf16, #tpu.memory_space<vmem>>, vector<128x256xbf16>
    %147 = arith.truncf %145 : vector<8x128xf32> to vector<8x128xbf16>
    %cst_57 = arith.constant dense<0.000000e+00> : vector<8x256xf32>
    %148 = tpu.matmul %147, %146, %cst_57 {dimension_numbers = #tpu.dot_dimension_numbers<[1], [0], [0], [1], [0, 0, 1, 1], [], []>} : vector<8x128xbf16>, vector<128x256xbf16>, vector<8x256xf32> -> vector<8x256xf32>
    %c0_58 = arith.constant 0 : index
    %c0_59 = arith.constant 0 : index
    %149 = vector.load %arg16[%c0_58, %c0_59] : memref<1x256xf32, #tpu.memory_space<vmem>>, vector<1x256xf32>
    %150 = vector.broadcast %149 : vector<1x256xf32> to vector<8x256xf32>
    %151 = arith.addf %148, %150 : vector<8x256xf32>
    %152 = vector.extract_strided_slice %151 {offsets = [0, 0], sizes = [8, 128], strides = [1, 1]} : vector<8x256xf32> to vector<8x128xf32>
    %153 = vector.extract_strided_slice %151 {offsets = [0, 128], sizes = [8, 128], strides = [1, 1]} : vector<8x256xf32> to vector<8x128xf32>
    %154 = arith.negf %152 : vector<8x128xf32>
    %155 = math.exp %154 : vector<8x128xf32>
    %cst_60 = arith.constant 1.000000e+00 : f32
    %156 = vector.broadcast %cst_60 : f32 to vector<8x128xf32>
    %157 = arith.addf %156, %155 : vector<8x128xf32>
    %158 = arith.divf %156, %157 : vector<8x128xf32>
    %159 = arith.mulf %152, %158 : vector<8x128xf32>
    %160 = arith.mulf %159, %153 : vector<8x128xf32>
    %c0_61 = arith.constant 0 : index
    %c0_62 = arith.constant 0 : index
    %161 = vector.load %arg17[%c0_61, %c0_62] : memref<128x128xbf16, #tpu.memory_space<vmem>>, vector<128x128xbf16>
    %162 = arith.truncf %160 : vector<8x128xf32> to vector<8x128xbf16>
    %cst_63 = arith.constant dense<0.000000e+00> : vector<8x128xf32>
    %163 = tpu.matmul %162, %161, %cst_63 {dimension_numbers = #tpu.dot_dimension_numbers<[1], [0], [0], [1], [0, 0, 1, 1], [], []>} : vector<8x128xbf16>, vector<128x128xbf16>, vector<8x128xf32> -> vector<8x128xf32>
    %c0_64 = arith.constant 0 : index
    %c0_65 = arith.constant 0 : index
    %164 = vector.load %arg18[%c0_64, %c0_65] : memref<1x128xf32, #tpu.memory_space<vmem>>, vector<1x128xf32>
    %165 = vector.broadcast %164 : vector<1x128xf32> to vector<8x128xf32>
    %166 = arith.addf %163, %165 : vector<8x128xf32>
    %167 = vector.extract_strided_slice %116 {offsets = [0, 0], sizes = [8, 1], strides = [1, 1]} : vector<8x3xf32> to vector<8x1xf32>
    %168 = vector.broadcast %167 : vector<8x1xf32> to vector<8x128xf32>
    %169 = arith.mulf %168, %25 : vector<8x128xf32>
    %170 = vector.extract_strided_slice %116 {offsets = [0, 1], sizes = [8, 1], strides = [1, 1]} : vector<8x3xf32> to vector<8x1xf32>
    %171 = vector.broadcast %170 : vector<8x1xf32> to vector<8x128xf32>
    %172 = arith.mulf %171, %91 : vector<8x128xf32>
    %173 = arith.addf %169, %172 : vector<8x128xf32>
    %174 = vector.extract_strided_slice %116 {offsets = [0, 2], sizes = [8, 1], strides = [1, 1]} : vector<8x3xf32> to vector<8x1xf32>
    %175 = vector.broadcast %174 : vector<8x1xf32> to vector<8x128xf32>
    %176 = arith.mulf %175, %166 : vector<8x128xf32>
    %177 = arith.addf %173, %176 : vector<8x128xf32>
    %c0_66 = arith.constant 0 : index
    %c0_67 = arith.constant 0 : index
    %178 = vector.load %arg19[%c0_66, %c0_67] : memref<8x128xf32, #tpu.memory_space<vmem>>, vector<8x128xf32>
    tpu.vector_store %arg19[%c0_66, %c0_67], %177 {strides = array<i32>} : memref<8x128xf32, #tpu.memory_space<vmem>>, vector<8x128xf32>,
    return
  }
  func.func @transform_0(%arg0: i32) -> (i32, i32) {
    %c0_i32 = arith.constant 0 : i32
    %c0_i32_0 = arith.constant 0 : i32
    return %arg0, %c0_i32 : i32, i32
  }
  func.func @transform_1(%arg0: i32) -> (i32, i32) {
    %c0_i32 = arith.constant 0 : i32
    %c0_i32_0 = arith.constant 0 : i32
    %c0_i32_1 = arith.constant 0 : i32
    return %c0_i32, %c0_i32_0 : i32, i32
  }
  func.func @transform_2(%arg0: i32) -> (i32, i32) {
    %c0_i32 = arith.constant 0 : i32
    %c0_i32_0 = arith.constant 0 : i32
    %c0_i32_1 = arith.constant 0 : i32
    return %c0_i32, %c0_i32_0 : i32, i32
  }
  func.func @transform_3(%arg0: i32) -> (i32, i32) {
    %c0_i32 = arith.constant 0 : i32
    %c0_i32_0 = arith.constant 0 : i32
    %c0_i32_1 = arith.constant 0 : i32
    return %c0_i32, %c0_i32_0 : i32, i32
  }
  func.func @transform_4(%arg0: i32) -> (i32, i32) {
    %c0_i32 = arith.constant 0 : i32
    %c0_i32_0 = arith.constant 0 : i32
    %c0_i32_1 = arith.constant 0 : i32
    return %c0_i32, %c0_i32_0 : i32, i32
  }
  func.func @transform_5(%arg0: i32) -> (i32, i32) {
    %c0_i32 = arith.constant 0 : i32
    %c0_i32_0 = arith.constant 0 : i32
    %c0_i32_1 = arith.constant 0 : i32
    return %c0_i32, %c0_i32_0 : i32, i32
  }
  func.func @transform_6(%arg0: i32) -> (i32, i32) {
    %c0_i32 = arith.constant 0 : i32
    %c0_i32_0 = arith.constant 0 : i32
    %c0_i32_1 = arith.constant 0 : i32
    return %c0_i32, %c0_i32_0 : i32, i32
  }
  func.func @transform_7(%arg0: i32) -> (i32, i32) {
    %c0_i32 = arith.constant 0 : i32
    %c0_i32_0 = arith.constant 0 : i32
    %c0_i32_1 = arith.constant 0 : i32
    return %c0_i32, %c0_i32_0 : i32, i32
  }
  func.func @transform_8(%arg0: i32) -> (i32, i32) {
    %c0_i32 = arith.constant 0 : i32
    %c0_i32_0 = arith.constant 0 : i32
    %c0_i32_1 = arith.constant 0 : i32
    return %c0_i32, %c0_i32_0 : i32, i32
  }
  func.func @transform_9(%arg0: i32) -> (i32, i32) {
    %c0_i32 = arith.constant 0 : i32
    %c0_i32_0 = arith.constant 0 : i32
    %c0_i32_1 = arith.constant 0 : i32
    return %c0_i32, %c0_i32_0 : i32, i32
  }
  func.func @transform_10(%arg0: i32) -> (i32, i32) {
    %c0_i32 = arith.constant 0 : i32
    %c0_i32_0 = arith.constant 0 : i32
    %c0_i32_1 = arith.constant 0 : i32
    return %c0_i32, %c0_i32_0 : i32, i32
  }
  func.func @transform_11(%arg0: i32) -> (i32, i32) {
    %c0_i32 = arith.constant 0 : i32
    %c0_i32_0 = arith.constant 0 : i32
    %c0_i32_1 = arith.constant 0 : i32
    return %c0_i32, %c0_i32_0 : i32, i32
  }
  func.func @transform_12(%arg0: i32) -> (i32, i32) {
    %c0_i32 = arith.constant 0 : i32
    %c0_i32_0 = arith.constant 0 : i32
    %c0_i32_1 = arith.constant 0 : i32
    return %c0_i32, %c0_i32_0 : i32, i32
  }
  func.func @transform_13(%arg0: i32) -> (i32, i32) {
    %c0_i32 = arith.constant 0 : i32
    %c0_i32_0 = arith.constant 0 : i32
    %c0_i32_1 = arith.constant 0 : i32
    return %c0_i32, %c0_i32_0 : i32, i32
  }
  func.func @transform_14(%arg0: i32) -> (i32, i32) {
    %c0_i32 = arith.constant 0 : i32
    %c0_i32_0 = arith.constant 0 : i32
    %c0_i32_1 = arith.constant 0 : i32
    return %c0_i32, %c0_i32_0 : i32, i32
  }
  func.func @transform_15(%arg0: i32) -> (i32, i32) {
    %c0_i32 = arith.constant 0 : i32
    %c0_i32_0 = arith.constant 0 : i32
    %c0_i32_1 = arith.constant 0 : i32
    return %c0_i32, %c0_i32_0 : i32, i32
  }
  func.func @transform_16(%arg0: i32) -> (i32, i32) {
    %c0_i32 = arith.constant 0 : i32
    %c0_i32_0 = arith.constant 0 : i32
    %c0_i32_1 = arith.constant 0 : i32
    return %c0_i32, %c0_i32_0 : i32, i32
  }
  func.func @transform_17(%arg0: i32) -> (i32, i32) {
    %c0_i32 = arith.constant 0 : i32
    %c0_i32_0 = arith.constant 0 : i32
    %c0_i32_1 = arith.constant 0 : i32
    return %c0_i32, %c0_i32_0 : i32, i32
  }
  func.func @transform_18(%arg0: i32) -> (i32, i32) {
    %c0_i32 = arith.constant 0 : i32
    %c0_i32_0 = arith.constant 0 : i32
    return %arg0, %c0_i32 : i32, i32
  }
}

</mosaic_0001>

<llo_original>
// kernel: tpu_custom_call.1
$region0: #{tpu_custom_call.1}
  #allocation0 [shape = 'u32[]', space=smem, size = 0x4, offset = 0x4, fixed_abs, tag = 'smem constant byte address 0x4 - core index']
  #allocation1 [shape = 'u32[72,128]{1,0:T(1,128)}', space=vmem, size = 0x9000, scoped, tag = 'internal scratch']
  %s0 = inlined_call_operand.hbm [shape: f32[8,128], index: 0, kind: input, shape index: {}]
  %s1 = inlined_call_operand.hbm [shape: bf16[128,640], index: 1, kind: input, shape index: {}]
  %s2 = inlined_call_operand.hbm [shape: f32[1,640], index: 2, kind: input, shape index: {}]
  %s3 = inlined_call_operand.hbm [shape: bf16[128,512], index: 3, kind: input, shape index: {}]
  %s4 = inlined_call_operand.hbm [shape: bf16[512,128], index: 4, kind: input, shape index: {}]
  %s5 = inlined_call_operand.vmem [shape: f32[1,512], index: 5, kind: input, shape index: {}]
  %s6 = inlined_call_operand.hbm [shape: bf16[128,128], index: 6, kind: input, shape index: {}]
  %s7 = inlined_call_operand.hbm [shape: f32[1,128], index: 7, kind: input, shape index: {}]
  %s8 = inlined_call_operand.hbm [shape: bf16[128,128], index: 8, kind: input, shape index: {}]
  %s9 = inlined_call_operand.hbm [shape: f32[1,128], index: 9, kind: input, shape index: {}]
  %s10 = inlined_call_operand.hbm [shape: bf16[384,256], index: 10, kind: input, shape index: {}]
  %s11 = inlined_call_operand.vmem [shape: f32[1,256], index: 11, kind: input, shape index: {}]
  %s12 = inlined_call_operand.vmem [shape: f32[1,128], index: 12, kind: input, shape index: {}]
  %s13 = inlined_call_operand.vmem [shape: f32[1,128], index: 13, kind: input, shape index: {}]
  %s14 = inlined_call_operand.hbm [shape: bf16[128,256], index: 14, kind: input, shape index: {}]
  %s15 = inlined_call_operand.vmem [shape: f32[1,256], index: 15, kind: input, shape index: {}]
  %s16 = inlined_call_operand.hbm [shape: bf16[128,128], index: 16, kind: input, shape index: {}]
  %s17 = inlined_call_operand.vmem [shape: f32[1,128], index: 17, kind: input, shape index: {}]
  %s18 = inlined_call_operand.hbm [shape: f32[8,128], index: 18, kind: output, shape index: {}]
  %s19 = sld [smem:[#allocation0]]
  $region130: #{tpu_custom_call.1} parent=0
    _
  %s21 = ssub.s32 1, %s19
  %s22 = scalar_select 0, %s21, %s19
  $region1: #{tpu_custom_call.1} parent=0
    #allocation2 [shape = 'u8[4096]{0}', space=vmem, size = 0x1000, scoped, tag = 'input window, operand 0, single buffered']
    #allocation3 [shape = 's32[1]{0}', space=sflag, size = 0x4, scoped, tag = 'scoped memory for tpu_custom_call.1']
    #allocation4 [shape = 's32[1]{0}', space=sflag, size = 0x4, scoped, tag = 'scoped memory for tpu_custom_call.1']
    #allocation5 [shape = 'u8[163840]{0}', space=vmem, size = 0x28000, scoped, tag = 'input window, operand 1, single buffered']
    #allocation6 [shape = 's32[1]{0}', space=sflag, size = 0x4, scoped, tag = 'scoped memory for tpu_custom_call.1']
    #allocation7 [shape = 'u8[2560]{0}', space=vmem, size = 0xc00, scoped, tag = 'input window, operand 2, single buffered']
    #allocation8 [shape = 'u8[131072]{0}', space=vmem, size = 0x20000, scoped, tag = 'input window, operand 3, single buffered']
    #allocation9 [shape = 's32[1]{0}', space=sflag, size = 0x4, scoped, tag = 'scoped memory for tpu_custom_call.1']
    #allocation10 [shape = 'u8[131072]{0}', space=vmem, size = 0x20000, scoped, tag = 'input window, operand 4, single buffered']
    #allocation11 [shape = 'u8[32768]{0}', space=vmem, size = 0x8000, scoped, tag = 'input window, operand 6, single buffered']
    #allocation12 [shape = 's32[1]{0}', space=sflag, size = 0x4, scoped, tag = 'scoped memory for tpu_custom_call.1']
    #allocation13 [shape = 'u8[512]{0}', space=vmem, size = 0x400, scoped, tag = 'input window, operand 7, single buffered']
    #allocation14 [shape = 'u8[32768]{0}', space=vmem, size = 0x8000, scoped, tag = 'input window, operand 8, single buffered']
    #allocation15 [shape = 's32[1]{0}', space=sflag, size = 0x4, scoped, tag = 'scoped memory for tpu_custom_call.1']
    #allocation16 [shape = 'u8[512]{0}', space=vmem, size = 0x400, scoped, tag = 'input window, operand 9, single buffered']
    #allocation17 [shape = 'u8[196608]{0}', space=vmem, size = 0x30000, scoped, tag = 'input window, operand 10, single buffered']
    #allocation18 [shape = 's32[1]{0}', space=sflag, size = 0x4, scoped, tag = 'scoped memory for tpu_custom_call.1']
    #allocation19 [shape = 'u8[65536]{0}', space=vmem, size = 0x10000, scoped, tag = 'input window, operand 14, single buffered']
    #allocation20 [shape = 'u8[32768]{0}', space=vmem, size = 0x8000, scoped, tag = 'input window, operand 16, single buffered']
    #allocation21 [shape = 's32[1]{0}', space=sflag, size = 0x4, scoped, tag = 'scoped memory for tpu_custom_call.1']
    #allocation22 [shape = 'u8[4096]{0}', space=vmem, size = 0x1000, scoped, tag = 'output window, operand 0, single buffered']
    %23 = vsyncpa [#allocation3], 0
    %24 = vsyncpa [#allocation6], 0
    %25 = vsyncpa [#allocation9], 0
    %26 = vsyncpa [#allocation12], 0
    %27 = vsyncpa [#allocation15], 0
    %28 = vsyncpa [#allocation18], 0
    %29 = vsyncpa [#allocation21], 0
    %30 = vsyncpa [#allocation4], 0
    // Predicated region
    $region2: #{tpu_custom_call.1} parent=1 // pred_check
      _
    $region3: #{tpu_custom_call.1} parent=1 // pred_check_branch
      %32 = sbr.rel (0) target = $region5
    $region4: #{tpu_custom_call.1} parent=1 // pred_region
      %34 = vsyncadd [#allocation3], 0
      %s36 = sshll.u32 %s0, 4
      %s37 = int_to_ptr.hbm [resolvable:$true] %s36
      %s38 = sshll.u32 [#allocation2], 4
      %s39 = int_to_ptr.vmem [resolvable:$true] %s38
      %41 = dma.hbm_to_vmem [thread:$0]  %s37, 128, %s39, [#allocation3]
    $region5: #{tpu_custom_call.1} parent=1 // pred_fallthru
      _
    // Predicated region
    $region6: #{tpu_custom_call.1} parent=1 // pred_check
      _
    $region7: #{tpu_custom_call.1} parent=1 // pred_check_branch
      %43 = sbr.rel (0) target = $region9
    $region8: #{tpu_custom_call.1} parent=1 // pred_region
      %45 = vsyncadd [#allocation6], 0
      %s46 = sshll.u32 %s1, 4
      %s47 = int_to_ptr.hbm [resolvable:$true] %s46
      %s48 = sshll.u32 [#allocation5], 4
      %s49 = int_to_ptr.vmem [resolvable:$true] %s48
      %54 = dma.hbm_to_vmem [thread:$0]  %s47, 5120, %s49, [#allocation6], 320, 320, 20
    $region9: #{tpu_custom_call.1} parent=1 // pred_fallthru
      _
    // Predicated region
    $region10: #{tpu_custom_call.1} parent=1 // pred_check
      _
    $region11: #{tpu_custom_call.1} parent=1 // pred_check_branch
      %56 = sbr.rel (0) target = $region13
    $region12: #{tpu_custom_call.1} parent=1 // pred_region
      %58 = vsyncadd [#allocation6], 0
      %s60 = sshll.u32 %s2, 4
      %s61 = int_to_ptr.hbm [resolvable:$true] %s60
      %s62 = sshll.u32 [#allocation7], 4
      %s63 = int_to_ptr.vmem [resolvable:$true] %s62
      %65 = dma.hbm_to_vmem [thread:$0]  %s61, 80, %s63, [#allocation6]
    $region13: #{tpu_custom_call.1} parent=1 // pred_fallthru
      _
    // Predicated region
    $region14: #{tpu_custom_call.1} parent=1 // pred_check
      _
    $region15: #{tpu_custom_call.1} parent=1 // pred_check_branch
      %67 = sbr.rel (0) target = $region17
    $region16: #{tpu_custom_call.1} parent=1 // pred_region
      %69 = vsyncadd [#allocation9], 0
      %s70 = sshll.u32 %s3, 4
      %s71 = int_to_ptr.hbm [resolvable:$true] %s70
      %s72 = sshll.u32 [#allocation8], 4
      %s73 = int_to_ptr.vmem [resolvable:$true] %s72
      %78 = dma.hbm_to_vmem [thread:$0]  %s71, 4096, %s73, [#allocation9], 256, 256, 16
    $region17: #{tpu_custom_call.1} parent=1 // pred_fallthru
      _
    // Predicated region
    $region18: #{tpu_custom_call.1} parent=1 // pred_check
      _
    $region19: #{tpu_custom_call.1} parent=1 // pred_check_branch
      %80 = sbr.rel (0) target = $region21
    $region20: #{tpu_custom_call.1} parent=1 // pred_region
      %82 = vsyncadd [#allocation9], 0
      %s83 = sshll.u32 %s4, 4
      %s84 = int_to_ptr.hbm [resolvable:$true] %s83
      %s85 = sshll.u32 [#allocation10], 4
      %s86 = int_to_ptr.vmem [resolvable:$true] %s85
      %91 = dma.hbm_to_vmem [thread:$0]  %s84, 4096, %s86, [#allocation9], 64, 64, 4
    $region21: #{tpu_custom_call.1} parent=1 // pred_fallthru
      _
    // Predicated region
    $region22: #{tpu_custom_call.1} parent=1 // pred_check
      _
    $region23: #{tpu_custom_call.1} parent=1 // pred_check_branch
      %93 = sbr.rel (0) target = $region25
    $region24: #{tpu_custom_call.1} parent=1 // pred_region
      _
    $region25: #{tpu_custom_call.1} parent=1 // pred_fallthru
      _
    // Predicated region
    $region26: #{tpu_custom_call.1} parent=1 // pred_check
      _
    $region27: #{tpu_custom_call.1} parent=1 // pred_check_branch
      %95 = sbr.rel (0) target = $region29
    $region28: #{tpu_custom_call.1} parent=1 // pred_region
      %97 = vsyncadd [#allocation12], 0
      %s98 = sshll.u32 %s6, 4
      %s99 = int_to_ptr.hbm [resolvable:$true] %s98
      %s100 = sshll.u32 [#allocation11], 4
      %s101 = int_to_ptr.vmem [resolvable:$true] %s100
      %106 = dma.hbm_to_vmem [thread:$0]  %s99, 1024, %s101, [#allocation12], 64, 64, 4
    $region29: #{tpu_custom_call.1} parent=1 // pred_fallthru
      _
    // Predicated region
    $region30: #{tpu_custom_call.1} parent=1 // pred_check
      _
    $region31: #{tpu_custom_call.1} parent=1 // pred_check_branch
      %108 = sbr.rel (0) target = $region33
    $region32: #{tpu_custom_call.1} parent=1 // pred_region
      %110 = vsyncadd [#allocation12], 0
      %s112 = sshll.u32 %s7, 4
      %s113 = int_to_ptr.hbm [resolvable:$true] %s112
      %s114 = sshll.u32 [#allocation13], 4
      %s115 = int_to_ptr.vmem [resolvable:$true] %s114
      %117 = dma.hbm_to_vmem [thread:$0]  %s113, 16, %s115, [#allocation12]
    $region33: #{tpu_custom_call.1} parent=1 // pred_fallthru
      _
    // Predicated region
    $region34: #{tpu_custom_call.1} parent=1 // pred_check
      _
    $region35: #{tpu_custom_call.1} parent=1 // pred_check_branch
      %119 = sbr.rel (0) target = $region37
    $region36: #{tpu_custom_call.1} parent=1 // pred_region
      %121 = vsyncadd [#allocation15], 0
      %s122 = sshll.u32 %s8, 4
      %s123 = int_to_ptr.hbm [resolvable:$true] %s122
      %s124 = sshll.u32 [#allocation14], 4
      %s125 = int_to_ptr.vmem [resolvable:$true] %s124
      %130 = dma.hbm_to_vmem [thread:$0]  %s123, 1024, %s125, [#allocation15], 64, 64, 4
    $region37: #{tpu_custom_call.1} parent=1 // pred_fallthru
      _
    // Predicated region
    $region38: #{tpu_custom_call.1} parent=1 // pred_check
      _
    $region39: #{tpu_custom_call.1} parent=1 // pred_check_branch
      %132 = sbr.rel (0) target = $region41
    $region40: #{tpu_custom_call.1} parent=1 // pred_region
      %134 = vsyncadd [#allocation15], 0
      %s136 = sshll.u32 %s9, 4
      %s137 = int_to_ptr.hbm [resolvable:$true] %s136
      %s138 = sshll.u32 [#allocation16], 4
      %s139 = int_to_ptr.vmem [resolvable:$true] %s138
      %141 = dma.hbm_to_vmem [thread:$0]  %s137, 16, %s139, [#allocation15]
    $region41: #{tpu_custom_call.1} parent=1 // pred_fallthru
      _
    // Predicated region
    $region42: #{tpu_custom_call.1} parent=1 // pred_check
      _
    $region43: #{tpu_custom_call.1} parent=1 // pred_check_branch
      %143 = sbr.rel (0) target = $region45
    $region44: #{tpu_custom_call.1} parent=1 // pred_region
      %145 = vsyncadd [#allocation18], 0
      %s146 = sshll.u32 %s10, 4
      %s147 = int_to_ptr.hbm [resolvable:$true] %s146
      %s148 = sshll.u32 [#allocation17], 4
      %s149 = int_to_ptr.vmem [resolvable:$true] %s148
      %154 = dma.hbm_to_vmem [thread:$0]  %s147, 6144, %s149, [#allocation18], 128, 128, 8
    $region45: #{tpu_custom_call.1} parent=1 // pred_fallthru
      _
    // Predicated region
    $region46: #{tpu_custom_call.1} parent=1 // pred_check
      _
    $region47: #{tpu_custom_call.1} parent=1 // pred_check_branch
      %156 = sbr.rel (0) target = $region49
    $region48: #{tpu_custom_call.1} parent=1 // pred_region
      _
    $region49: #{tpu_custom_call.1} parent=1 // pred_fallthru
      _
    // Predicated region
    $region50: #{tpu_custom_call.1} parent=1 // pred_check
      _
    $region51: #{tpu_custom_call.1} parent=1 // pred_check_branch
      %158 = sbr.rel (0) target = $region53
    $region52: #{tpu_custom_call.1} parent=1 // pred_region
      _
    $region53: #{tpu_custom_call.1} parent=1 // pred_fallthru
      _
    // Predicated region
    $region54: #{tpu_custom_call.1} parent=1 // pred_check
      _
    $region55: #{tpu_custom_call.1} parent=1 // pred_check_branch
      %160 = sbr.rel (0) target = $region57
    $region56: #{tpu_custom_call.1} parent=1 // pred_region
      _
    $region57: #{tpu_custom_call.1} parent=1 // pred_fallthru
      _
    // Predicated region
    $region58: #{tpu_custom_call.1} parent=1 // pred_check
      _
    $region59: #{tpu_custom_call.1} parent=1 // pred_check_branch
      %162 = sbr.rel (0) target = $region61
    $region60: #{tpu_custom_call.1} parent=1 // pred_region
      %164 = vsyncadd [#allocation18], 0
      %s165 = sshll.u32 %s14, 4
      %s166 = int_to_ptr.hbm [resolvable:$true] %s165
      %s167 = sshll.u32 [#allocation19], 4
      %s168 = int_to_ptr.vmem [resolvable:$true] %s167
      %173 = dma.hbm_to_vmem [thread:$0]  %s166, 2048, %s168, [#allocation18], 128, 128, 8
    $region61: #{tpu_custom_call.1} parent=1 // pred_fallthru
      _
    // Predicated region
    $region62: #{tpu_custom_call.1} parent=1 // pred_check
      _
    $region63: #{tpu_custom_call.1} parent=1 // pred_check_branch
      %175 = sbr.rel (0) target = $region65
    $region64: #{tpu_custom_call.1} parent=1 // pred_region
      _
    $region65: #{tpu_custom_call.1} parent=1 // pred_fallthru
      _
    // Predicated region
    $region66: #{tpu_custom_call.1} parent=1 // pred_check
      _
    $region67: #{tpu_custom_call.1} parent=1 // pred_check_branch
      %177 = sbr.rel (0) target = $region69
    $region68: #{tpu_custom_call.1} parent=1 // pred_region
      %179 = vsyncadd [#allocation21], 0
      %s180 = sshll.u32 %s16, 4
      %s181 = int_to_ptr.hbm [resolvable:$true] %s180
      %s182 = sshll.u32 [#allocation20], 4
      %s183 = int_to_ptr.vmem [resolvable:$true] %s182
      %188 = dma.hbm_to_vmem [thread:$0]  %s181, 1024, %s183, [#allocation21], 64, 64, 4
    $region69: #{tpu_custom_call.1} parent=1 // pred_fallthru
      _
    // Predicated region
    $region70: #{tpu_custom_call.1} parent=1 // pred_check
      _
    $region71: #{tpu_custom_call.1} parent=1 // pred_check_branch
      %190 = sbr.rel (0) target = $region73
    $region72: #{tpu_custom_call.1} parent=1 // pred_region
      _
    $region73: #{tpu_custom_call.1} parent=1 // pred_fallthru
      _
    // Predicated region
    $region74: #{tpu_custom_call.1} parent=1 // pred_check
      _
    $region75: #{tpu_custom_call.1} parent=1 // pred_check_branch
      %192 = sbr.rel (0) target = $region77
    $region76: #{tpu_custom_call.1} parent=1 // pred_region
      %194 = dma.done [#allocation3], 128
    $region77: #{tpu_custom_call.1} parent=1 // pred_fallthru
      _
    // Predicated region
    $region78: #{tpu_custom_call.1} parent=1 // pred_check
      _
    $region79: #{tpu_custom_call.1} parent=1 // pred_check_branch
      %196 = sbr.rel (0) target = $region81
    $region80: #{tpu_custom_call.1} parent=1 // pred_region
      %198 = dma.done [#allocation6], 5120
    $region81: #{tpu_custom_call.1} parent=1 // pred_fallthru
      _
    // Predicated region
    $region82: #{tpu_custom_call.1} parent=1 // pred_check
      _
    $region83: #{tpu_custom_call.1} parent=1 // pred_check_branch
      %200 = sbr.rel (0) target = $region85
    $region84: #{tpu_custom_call.1} parent=1 // pred_region
      %202 = dma.done [#allocation6], 80
    $region85: #{tpu_custom_call.1} parent=1 // pred_fallthru
      _
    // Predicated region
    $region86: #{tpu_custom_call.1} parent=1 // pred_check
      _
    $region87: #{tpu_custom_call.1} parent=1 // pred_check_branch
      %204 = sbr.rel (0) target = $region89
    $region88: #{tpu_custom_call.1} parent=1 // pred_region
      %206 = dma.done [#allocation9], 4096
    $region89: #{tpu_custom_call.1} parent=1 // pred_fallthru
      _
    // Predicated region
    $region90: #{tpu_custom_call.1} parent=1 // pred_check
      _
    $region91: #{tpu_custom_call.1} parent=1 // pred_check_branch
      %208 = sbr.rel (0) target = $region93
    $region92: #{tpu_custom_call.1} parent=1 // pred_region
      %210 = dma.done [#allocation9], 4096
    $region93: #{tpu_custom_call.1} parent=1 // pred_fallthru
      _
    // Predicated region
    $region94: #{tpu_custom_call.1} parent=1 // pred_check
      _
    $region95: #{tpu_custom_call.1} parent=1 // pred_check_branch
      %212 = sbr.rel (0) target = $region97
    $region96: #{tpu_custom_call.1} parent=1 // pred_region
      %214 = dma.done [#allocation12], 1024
    $region97: #{tpu_custom_call.1} parent=1 // pred_fallthru
      _
    // Predicated region
    $region98: #{tpu_custom_call.1} parent=1 // pred_check
      _
    $region99: #{tpu_custom_call.1} parent=1 // pred_check_branch
      %216 = sbr.rel (0) target = $region101
    $region100: #{tpu_custom_call.1} parent=1 // pred_region
      %218 = dma.done [#allocation12], 16
    $region101: #{tpu_custom_call.1} parent=1 // pred_fallthru
      _
    // Predicated region
    $region102: #{tpu_custom_call.1} parent=1 // pred_check
      _
    $region103: #{tpu_custom_call.1} parent=1 // pred_check_branch
      %220 = sbr.rel (0) target = $region105
    $region104: #{tpu_custom_call.1} parent=1 // pred_region
      %222 = dma.done [#allocation15], 1024
    $region105: #{tpu_custom_call.1} parent=1 // pred_fallthru
      _
    // Predicated region
    $region106: #{tpu_custom_call.1} parent=1 // pred_check
      _
    $region107: #{tpu_custom_call.1} parent=1 // pred_check_branch
      %224 = sbr.rel (0) target = $region109
    $region108: #{tpu_custom_call.1} parent=1 // pred_region
      %226 = dma.done [#allocation15], 16
    $region109: #{tpu_custom_call.1} parent=1 // pred_fallthru
      _
    // Predicated region
    $region110: #{tpu_custom_call.1} parent=1 // pred_check
      _
    $region111: #{tpu_custom_call.1} parent=1 // pred_check_branch
      %228 = sbr.rel (0) target = $region113
    $region112: #{tpu_custom_call.1} parent=1 // pred_region
      %230 = dma.done [#allocation18], 6144
    $region113: #{tpu_custom_call.1} parent=1 // pred_fallthru
      _
    // Predicated region
    $region114: #{tpu_custom_call.1} parent=1 // pred_check
      _
    $region115: #{tpu_custom_call.1} parent=1 // pred_check_branch
      %232 = sbr.rel (0) target = $region117
    $region116: #{tpu_custom_call.1} parent=1 // pred_region
      %234 = dma.done [#allocation18], 2048
    $region117: #{tpu_custom_call.1} parent=1 // pred_fallthru
      _
    // Predicated region
    $region118: #{tpu_custom_call.1} parent=1 // pred_check
      _
    $region119: #{tpu_custom_call.1} parent=1 // pred_check_branch
      %236 = sbr.rel (0) target = $region121
    $region120: #{tpu_custom_call.1} parent=1 // pred_region
      %238 = dma.done [#allocation21], 1024
    $region121: #{tpu_custom_call.1} parent=1 // pred_fallthru
      _
    %v239 = vld [vmem:[#allocation2] sm:$0xff]
    %v240 = vld [vmem:[#allocation5] sm:$0xff]
    %v241 = vld [vmem:[#allocation5 + $0x8] sm:$0xff]
    %v242 = vld [vmem:[#allocation5 + $0x10] sm:$0xf]
    %v243 = vld [vmem:[#allocation5 + $0x14] sm:$0xff]
    %v244 = vld [vmem:[#allocation5 + $0x1c] sm:$0xff]
    %v245 = vld [vmem:[#allocation5 + $0x24] sm:$0xf]
    %v246 = vld [vmem:[#allocation5 + $0x28] sm:$0xff]
    %v247 = vld [vmem:[#allocation5 + $0x30] sm:$0xff]
    %v248 = vld [vmem:[#allocation5 + $0x38] sm:$0xf]
    %v249 = vld [vmem:[#allocation5 + $0x3c] sm:$0xff]
    %v250 = vld [vmem:[#allocation5 + $0x44] sm:$0xff]
    %v251 = vld [vmem:[#allocation5 + $0x4c] sm:$0xf]
    %v252 = vld [vmem:[#allocation5 + $0x50] sm:$0xff]
    %v253 = vld [vmem:[#allocation5 + $0x58] sm:$0xff]
    %v254 = vld [vmem:[#allocation5 + $0x60] sm:$0xf]
    %v255 = vld [vmem:[#allocation5 + $0x64] sm:$0xff]
    %v256 = vld [vmem:[#allocation5 + $0x6c] sm:$0xff]
    %v257 = vld [vmem:[#allocation5 + $0x74] sm:$0xf]
    %v258 = vld [vmem:[#allocation5 + $0x78] sm:$0xff]
    %v259 = vld [vmem:[#allocation5 + $0x80] sm:$0xff]
    %v260 = vld [vmem:[#allocation5 + $0x88] sm:$0xf]
    %v261 = vld [vmem:[#allocation5 + $0x8c] sm:$0xff]
    %v262 = vld [vmem:[#allocation5 + $0x94] sm:$0xff]
    %v263 = vld [vmem:[#allocation5 + $0x9c] sm:$0xf]
    %v264 = vld [vmem:[#allocation5 + $0xa0] sm:$0xff]
    %v265 = vld [vmem:[#allocation5 + $0xa8] sm:$0xff]
    %v266 = vld [vmem:[#allocation5 + $0xb0] sm:$0xf]
    %v267 = vld [vmem:[#allocation5 + $0xb4] sm:$0xff]
    %v268 = vld [vmem:[#allocation5 + $0xbc] sm:$0xff]
    %v269 = vld [vmem:[#allocation5 + $0xc4] sm:$0xf]
    %v270 = vld [vmem:[#allocation5 + $0xc8] sm:$0xff]
    %v271 = vld [vmem:[#allocation5 + $0xd0] sm:$0xff]
    %v272 = vld [vmem:[#allocation5 + $0xd8] sm:$0xf]
    %v273 = vld [vmem:[#allocation5 + $0xdc] sm:$0xff]
    %v274 = vld [vmem:[#allocation5 + $0xe4] sm:$0xff]
    %v275 = vld [vmem:[#allocation5 + $0xec] sm:$0xf]
    %v276 = vld [vmem:[#allocation5 + $0xf0] sm:$0xff]
    %v277 = vld [vmem:[#allocation5 + $0xf8] sm:$0xff]
    %v278 = vld [vmem:[#allocation5 + $0x100] sm:$0xf]
    %v279 = vld [vmem:[#allocation5 + $0x104] sm:$0xff]
    %v280 = vld [vmem:[#allocation5 + $0x10c] sm:$0xff]
    %v281 = vld [vmem:[#allocation5 + $0x114] sm:$0xf]
    %v282 = vld [vmem:[#allocation5 + $0x118] sm:$0xff]
    %v283 = vld [vmem:[#allocation5 + $0x120] sm:$0xff]
    %v284 = vld [vmem:[#allocation5 + $0x128] sm:$0xf]
    %v285 = vld [vmem:[#allocation5 + $0x12c] sm:$0xff]
    %v286 = vld [vmem:[#allocation5 + $0x134] sm:$0xff]
    %v287 = vld [vmem:[#allocation5 + $0x13c] sm:$0xf]
    %v288 = vpack.c.bf16 %v239, %v239
    %v289 = vld [vmem:[#allocation7] sm:$0x1f]
    %v291 = vperm.slane %v289, 0
    %v292 = vperm.slane %v289, 1
    %v293 = vperm.slane %v289, 2
    %v294 = vperm.slane %v289, 3
    %v295 = vperm.slane %v289, 4
    %v349 = vunpack.c.l.b16 %v240
    %v350 = vunpack.c.h.b16 %v240
    %v351 = vunpack.c.l.b16 %v241
    %v352 = vunpack.c.h.b16 %v241
    %v353 = vunpack.c.l.b16 %v242
    %v354 = vunpack.c.l.b16 %v243
    %v355 = vunpack.c.h.b16 %v243
    %v356 = vunpack.c.l.b16 %v244
    %v357 = vunpack.c.h.b16 %v244
    %v358 = vunpack.c.l.b16 %v245
    %v359 = vunpack.c.l.b16 %v246
    %v360 = vunpack.c.h.b16 %v246
    %v361 = vunpack.c.l.b16 %v247
    %v362 = vunpack.c.h.b16 %v247
    %v363 = vunpack.c.l.b16 %v248
    %v364 = vunpack.c.l.b16 %v249
    %v365 = vunpack.c.h.b16 %v249
    %v366 = vunpack.c.l.b16 %v250
    %v367 = vunpack.c.h.b16 %v250
    %v368 = vunpack.c.l.b16 %v251
    %v369 = vunpack.c.l.b16 %v252
    %v370 = vunpack.c.h.b16 %v252
    %v371 = vunpack.c.l.b16 %v253
    %v372 = vunpack.c.h.b16 %v253
    %v373 = vunpack.c.l.b16 %v254
    %v374 = vunpack.c.l.b16 %v255
    %v375 = vunpack.c.h.b16 %v255
    %v376 = vunpack.c.l.b16 %v256
    %v377 = vunpack.c.h.b16 %v256
    %v378 = vunpack.c.l.b16 %v257
    %v379 = vunpack.c.l.b16 %v258
    %v380 = vunpack.c.h.b16 %v258
    %v381 = vunpack.c.l.b16 %v259
    %v382 = vunpack.c.h.b16 %v259
    %v383 = vunpack.c.l.b16 %v260
    %v384 = vunpack.c.l.b16 %v261
    %v385 = vunpack.c.h.b16 %v261
    %v386 = vunpack.c.l.b16 %v262
    %v387 = vunpack.c.h.b16 %v262
    %v388 = vunpack.c.l.b16 %v263
    %v389 = vunpack.c.l.b16 %v264
    %v390 = vunpack.c.h.b16 %v264
    %v391 = vunpack.c.l.b16 %v265
    %v392 = vunpack.c.h.b16 %v265
    %v393 = vunpack.c.l.b16 %v266
    %v394 = vunpack.c.l.b16 %v267
    %v395 = vunpack.c.h.b16 %v267
    %v396 = vunpack.c.l.b16 %v268
    %v397 = vunpack.c.h.b16 %v268
    %v398 = vunpack.c.l.b16 %v269
    %v399 = vunpack.c.l.b16 %v270
    %v400 = vunpack.c.h.b16 %v270
    %v401 = vunpack.c.l.b16 %v271
    %v402 = vunpack.c.h.b16 %v271
    %v403 = vunpack.c.l.b16 %v272
    %v404 = vunpack.c.l.b16 %v273
    %v405 = vunpack.c.h.b16 %v273
    %v406 = vunpack.c.l.b16 %v274
    %v407 = vunpack.c.h.b16 %v274
    %v408 = vunpack.c.l.b16 %v275
    %v409 = vunpack.c.l.b16 %v276
    %v410 = vunpack.c.h.b16 %v276
    %v411 = vunpack.c.l.b16 %v277
    %v412 = vunpack.c.h.b16 %v277
    %v413 = vunpack.c.l.b16 %v278
    %v414 = vunpack.c.l.b16 %v279
    %v415 = vunpack.c.h.b16 %v279
    %v416 = vunpack.c.l.b16 %v280
    %v417 = vunpack.c.h.b16 %v280
    %v418 = vunpack.c.l.b16 %v281
    %v419 = vunpack.c.l.b16 %v282
    %v420 = vunpack.c.h.b16 %v282
    %v421 = vunpack.c.l.b16 %v283
    %v422 = vunpack.c.h.b16 %v283
    %v423 = vunpack.c.l.b16 %v284
    %v424 = vunpack.c.l.b16 %v285
    %v425 = vunpack.c.h.b16 %v285
    %v426 = vunpack.c.l.b16 %v286
    %v427 = vunpack.c.h.b16 %v286
    %v428 = vunpack.c.l.b16 %v287
    %v429 = vpack.c.b16 %v354, %v349
    %v430 = vpack.c.b16 %v355, %v350
    %v431 = vpack.c.b16 %v356, %v351
    %v432 = vpack.c.b16 %v357, %v352
    %v433 = vpack.c.b16 %v358, %v353
    %v434 = vpack.c.b16 %v364, %v359
    %v435 = vpack.c.b16 %v365, %v360
    %v436 = vpack.c.b16 %v366, %v361
    %v437 = vpack.c.b16 %v367, %v362
    %v438 = vpack.c.b16 %v368, %v363
    %v439 = vpack.c.b16 %v374, %v369
    %v440 = vpack.c.b16 %v375, %v370
    %v441 = vpack.c.b16 %v376, %v371
    %v442 = vpack.c.b16 %v377, %v372
    %v443 = vpack.c.b16 %v378, %v373
    %v444 = vpack.c.b16 %v384, %v379
    %v445 = vpack.c.b16 %v385, %v380
    %v446 = vpack.c.b16 %v386, %v381
    %v447 = vpack.c.b16 %v387, %v382
    %v448 = vpack.c.b16 %v388, %v383
    %v449 = vpack.c.b16 %v394, %v389
    %v450 = vpack.c.b16 %v395, %v390
    %v451 = vpack.c.b16 %v396, %v391
    %v452 = vpack.c.b16 %v397, %v392
    %v453 = vpack.c.b16 %v398, %v393
    %v454 = vpack.c.b16 %v404, %v399
    %v455 = vpack.c.b16 %v405, %v400
    %v456 = vpack.c.b16 %v406, %v401
    %v457 = vpack.c.b16 %v407, %v402
    %v458 = vpack.c.b16 %v408, %v403
    %v459 = vpack.c.b16 %v414, %v409
    %v460 = vpack.c.b16 %v415, %v410
    %v461 = vpack.c.b16 %v416, %v411
    %v462 = vpack.c.b16 %v417, %v412
    %v463 = vpack.c.b16 %v418, %v413
    %v464 = vpack.c.b16 %v424, %v419
    %v465 = vpack.c.b16 %v425, %v420
    %v466 = vpack.c.b16 %v426, %v421
    %v467 = vpack.c.b16 %v427, %v422
    %v468 = vpack.c.b16 %v428, %v423
    %509 = vmatpush.bf16.msra.mxu0 %v464
    %510 = vmatpush.bf16.msra.mxu0 %v459
    %511 = vmatpush.bf16.msra.mxu0 %v454
    %512 = vmatpush.bf16.msra.mxu0 %v449
    %513 = vmatpush.bf16.msra.mxu0 %v444
    %514 = vmatpush.bf16.msra.mxu0 %v439
    %515 = vmatpush.bf16.msra.mxu0 %v434
    %516 = vmatpush.bf16.msra.mxu0 %v429
    %517 = vmatmul.bf16.gmra.mxu0 %v288
    %v518 = vpop.f32.mrf.mxu0
    %v519 = vadd.f32 %v291, %v518
    %v520 = vpop.f32.mrf.mxu0
    %521 = vdwg.mxu0
    %522 = vmatpush.bf16.msra.mxu0 %v465
    %523 = vmatpush.bf16.msra.mxu0 %v460
    %524 = vmatpush.bf16.msra.mxu0 %v455
    %525 = vmatpush.bf16.msra.mxu0 %v450
    %526 = vmatpush.bf16.msra.mxu0 %v445
    %527 = vmatpush.bf16.msra.mxu0 %v440
    %528 = vmatpush.bf16.msra.mxu0 %v435
    %529 = vmatpush.bf16.msra.mxu0 %v430
    %530 = vmatmul.bf16.gmra.mxu0 %v288
    %v531 = vpop.f32.mrf.mxu0
    %v532 = vadd.f32 %v292, %v531
    %v533 = vpop.f32.mrf.mxu0
    %534 = vdwg.mxu0
    %535 = vmatpush.bf16.msra.mxu0 %v466
    %536 = vmatpush.bf16.msra.mxu0 %v461
    %537 = vmatpush.bf16.msra.mxu0 %v456
    %538 = vmatpush.bf16.msra.mxu0 %v451
    %539 = vmatpush.bf16.msra.mxu0 %v446
    %540 = vmatpush.bf16.msra.mxu0 %v441
    %541 = vmatpush.bf16.msra.mxu0 %v436
    %542 = vmatpush.bf16.msra.mxu0 %v431
    %543 = vmatmul.bf16.gmra.mxu0 %v288
    %v544 = vpop.f32.mrf.mxu0
    %v545 = vadd.f32 %v293, %v544
    %v546 = vpop.f32.mrf.mxu0
    %547 = vdwg.mxu0
    %548 = vmatpush.bf16.msra.mxu0 %v467
    %549 = vmatpush.bf16.msra.mxu0 %v462
    %550 = vmatpush.bf16.msra.mxu0 %v457
    %551 = vmatpush.bf16.msra.mxu0 %v452
    %552 = vmatpush.bf16.msra.mxu0 %v447
    %553 = vmatpush.bf16.msra.mxu0 %v442
    %554 = vmatpush.bf16.msra.mxu0 %v437
    %555 = vmatpush.bf16.msra.mxu0 %v432
    %556 = vmatmul.bf16.gmra.mxu0 %v288
    %v557 = vpop.f32.mrf.mxu0
    %v558 = vadd.f32 %v294, %v557
    %v559 = vpop.f32.mrf.mxu0
    %560 = vdwg.mxu0
    %561 = vmatpush.bf16.msra.mxu0 %v468
    %562 = vmatpush.bf16.msra.mxu0 %v463
    %563 = vmatpush.bf16.msra.mxu0 %v458
    %564 = vmatpush.bf16.msra.mxu0 %v453
    %565 = vmatpush.bf16.msra.mxu0 %v448
    %566 = vmatpush.bf16.msra.mxu0 %v443
    %567 = vmatpush.bf16.msra.mxu0 %v438
    %568 = vmatpush.bf16.msra.mxu0 %v433
    %569 = vmatmul.bf16.gmra.mxu0 %v288
    %v570 = vpop.f32.mrf.mxu0
    %v571 = vadd.f32 %v295, %v570
    %v572 = vpop.f32.mrf.mxu0
    %573 = vdwg.mxu0
    %v574 = vxor.u32 %v519, 2147483648
    %v575 = vmul.f32 %v574, 1.442695
    %v576 = vpow.pop %v575
    %v577 = vadd.f32 %v576, 1.0
    %v578 = vrcp.pop %v577
    %v579 = vmul.f32 %v577, %v578
    %v580 = vsub.f32 1.0, %v579
    %v581 = vmul.f32 %v578, %v580
    %v582 = vadd.f32 %v578, %v581
    %vm583 = vweird.f32 %v577
    %vm584 = vweird.f32 %v578
    %vm585 = vmor %vm583, %vm584
    %v586 = vsel %vm585, %v578, %v582
    %v587 = vand.u32 2147483647, %v577
    %vm588 = vcmp.eq.f32.partialorder %v587, 8.507059e+37
    %v589 = vand.u32 %v577, 2147483648
    %v590 = vor.u32 1.1754944e-38, %v589
    %v591 = vsel %vm588, %v590, %v586
    %v592 = vmul.f32 1.0, %v591
    %v593 = vxor.u32 %v532, 2147483648
    %v594 = vmul.f32 %v593, 1.442695
    %v595 = vpow.pop %v594
    %v596 = vadd.f32 %v595, 1.0
    %v597 = vrcp.pop %v596
    %v598 = vmul.f32 %v596, %v597
    %v599 = vsub.f32 1.0, %v598
    %v600 = vmul.f32 %v597, %v599
    %v601 = vadd.f32 %v597, %v600
    %vm602 = vweird.f32 %v596
    %vm603 = vweird.f32 %v597
    %vm604 = vmor %vm602, %vm603
    %v605 = vsel %vm604, %v597, %v601
    %v606 = vand.u32 2147483647, %v596
    %vm607 = vcmp.eq.f32.partialorder %v606, 8.507059e+37
    %v608 = vand.u32 %v596, 2147483648
    %v609 = vor.u32 1.1754944e-38, %v608
    %v610 = vsel %vm607, %v609, %v605
    %v611 = vmul.f32 1.0, %v610
    %v612 = vtanh.pop %v545
    %v613 = vmul.f32 %v592, %v612
    %v614 = vtanh.pop %v613
    %v615 = vmul.f32 %v611, %v614
    %v616 = vld [vmem:[#allocation8] sm:$0xff]
    %v617 = vld [vmem:[#allocation8 + $0x8] sm:$0xff]
    %v618 = vld [vmem:[#allocation8 + $0x10] sm:$0xff]
    %v619 = vld [vmem:[#allocation8 + $0x18] sm:$0xff]
    %v620 = vld [vmem:[#allocation8 + $0x20] sm:$0xff]
    %v621 = vld [vmem:[#allocation8 + $0x28] sm:$0xff]
    %v622 = vld [vmem:[#allocation8 + $0x30] sm:$0xff]
    %v623 = vld [vmem:[#allocation8 + $0x38] sm:$0xff]
    %v624 = vld [vmem:[#allocation8 + $0x40] sm:$0xff]
    %v625 = vld [vmem:[#allocation8 + $0x48] sm:$0xff]
    %v626 = vld [vmem:[#allocation8 + $0x50] sm:$0xff]
    %v627 = vld [vmem:[#allocation8 + $0x58] sm:$0xff]
    %v628 = vld [vmem:[#allocation8 + $0x60] sm:$0xff]
    %v629 = vld [vmem:[#allocation8 + $0x68] sm:$0xff]
    %v630 = vld [vmem:[#allocation8 + $0x70] sm:$0xff]
    %v631 = vld [vmem:[#allocation8 + $0x78] sm:$0xff]
    %v632 = vld [vmem:[#allocation8 + $0x80] sm:$0xff]
    %v633 = vld [vmem:[#allocation8 + $0x88] sm:$0xff]
    %v634 = vld [vmem:[#allocation8 + $0x90] sm:$0xff]
    %v635 = vld [vmem:[#allocation8 + $0x98] sm:$0xff]
    %v636 = vld [vmem:[#allocation8 + $0xa0] sm:$0xff]
    %v637 = vld [vmem:[#allocation8 + $0xa8] sm:$0xff]
    %v638 = vld [vmem:[#allocation8 + $0xb0] sm:$0xff]
    %v639 = vld [vmem:[#allocation8 + $0xb8] sm:$0xff]
    %v640 = vld [vmem:[#allocation8 + $0xc0] sm:$0xff]
    %v641 = vld [vmem:[#allocation8 + $0xc8] sm:$0xff]
    %v642 = vld [vmem:[#allocation8 + $0xd0] sm:$0xff]
    %v643 = vld [vmem:[#allocation8 + $0xd8] sm:$0xff]
    %v644 = vld [vmem:[#allocation8 + $0xe0] sm:$0xff]
    %v645 = vld [vmem:[#allocation8 + $0xe8] sm:$0xff]
    %v646 = vld [vmem:[#allocation8 + $0xf0] sm:$0xff]
    %v647 = vld [vmem:[#allocation8 + $0xf8] sm:$0xff]
    %v648 = vpack.c.bf16 %v558, %v558
    %v649 = vld [vmem:[%s5] sm:$0xf]
    %v651 = vperm.slane %v649, 0
    %v652 = vperm.slane %v649, 1
    %v653 = vperm.slane %v649, 2
    %v654 = vperm.slane %v649, 3
    %v691 = vunpack.c.l.b16 %v616
    %v692 = vunpack.c.h.b16 %v616
    %v693 = vunpack.c.l.b16 %v617
    %v694 = vunpack.c.h.b16 %v617
    %v695 = vunpack.c.l.b16 %v618
    %v696 = vunpack.c.h.b16 %v618
    %v697 = vunpack.c.l.b16 %v619
    %v698 = vunpack.c.h.b16 %v619
    %v699 = vunpack.c.l.b16 %v620
    %v700 = vunpack.c.h.b16 %v620
    %v701 = vunpack.c.l.b16 %v621
    %v702 = vunpack.c.h.b16 %v621
    %v703 = vunpack.c.l.b16 %v622
    %v704 = vunpack.c.h.b16 %v622
    %v705 = vunpack.c.l.b16 %v623
    %v706 = vunpack.c.h.b16 %v623
    %v707 = vunpack.c.l.b16 %v624
    %v708 = vunpack.c.h.b16 %v624
    %v709 = vunpack.c.l.b16 %v625
    %v710 = vunpack.c.h.b16 %v625
    %v711 = vunpack.c.l.b16 %v626
    %v712 = vunpack.c.h.b16 %v626
    %v713 = vunpack.c.l.b16 %v627
    %v714 = vunpack.c.h.b16 %v627
    %v715 = vunpack.c.l.b16 %v628
    %v716 = vunpack.c.h.b16 %v628
    %v717 = vunpack.c.l.b16 %v629
    %v718 = vunpack.c.h.b16 %v629
    %v719 = vunpack.c.l.b16 %v630
    %v720 = vunpack.c.h.b16 %v630
    %v721 = vunpack.c.l.b16 %v631
    %v722 = vunpack.c.h.b16 %v631
    %v723 = vunpack.c.l.b16 %v632
    %v724 = vunpack.c.h.b16 %v632
    %v725 = vunpack.c.l.b16 %v633
    %v726 = vunpack.c.h.b16 %v633
    %v727 = vunpack.c.l.b16 %v634
    %v728 = vunpack.c.h.b16 %v634
    %v729 = vunpack.c.l.b16 %v635
    %v730 = vunpack.c.h.b16 %v635
    %v731 = vunpack.c.l.b16 %v636
    %v732 = vunpack.c.h.b16 %v636
    %v733 = vunpack.c.l.b16 %v637
    %v734 = vunpack.c.h.b16 %v637
    %v735 = vunpack.c.l.b16 %v638
    %v736 = vunpack.c.h.b16 %v638
    %v737 = vunpack.c.l.b16 %v639
    %v738 = vunpack.c.h.b16 %v639
    %v739 = vunpack.c.l.b16 %v640
    %v740 = vunpack.c.h.b16 %v640
    %v741 = vunpack.c.l.b16 %v641
    %v742 = vunpack.c.h.b16 %v641
    %v743 = vunpack.c.l.b16 %v642
    %v744 = vunpack.c.h.b16 %v642
    %v745 = vunpack.c.l.b16 %v643
    %v746 = vunpack.c.h.b16 %v643
    %v747 = vunpack.c.l.b16 %v644
    %v748 = vunpack.c.h.b16 %v644
    %v749 = vunpack.c.l.b16 %v645
    %v750 = vunpack.c.h.b16 %v645
    %v751 = vunpack.c.l.b16 %v646
    %v752 = vunpack.c.h.b16 %v646
    %v753 = vunpack.c.l.b16 %v647
    %v754 = vunpack.c.h.b16 %v647
    %v755 = vpack.c.b16 %v695, %v691
    %v756 = vpack.c.b16 %v696, %v692
    %v757 = vpack.c.b16 %v697, %v693
    %v758 = vpack.c.b16 %v698, %v694
    %v759 = vpack.c.b16 %v703, %v699
    %v760 = vpack.c.b16 %v704, %v700
    %v761 = vpack.c.b16 %v705, %v701
    %v762 = vpack.c.b16 %v706, %v702
    %v763 = vpack.c.b16 %v711, %v707
    %v764 = vpack.c.b16 %v712, %v708
    %v765 = vpack.c.b16 %v713, %v709
    %v766 = vpack.c.b16 %v714, %v710
    %v767 = vpack.c.b16 %v719, %v715
    %v768 = vpack.c.b16 %v720, %v716
    %v769 = vpack.c.b16 %v721, %v717
    %v770 = vpack.c.b16 %v722, %v718
    %v771 = vpack.c.b16 %v727, %v723
    %v772 = vpack.c.b16 %v728, %v724
    %v773 = vpack.c.b16 %v729, %v725
    %v774 = vpack.c.b16 %v730, %v726
    %v775 = vpack.c.b16 %v735, %v731
    %v776 = vpack.c.b16 %v736, %v732
    %v777 = vpack.c.b16 %v737, %v733
    %v778 = vpack.c.b16 %v738, %v734
    %v779 = vpack.c.b16 %v743, %v739
    %v780 = vpack.c.b16 %v744, %v740
    %v781 = vpack.c.b16 %v745, %v741
    %v782 = vpack.c.b16 %v746, %v742
    %v783 = vpack.c.b16 %v751, %v747
    %v784 = vpack.c.b16 %v752, %v748
    %v785 = vpack.c.b16 %v753, %v749
    %v786 = vpack.c.b16 %v754, %v750
    %819 = vmatpush.bf16.msra.mxu0 %v783
    %820 = vmatpush.bf16.msra.mxu0 %v779
    %821 = vmatpush.bf16.msra.mxu0 %v775
    %822 = vmatpush.bf16.msra.mxu0 %v771
    %823 = vmatpush.bf16.msra.mxu0 %v767
    %824 = vmatpush.bf16.msra.mxu0 %v763
    %825 = vmatpush.bf16.msra.mxu0 %v759
    %826 = vmatpush.bf16.msra.mxu0 %v755
    %827 = vmatmul.bf16.gmra.mxu0 %v648
    %v828 = vpop.f32.mrf.mxu0
    %v829 = vadd.f32 %v651, %v828
    %v830 = vpop.f32.mrf.mxu0
    %831 = vdwg.mxu0
    %832 = vmatpush.bf16.msra.mxu0 %v784
    %833 = vmatpush.bf16.msra.mxu0 %v780
    %834 = vmatpush.bf16.msra.mxu0 %v776
    %835 = vmatpush.bf16.msra.mxu0 %v772
    %836 = vmatpush.bf16.msra.mxu0 %v768
    %837 = vmatpush.bf16.msra.mxu0 %v764
    %838 = vmatpush.bf16.msra.mxu0 %v760
    %839 = vmatpush.bf16.msra.mxu0 %v756
    %840 = vmatmul.bf16.gmra.mxu0 %v648
    %v841 = vpop.f32.mrf.mxu0
    %v842 = vadd.f32 %v652, %v841
    %v843 = vpop.f32.mrf.mxu0
    %844 = vdwg.mxu0
    %845 = vmatpush.bf16.msra.mxu0 %v785
    %846 = vmatpush.bf16.msra.mxu0 %v781
    %847 = vmatpush.bf16.msra.mxu0 %v777
    %848 = vmatpush.bf16.msra.mxu0 %v773
    %849 = vmatpush.bf16.msra.mxu0 %v769
    %850 = vmatpush.bf16.msra.mxu0 %v765
    %851 = vmatpush.bf16.msra.mxu0 %v761
    %852 = vmatpush.bf16.msra.mxu0 %v757
    %853 = vmatmul.bf16.gmra.mxu0 %v648
    %v854 = vpop.f32.mrf.mxu0
    %v855 = vadd.f32 %v653, %v854
    %v856 = vpop.f32.mrf.mxu0
    %857 = vdwg.mxu0
    %858 = vmatpush.bf16.msra.mxu0 %v786
    %859 = vmatpush.bf16.msra.mxu0 %v782
    %860 = vmatpush.bf16.msra.mxu0 %v778
    %861 = vmatpush.bf16.msra.mxu0 %v774
    %862 = vmatpush.bf16.msra.mxu0 %v770
    %863 = vmatpush.bf16.msra.mxu0 %v766
    %864 = vmatpush.bf16.msra.mxu0 %v762
    %865 = vmatpush.bf16.msra.mxu0 %v758
    %866 = vmatmul.bf16.gmra.mxu0 %v648
    %v867 = vpop.f32.mrf.mxu0
    %v868 = vadd.f32 %v654, %v867
    %v869 = vpop.f32.mrf.mxu0
    %870 = vdwg.mxu0
    %871 = vmax.xlane.f32.xlu0 %v829
    %v872 = vpop.xlane.xlu0 %871
    %v873 = vsub.f32 %v829, %v872
    %v874 = vmul.f32 %v873, 1.442695
    %v875 = vpow.pop %v874
    %876 = vadd.xlane.f32.xlu0 %v875
    %v877 = vpop.xlane.xlu0 %876
    %v878 = vrcp.pop %v877
    %v879 = vmul.f32 %v875, %v878
    %880 = vmax.xlane.f32.xlu0 %v842
    %v881 = vpop.xlane.xlu0 %880
    %v882 = vsub.f32 %v842, %v881
    %v883 = vmul.f32 %v882, 1.442695
    %v884 = vpow.pop %v883
    %885 = vadd.xlane.f32.xlu0 %v884
    %v886 = vpop.xlane.xlu0 %885
    %v887 = vrcp.pop %v886
    %v888 = vmul.f32 %v884, %v887
    %889 = vmax.xlane.f32.xlu0 %v855
    %v890 = vpop.xlane.xlu0 %889
    %v891 = vsub.f32 %v855, %v890
    %v892 = vmul.f32 %v891, 1.442695
    %v893 = vpow.pop %v892
    %894 = vadd.xlane.f32.xlu0 %v893
    %v895 = vpop.xlane.xlu0 %894
    %v896 = vrcp.pop %v895
    %v897 = vmul.f32 %v893, %v896
    %898 = vmax.xlane.f32.xlu0 %v868
    %v899 = vpop.xlane.xlu0 %898
    %v900 = vsub.f32 %v868, %v899
    %v901 = vmul.f32 %v900, 1.442695
    %v902 = vpow.pop %v901
    %903 = vadd.xlane.f32.xlu0 %v902
    %v904 = vpop.xlane.xlu0 %903
    %v905 = vrcp.pop %v904
    %v906 = vmul.f32 %v902, %v905
    %v907 = vld [vmem:[#allocation10] sm:$0xf]
    %v908 = vld [vmem:[#allocation10 + $0x4] sm:$0xf]
    %v909 = vld [vmem:[#allocation10 + $0x8] sm:$0xf]
    %v910 = vld [vmem:[#allocation10 + $0xc] sm:$0xf]
    %v911 = vld [vmem:[#allocation10 + $0x10] sm:$0xf]
    %v912 = vld [vmem:[#allocation10 + $0x14] sm:$0xf]
    %v913 = vld [vmem:[#allocation10 + $0x18] sm:$0xf]
    %v914 = vld [vmem:[#allocation10 + $0x1c] sm:$0xf]
    %v915 = vld [vmem:[#allocation10 + $0x20] sm:$0xf]
    %v916 = vld [vmem:[#allocation10 + $0x24] sm:$0xf]
    %v917 = vld [vmem:[#allocation10 + $0x28] sm:$0xf]
    %v918 = vld [vmem:[#allocation10 + $0x2c] sm:$0xf]
    %v919 = vld [vmem:[#allocation10 + $0x30] sm:$0xf]
    %v920 = vld [vmem:[#allocation10 + $0x34] sm:$0xf]
    %v921 = vld [vmem:[#allocation10 + $0x38] sm:$0xf]
    %v922 = vld [vmem:[#allocation10 + $0x3c] sm:$0xf]
    %v923 = vld [vmem:[#allocation10 + $0x40] sm:$0xf]
    %v924 = vld [vmem:[#allocation10 + $0x44] sm:$0xf]
    %v925 = vld [vmem:[#allocation10 + $0x48] sm:$0xf]
    %v926 = vld [vmem:[#allocation10 + $0x4c] sm:$0xf]
    %v927 = vld [vmem:[#allocation10 + $0x50] sm:$0xf]
    %v928 = vld [vmem:[#allocation10 + $0x54] sm:$0xf]
    %v929 = vld [vmem:[#allocation10 + $0x58] sm:$0xf]
    %v930 = vld [vmem:[#allocation10 + $0x5c] sm:$0xf]
    %v931 = vld [vmem:[#allocation10 + $0x60] sm:$0xf]
    %v932 = vld [vmem:[#allocation10 + $0x64] sm:$0xf]
    %v933 = vld [vmem:[#allocation10 + $0x68] sm:$0xf]
    %v934 = vld [vmem:[#allocation10 + $0x6c] sm:$0xf]
    %v935 = vld [vmem:[#allocation10 + $0x70] sm:$0xf]
    %v936 = vld [vmem:[#allocation10 + $0x74] sm:$0xf]
    %v937 = vld [vmem:[#allocation10 + $0x78] sm:$0xf]
    %v938 = vld [vmem:[#allocation10 + $0x7c] sm:$0xf]
    %v939 = vld [vmem:[#allocation10 + $0x80] sm:$0xf]
    %v940 = vld [vmem:[#allocation10 + $0x84] sm:$0xf]
    %v941 = vld [vmem:[#allocation10 + $0x88] sm:$0xf]
    %v942 = vld [vmem:[#allocation10 + $0x8c] sm:$0xf]
    %v943 = vld [vmem:[#allocation10 + $0x90] sm:$0xf]
    %v944 = vld [vmem:[#allocation10 + $0x94] sm:$0xf]
    %v945 = vld [vmem:[#allocation10 + $0x98] sm:$0xf]
    %v946 = vld [vmem:[#allocation10 + $0x9c] sm:$0xf]
    %v947 = vld [vmem:[#allocation10 + $0xa0] sm:$0xf]
    %v948 = vld [vmem:[#allocation10 + $0xa4] sm:$0xf]
    %v949 = vld [vmem:[#allocation10 + $0xa8] sm:$0xf]
    %v950 = vld [vmem:[#allocation10 + $0xac] sm:$0xf]
    %v951 = vld [vmem:[#allocation10 + $0xb0] sm:$0xf]
    %v952 = vld [vmem:[#allocation10 + $0xb4] sm:$0xf]
    %v953 = vld [vmem:[#allocation10 + $0xb8] sm:$0xf]
    %v954 = vld [vmem:[#allocation10 + $0xbc] sm:$0xf]
    %v955 = vld [vmem:[#allocation10 + $0xc0] sm:$0xf]
    %v956 = vld [vmem:[#allocation10 + $0xc4] sm:$0xf]
    %v957 = vld [vmem:[#allocation10 + $0xc8] sm:$0xf]
    %v958 = vld [vmem:[#allocation10 + $0xcc] sm:$0xf]
    %v959 = vld [vmem:[#allocation10 + $0xd0] sm:$0xf]
    %v960 = vld [vmem:[#allocation10 + $0xd4] sm:$0xf]
    %v961 = vld [vmem:[#allocation10 + $0xd8] sm:$0xf]
    %v962 = vld [vmem:[#allocation10 + $0xdc] sm:$0xf]
    %v963 = vld [vmem:[#allocation10 + $0xe0] sm:$0xf]
    %v964 = vld [vmem:[#allocation10 + $0xe4] sm:$0xf]
    %v965 = vld [vmem:[#allocation10 + $0xe8] sm:$0xf]
    %v966 = vld [vmem:[#allocation10 + $0xec] sm:$0xf]
    %v967 = vld [vmem:[#allocation10 + $0xf0] sm:$0xf]
    %v968 = vld [vmem:[#allocation10 + $0xf4] sm:$0xf]
    %v969 = vld [vmem:[#allocation10 + $0xf8] sm:$0xf]
    %v970 = vld [vmem:[#allocation10 + $0xfc] sm:$0xf]
    %v971 = vpack.c.bf16 %v879, %v879
    %v972 = vpack.c.bf16 %v888, %v888
    %v973 = vpack.c.bf16 %v897, %v897
    %v974 = vpack.c.bf16 %v906, %v906
    %v1039 = vunpack.c.l.b16 %v907
    %v1040 = vunpack.c.l.b16 %v908
    %v1041 = vunpack.c.l.b16 %v909
    %v1042 = vunpack.c.l.b16 %v910
    %v1043 = vunpack.c.l.b16 %v911
    %v1044 = vunpack.c.l.b16 %v912
    %v1045 = vunpack.c.l.b16 %v913
    %v1046 = vunpack.c.l.b16 %v914
    %v1047 = vunpack.c.l.b16 %v915
    %v1048 = vunpack.c.l.b16 %v916
    %v1049 = vunpack.c.l.b16 %v917
    %v1050 = vunpack.c.l.b16 %v918
    %v1051 = vunpack.c.l.b16 %v919
    %v1052 = vunpack.c.l.b16 %v920
    %v1053 = vunpack.c.l.b16 %v921
    %v1054 = vunpack.c.l.b16 %v922
    %v1055 = vunpack.c.l.b16 %v923
    %v1056 = vunpack.c.l.b16 %v924
    %v1057 = vunpack.c.l.b16 %v925
    %v1058 = vunpack.c.l.b16 %v926
    %v1059 = vunpack.c.l.b16 %v927
    %v1060 = vunpack.c.l.b16 %v928
    %v1061 = vunpack.c.l.b16 %v929
    %v1062 = vunpack.c.l.b16 %v930
    %v1063 = vunpack.c.l.b16 %v931
    %v1064 = vunpack.c.l.b16 %v932
    %v1065 = vunpack.c.l.b16 %v933
    %v1066 = vunpack.c.l.b16 %v934
    %v1067 = vunpack.c.l.b16 %v935
    %v1068 = vunpack.c.l.b16 %v936
    %v1069 = vunpack.c.l.b16 %v937
    %v1070 = vunpack.c.l.b16 %v938
    %v1071 = vunpack.c.l.b16 %v939
    %v1072 = vunpack.c.l.b16 %v940
    %v1073 = vunpack.c.l.b16 %v941
    %v1074 = vunpack.c.l.b16 %v942
    %v1075 = vunpack.c.l.b16 %v943
    %v1076 = vunpack.c.l.b16 %v944
    %v1077 = vunpack.c.l.b16 %v945
    %v1078 = vunpack.c.l.b16 %v946
    %v1079 = vunpack.c.l.b16 %v947
    %v1080 = vunpack.c.l.b16 %v948
    %v1081 = vunpack.c.l.b16 %v949
    %v1082 = vunpack.c.l.b16 %v950
    %v1083 = vunpack.c.l.b16 %v951
    %v1084 = vunpack.c.l.b16 %v952
    %v1085 = vunpack.c.l.b16 %v953
    %v1086 = vunpack.c.l.b16 %v954
    %v1087 = vunpack.c.l.b16 %v955
    %v1088 = vunpack.c.l.b16 %v956
    %v1089 = vunpack.c.l.b16 %v957
    %v1090 = vunpack.c.l.b16 %v958
    %v1091 = vunpack.c.l.b16 %v959
    %v1092 = vunpack.c.l.b16 %v960
    %v1093 = vunpack.c.l.b16 %v961
    %v1094 = vunpack.c.l.b16 %v962
    %v1095 = vunpack.c.l.b16 %v963
    %v1096 = vunpack.c.l.b16 %v964
    %v1097 = vunpack.c.l.b16 %v965
    %v1098 = vunpack.c.l.b16 %v966
    %v1099 = vunpack.c.l.b16 %v967
    %v1100 = vunpack.c.l.b16 %v968
    %v1101 = vunpack.c.l.b16 %v969
    %v1102 = vunpack.c.l.b16 %v970
    %v1103 = vpack.c.b16 %v1040, %v1039
    %v1104 = vpack.c.b16 %v1042, %v1041
    %v1105 = vpack.c.b16 %v1044, %v1043
    %v1106 = vpack.c.b16 %v1046, %v1045
    %v1107 = vpack.c.b16 %v1048, %v1047
    %v1108 = vpack.c.b16 %v1050, %v1049
    %v1109 = vpack.c.b16 %v1052, %v1051
    %v1110 = vpack.c.b16 %v1054, %v1053
    %v1111 = vpack.c.b16 %v1056, %v1055
    %v1112 = vpack.c.b16 %v1058, %v1057
    %v1113 = vpack.c.b16 %v1060, %v1059
    %v1114 = vpack.c.b16 %v1062, %v1061
    %v1115 = vpack.c.b16 %v1064, %v1063
    %v1116 = vpack.c.b16 %v1066, %v1065
    %v1117 = vpack.c.b16 %v1068, %v1067
    %v1118 = vpack.c.b16 %v1070, %v1069
    %v1119 = vpack.c.b16 %v1072, %v1071
    %v1120 = vpack.c.b16 %v1074, %v1073
    %v1121 = vpack.c.b16 %v1076, %v1075
    %v1122 = vpack.c.b16 %v1078, %v1077
    %v1123 = vpack.c.b16 %v1080, %v1079
    %v1124 = vpack.c.b16 %v1082, %v1081
    %v1125 = vpack.c.b16 %v1084, %v1083
    %v1126 = vpack.c.b16 %v1086, %v1085
    %v1127 = vpack.c.b16 %v1088, %v1087
    %v1128 = vpack.c.b16 %v1090, %v1089
    %v1129 = vpack.c.b16 %v1092, %v1091
    %v1130 = vpack.c.b16 %v1094, %v1093
    %v1131 = vpack.c.b16 %v1096, %v1095
    %v1132 = vpack.c.b16 %v1098, %v1097
    %v1133 = vpack.c.b16 %v1100, %v1099
    %v1134 = vpack.c.b16 %v1102, %v1101
    %1167 = vmatpush.bf16.msra.mxu0 %v1110
    %1168 = vmatpush.bf16.msra.mxu0 %v1109
    %1169 = vmatpush.bf16.msra.mxu0 %v1108
    %1170 = vmatpush.bf16.msra.mxu0 %v1107
    %1171 = vmatpush.bf16.msra.mxu0 %v1106
    %1172 = vmatpush.bf16.msra.mxu0 %v1105
    %1173 = vmatpush.bf16.msra.mxu0 %v1104
    %1174 = vmatpush.bf16.msra.mxu0 %v1103
    %1175 = vmatmul.bf16.gmra.mxu0 %v971
    %v1176 = vpop.f32.mrf.mxu0
    %v1177 = vadd.f32 0.0, %v1176
    %v1178 = vpop.f32.mrf.mxu0
    %1179 = vdwg.mxu0
    %1180 = vmatpush.bf16.msra.mxu0 %v1118
    %1181 = vmatpush.bf16.msra.mxu0 %v1117
    %1182 = vmatpush.bf16.msra.mxu0 %v1116
    %1183 = vmatpush.bf16.msra.mxu0 %v1115
    %1184 = vmatpush.bf16.msra.mxu0 %v1114
    %1185 = vmatpush.bf16.msra.mxu0 %v1113
    %1186 = vmatpush.bf16.msra.mxu0 %v1112
    %1187 = vmatpush.bf16.msra.mxu0 %v1111
    %1188 = vmatmul.bf16.gmra.mxu0 %v972
    %v1189 = vpop.f32.mrf.mxu0
    %v1190 = vadd.f32 %v1177, %v1189
    %v1191 = vpop.f32.mrf.mxu0
    %1192 = vdwg.mxu0
    %1193 = vmatpush.bf16.msra.mxu0 %v1126
    %1194 = vmatpush.bf16.msra.mxu0 %v1125
    %1195 = vmatpush.bf16.msra.mxu0 %v1124
    %1196 = vmatpush.bf16.msra.mxu0 %v1123
    %1197 = vmatpush.bf16.msra.mxu0 %v1122
    %1198 = vmatpush.bf16.msra.mxu0 %v1121
    %1199 = vmatpush.bf16.msra.mxu0 %v1120
    %1200 = vmatpush.bf16.msra.mxu0 %v1119
    %1201 = vmatmul.bf16.gmra.mxu0 %v973
    %v1202 = vpop.f32.mrf.mxu0
    %v1203 = vadd.f32 %v1190, %v1202
    %v1204 = vpop.f32.mrf.mxu0
    %1205 = vdwg.mxu0
    %1206 = vmatpush.bf16.msra.mxu0 %v1134
    %1207 = vmatpush.bf16.msra.mxu0 %v1133
    %1208 = vmatpush.bf16.msra.mxu0 %v1132
    %1209 = vmatpush.bf16.msra.mxu0 %v1131
    %1210 = vmatpush.bf16.msra.mxu0 %v1130
    %1211 = vmatpush.bf16.msra.mxu0 %v1129
    %1212 = vmatpush.bf16.msra.mxu0 %v1128
    %1213 = vmatpush.bf16.msra.mxu0 %v1127
    %1214 = vmatmul.bf16.gmra.mxu0 %v974
    %v1215 = vpop.f32.mrf.mxu0
    %v1216 = vadd.f32 %v1203, %v1215
    %v1217 = vpop.f32.mrf.mxu0
    %1218 = vdwg.mxu0
    %v1219 = vld [vmem:[#allocation11] sm:$0xf]
    %v1220 = vld [vmem:[#allocation11 + $0x4] sm:$0xf]
    %v1221 = vld [vmem:[#allocation11 + $0x8] sm:$0xf]
    %v1222 = vld [vmem:[#allocation11 + $0xc] sm:$0xf]
    %v1223 = vld [vmem:[#allocation11 + $0x10] sm:$0xf]
    %v1224 = vld [vmem:[#allocation11 + $0x14] sm:$0xf]
    %v1225 = vld [vmem:[#allocation11 + $0x18] sm:$0xf]
    %v1226 = vld [vmem:[#allocation11 + $0x1c] sm:$0xf]
    %v1227 = vld [vmem:[#allocation11 + $0x20] sm:$0xf]
    %v1228 = vld [vmem:[#allocation11 + $0x24] sm:$0xf]
    %v1229 = vld [vmem:[#allocation11 + $0x28] sm:$0xf]
    %v1230 = vld [vmem:[#allocation11 + $0x2c] sm:$0xf]
    %v1231 = vld [vmem:[#allocation11 + $0x30] sm:$0xf]
    %v1232 = vld [vmem:[#allocation11 + $0x34] sm:$0xf]
    %v1233 = vld [vmem:[#allocation11 + $0x38] sm:$0xf]
    %v1234 = vld [vmem:[#allocation11 + $0x3c] sm:$0xf]
    %v1235 = vpack.c.bf16 %v1216, %v1216
    %v1236 = vld [vmem:[#allocation13] sm:$0x1]
    %v1238 = vperm.slane %v1236, 0
    %v1256 = vunpack.c.l.b16 %v1219
    %v1257 = vunpack.c.l.b16 %v1220
    %v1258 = vunpack.c.l.b16 %v1221
    %v1259 = vunpack.c.l.b16 %v1222
    %v1260 = vunpack.c.l.b16 %v1223
    %v1261 = vunpack.c.l.b16 %v1224
    %v1262 = vunpack.c.l.b16 %v1225
    %v1263 = vunpack.c.l.b16 %v1226
    %v1264 = vunpack.c.l.b16 %v1227
    %v1265 = vunpack.c.l.b16 %v1228
    %v1266 = vunpack.c.l.b16 %v1229
    %v1267 = vunpack.c.l.b16 %v1230
    %v1268 = vunpack.c.l.b16 %v1231
    %v1269 = vunpack.c.l.b16 %v1232
    %v1270 = vunpack.c.l.b16 %v1233
    %v1271 = vunpack.c.l.b16 %v1234
    %v1272 = vpack.c.b16 %v1257, %v1256
    %v1273 = vpack.c.b16 %v1259, %v1258
    %v1274 = vpack.c.b16 %v1261, %v1260
    %v1275 = vpack.c.b16 %v1263, %v1262
    %v1276 = vpack.c.b16 %v1265, %v1264
    %v1277 = vpack.c.b16 %v1267, %v1266
    %v1278 = vpack.c.b16 %v1269, %v1268
    %v1279 = vpack.c.b16 %v1271, %v1270
    %1288 = vmatpush.bf16.msra.mxu0 %v1279
    %1289 = vmatpush.bf16.msra.mxu0 %v1278
    %1290 = vmatpush.bf16.msra.mxu0 %v1277
    %1291 = vmatpush.bf16.msra.mxu0 %v1276
    %1292 = vmatpush.bf16.msra.mxu0 %v1275
    %1293 = vmatpush.bf16.msra.mxu0 %v1274
    %1294 = vmatpush.bf16.msra.mxu0 %v1273
    %1295 = vmatpush.bf16.msra.mxu0 %v1272
    %1296 = vmatmul.bf16.gmra.mxu0 %v1235
    %v1297 = vpop.f32.mrf.mxu0
    %v1298 = vadd.f32 %v1238, %v1297
    %v1299 = vpop.f32.mrf.mxu0
    %1300 = vdwg.mxu0
    %v1301 = vld [vmem:[#allocation14] sm:$0xf]
    %v1302 = vld [vmem:[#allocation14 + $0x4] sm:$0xf]
    %v1303 = vld [vmem:[#allocation14 + $0x8] sm:$0xf]
    %v1304 = vld [vmem:[#allocation14 + $0xc] sm:$0xf]
    %v1305 = vld [vmem:[#allocation14 + $0x10] sm:$0xf]
    %v1306 = vld [vmem:[#allocation14 + $0x14] sm:$0xf]
    %v1307 = vld [vmem:[#allocation14 + $0x18] sm:$0xf]
    %v1308 = vld [vmem:[#allocation14 + $0x1c] sm:$0xf]
    %v1309 = vld [vmem:[#allocation14 + $0x20] sm:$0xf]
    %v1310 = vld [vmem:[#allocation14 + $0x24] sm:$0xf]
    %v1311 = vld [vmem:[#allocation14 + $0x28] sm:$0xf]
    %v1312 = vld [vmem:[#allocation14 + $0x2c] sm:$0xf]
    %v1313 = vld [vmem:[#allocation14 + $0x30] sm:$0xf]
    %v1314 = vld [vmem:[#allocation14 + $0x34] sm:$0xf]
    %v1315 = vld [vmem:[#allocation14 + $0x38] sm:$0xf]
    %v1316 = vld [vmem:[#allocation14 + $0x3c] sm:$0xf]
    %v1317 = vpack.c.bf16 %v615, %v615
    %v1318 = vld [vmem:[#allocation16] sm:$0x1]
    %v1320 = vperm.slane %v1318, 0
    %v1338 = vunpack.c.l.b16 %v1301
    %v1339 = vunpack.c.l.b16 %v1302
    %v1340 = vunpack.c.l.b16 %v1303
    %v1341 = vunpack.c.l.b16 %v1304
    %v1342 = vunpack.c.l.b16 %v1305
    %v1343 = vunpack.c.l.b16 %v1306
    %v1344 = vunpack.c.l.b16 %v1307
    %v1345 = vunpack.c.l.b16 %v1308
    %v1346 = vunpack.c.l.b16 %v1309
    %v1347 = vunpack.c.l.b16 %v1310
    %v1348 = vunpack.c.l.b16 %v1311
    %v1349 = vunpack.c.l.b16 %v1312
    %v1350 = vunpack.c.l.b16 %v1313
    %v1351 = vunpack.c.l.b16 %v1314
    %v1352 = vunpack.c.l.b16 %v1315
    %v1353 = vunpack.c.l.b16 %v1316
    %v1354 = vpack.c.b16 %v1339, %v1338
    %v1355 = vpack.c.b16 %v1341, %v1340
    %v1356 = vpack.c.b16 %v1343, %v1342
    %v1357 = vpack.c.b16 %v1345, %v1344
    %v1358 = vpack.c.b16 %v1347, %v1346
    %v1359 = vpack.c.b16 %v1349, %v1348
    %v1360 = vpack.c.b16 %v1351, %v1350
    %v1361 = vpack.c.b16 %v1353, %v1352
    %1370 = vmatpush.bf16.msra.mxu0 %v1361
    %1371 = vmatpush.bf16.msra.mxu0 %v1360
    %1372 = vmatpush.bf16.msra.mxu0 %v1359
    %1373 = vmatpush.bf16.msra.mxu0 %v1358
    %1374 = vmatpush.bf16.msra.mxu0 %v1357
    %1375 = vmatpush.bf16.msra.mxu0 %v1356
    %1376 = vmatpush.bf16.msra.mxu0 %v1355
    %1377 = vmatpush.bf16.msra.mxu0 %v1354
    %1378 = vmatmul.bf16.gmra.mxu0 %v1317
    %v1379 = vpop.f32.mrf.mxu0
    %v1380 = vadd.f32 %v1320, %v1379
    %v1381 = vpop.f32.mrf.mxu0
    %1382 = vdwg.mxu0
    %v1383 = vld [vmem:[#allocation17] sm:$0xff]
    %v1384 = vld [vmem:[#allocation17 + $0x8] sm:$0xff]
    %v1385 = vld [vmem:[#allocation17 + $0x10] sm:$0xff]
    %v1386 = vld [vmem:[#allocation17 + $0x18] sm:$0xff]
    %v1387 = vld [vmem:[#allocation17 + $0x20] sm:$0xff]
    %v1388 = vld [vmem:[#allocation17 + $0x28] sm:$0xff]
    %v1389 = vld [vmem:[#allocation17 + $0x30] sm:$0xff]
    %v1390 = vld [vmem:[#allocation17 + $0x38] sm:$0xff]
    %v1391 = vld [vmem:[#allocation17 + $0x40] sm:$0xff]
    %v1392 = vld [vmem:[#allocation17 + $0x48] sm:$0xff]
    %v1393 = vld [vmem:[#allocation17 + $0x50] sm:$0xff]
    %v1394 = vld [vmem:[#allocation17 + $0x58] sm:$0xff]
    %v1395 = vld [vmem:[#allocation17 + $0x60] sm:$0xff]
    %v1396 = vld [vmem:[#allocation17 + $0x68] sm:$0xff]
    %v1397 = vld [vmem:[#allocation17 + $0x70] sm:$0xff]
    %v1398 = vld [vmem:[#allocation17 + $0x78] sm:$0xff]
    %v1399 = vpack.c.bf16 %v571, %v571
    %v1400 = vld [vmem:[#allocation17 + $0x80] sm:$0xff]
    %v1401 = vld [vmem:[#allocation17 + $0x88] sm:$0xff]
    %v1402 = vld [vmem:[#allocation17 + $0x90] sm:$0xff]
    %v1403 = vld [vmem:[#allocation17 + $0x98] sm:$0xff]
    %v1404 = vld [vmem:[#allocation17 + $0xa0] sm:$0xff]
    %v1405 = vld [vmem:[#allocation17 + $0xa8] sm:$0xff]
    %v1406 = vld [vmem:[#allocation17 + $0xb0] sm:$0xff]
    %v1407 = vld [vmem:[#allocation17 + $0xb8] sm:$0xff]
    %v1408 = vld [vmem:[#allocation17 + $0xc0] sm:$0xff]
    %v1409 = vld [vmem:[#allocation17 + $0xc8] sm:$0xff]
    %v1410 = vld [vmem:[#allocation17 + $0xd0] sm:$0xff]
    %v1411 = vld [vmem:[#allocation17 + $0xd8] sm:$0xff]
    %v1412 = vld [vmem:[#allocation17 + $0xe0] sm:$0xff]
    %v1413 = vld [vmem:[#allocation17 + $0xe8] sm:$0xff]
    %v1414 = vld [vmem:[#allocation17 + $0xf0] sm:$0xff]
    %v1415 = vld [vmem:[#allocation17 + $0xf8] sm:$0xff]
    %v1416 = vpack.c.bf16 %v1380, %v1380
    %v1433 = vunpack.c.l.b16 %v1400
    %v1434 = vunpack.c.h.b16 %v1400
    %v1435 = vunpack.c.l.b16 %v1401
    %v1436 = vunpack.c.h.b16 %v1401
    %v1437 = vunpack.c.l.b16 %v1402
    %v1438 = vunpack.c.h.b16 %v1402
    %v1439 = vunpack.c.l.b16 %v1403
    %v1440 = vunpack.c.h.b16 %v1403
    %v1441 = vunpack.c.l.b16 %v1404
    %v1442 = vunpack.c.h.b16 %v1404
    %v1443 = vunpack.c.l.b16 %v1405
    %v1444 = vunpack.c.h.b16 %v1405
    %v1445 = vunpack.c.l.b16 %v1406
    %v1446 = vunpack.c.h.b16 %v1406
    %v1447 = vunpack.c.l.b16 %v1407
    %v1448 = vunpack.c.h.b16 %v1407
    %v1449 = vunpack.c.l.b16 %v1408
    %v1450 = vunpack.c.h.b16 %v1408
    %v1451 = vunpack.c.l.b16 %v1409
    %v1452 = vunpack.c.h.b16 %v1409
    %v1453 = vunpack.c.l.b16 %v1410
    %v1454 = vunpack.c.h.b16 %v1410
    %v1455 = vunpack.c.l.b16 %v1411
    %v1456 = vunpack.c.h.b16 %v1411
    %v1457 = vunpack.c.l.b16 %v1412
    %v1458 = vunpack.c.h.b16 %v1412
    %v1459 = vunpack.c.l.b16 %v1413
    %v1460 = vunpack.c.h.b16 %v1413
    %v1461 = vunpack.c.l.b16 %v1414
    %v1462 = vunpack.c.h.b16 %v1414
    %v1463 = vunpack.c.l.b16 %v1415
    %v1464 = vunpack.c.h.b16 %v1415
    %v1465 = vpack.c.b16 %v1435, %v1433
    %v1466 = vpack.c.b16 %v1436, %v1434
    %v1467 = vpack.c.b16 %v1439, %v1437
    %v1468 = vpack.c.b16 %v1440, %v1438
    %v1469 = vpack.c.b16 %v1443, %v1441
    %v1470 = vpack.c.b16 %v1444, %v1442
    %v1471 = vpack.c.b16 %v1447, %v1445
    %v1472 = vpack.c.b16 %v1448, %v1446
    %v1473 = vpack.c.b16 %v1451, %v1449
    %v1474 = vpack.c.b16 %v1452, %v1450
    %v1475 = vpack.c.b16 %v1455, %v1453
    %v1476 = vpack.c.b16 %v1456, %v1454
    %v1477 = vpack.c.b16 %v1459, %v1457
    %v1478 = vpack.c.b16 %v1460, %v1458
    %v1479 = vpack.c.b16 %v1463, %v1461
    %v1480 = vpack.c.b16 %v1464, %v1462
    %1497 = vmatpush.bf16.msra.mxu0 %v1479
    %1498 = vmatpush.bf16.msra.mxu0 %v1477
    %1499 = vmatpush.bf16.msra.mxu0 %v1475
    %1500 = vmatpush.bf16.msra.mxu0 %v1473
    %1501 = vmatpush.bf16.msra.mxu0 %v1471
    %1502 = vmatpush.bf16.msra.mxu0 %v1469
    %1503 = vmatpush.bf16.msra.mxu0 %v1467
    %1504 = vmatpush.bf16.msra.mxu0 %v1465
    %1505 = vmatmul.bf16.gmra.mxu0 %v1416
    %v1506 = vpop.f32.mrf.mxu0
    %v1507 = vadd.f32 0.0, %v1506
    %v1508 = vpop.f32.mrf.mxu0
    %1509 = vdwg.mxu0
    %1510 = vmatpush.bf16.msra.mxu0 %v1480
    %1511 = vmatpush.bf16.msra.mxu0 %v1478
    %1512 = vmatpush.bf16.msra.mxu0 %v1476
    %1513 = vmatpush.bf16.msra.mxu0 %v1474
    %1514 = vmatpush.bf16.msra.mxu0 %v1472
    %1515 = vmatpush.bf16.msra.mxu0 %v1470
    %1516 = vmatpush.bf16.msra.mxu0 %v1468
    %1517 = vmatpush.bf16.msra.mxu0 %v1466
    %1518 = vmatmul.bf16.gmra.mxu0 %v1416
    %v1519 = vpop.f32.mrf.mxu0
    %v1520 = vadd.f32 0.0, %v1519
    %v1521 = vpop.f32.mrf.mxu0
    %1522 = vdwg.mxu0
    %v1539 = vunpack.c.l.b16 %v1383
    %v1540 = vunpack.c.h.b16 %v1383
    %v1541 = vunpack.c.l.b16 %v1384
    %v1542 = vunpack.c.h.b16 %v1384
    %v1543 = vunpack.c.l.b16 %v1385
    %v1544 = vunpack.c.h.b16 %v1385
    %v1545 = vunpack.c.l.b16 %v1386
    %v1546 = vunpack.c.h.b16 %v1386
    %v1547 = vunpack.c.l.b16 %v1387
    %v1548 = vunpack.c.h.b16 %v1387
    %v1549 = vunpack.c.l.b16 %v1388
    %v1550 = vunpack.c.h.b16 %v1388
    %v1551 = vunpack.c.l.b16 %v1389
    %v1552 = vunpack.c.h.b16 %v1389
    %v1553 = vunpack.c.l.b16 %v1390
    %v1554 = vunpack.c.h.b16 %v1390
    %v1555 = vunpack.c.l.b16 %v1391
    %v1556 = vunpack.c.h.b16 %v1391
    %v1557 = vunpack.c.l.b16 %v1392
    %v1558 = vunpack.c.h.b16 %v1392
    %v1559 = vunpack.c.l.b16 %v1393
    %v1560 = vunpack.c.h.b16 %v1393
    %v1561 = vunpack.c.l.b16 %v1394
    %v1562 = vunpack.c.h.b16 %v1394
    %v1563 = vunpack.c.l.b16 %v1395
    %v1564 = vunpack.c.h.b16 %v1395
    %v1565 = vunpack.c.l.b16 %v1396
    %v1566 = vunpack.c.h.b16 %v1396
    %v1567 = vunpack.c.l.b16 %v1397
    %v1568 = vunpack.c.h.b16 %v1397
    %v1569 = vunpack.c.l.b16 %v1398
    %v1570 = vunpack.c.h.b16 %v1398
    %v1571 = vpack.c.b16 %v1541, %v1539
    %v1572 = vpack.c.b16 %v1542, %v1540
    %v1573 = vpack.c.b16 %v1545, %v1543
    %v1574 = vpack.c.b16 %v1546, %v1544
    %v1575 = vpack.c.b16 %v1549, %v1547
    %v1576 = vpack.c.b16 %v1550, %v1548
    %v1577 = vpack.c.b16 %v1553, %v1551
    %v1578 = vpack.c.b16 %v1554, %v1552
    %v1579 = vpack.c.b16 %v1557, %v1555
    %v1580 = vpack.c.b16 %v1558, %v1556
    %v1581 = vpack.c.b16 %v1561, %v1559
    %v1582 = vpack.c.b16 %v1562, %v1560
    %v1583 = vpack.c.b16 %v1565, %v1563
    %v1584 = vpack.c.b16 %v1566, %v1564
    %v1585 = vpack.c.b16 %v1569, %v1567
    %v1586 = vpack.c.b16 %v1570, %v1568
    %1603 = vmatpush.bf16.msra.mxu0 %v1585
    %1604 = vmatpush.bf16.msra.mxu0 %v1583
    %1605 = vmatpush.bf16.msra.mxu0 %v1581
    %1606 = vmatpush.bf16.msra.mxu0 %v1579
    %1607 = vmatpush.bf16.msra.mxu0 %v1577
    %1608 = vmatpush.bf16.msra.mxu0 %v1575
    %1609 = vmatpush.bf16.msra.mxu0 %v1573
    %1610 = vmatpush.bf16.msra.mxu0 %v1571
    %1611 = vmatmul.bf16.gmra.mxu0 %v1399
    %v1612 = vpop.f32.mrf.mxu0
    %v1613 = vadd.f32 %v1507, %v1612
    %v1614 = vpop.f32.mrf.mxu0
    %1615 = vdwg.mxu0
    %1616 = vmatpush.bf16.msra.mxu0 %v1586
    %1617 = vmatpush.bf16.msra.mxu0 %v1584
    %1618 = vmatpush.bf16.msra.mxu0 %v1582
    %1619 = vmatpush.bf16.msra.mxu0 %v1580
    %1620 = vmatpush.bf16.msra.mxu0 %v1578
    %1621 = vmatpush.bf16.msra.mxu0 %v1576
    %1622 = vmatpush.bf16.msra.mxu0 %v1574
    %1623 = vmatpush.bf16.msra.mxu0 %v1572
    %1624 = vmatmul.bf16.gmra.mxu0 %v1399
    %v1625 = vpop.f32.mrf.mxu0
    %v1626 = vadd.f32 %v1520, %v1625
    %v1627 = vpop.f32.mrf.mxu0
    %1628 = vdwg.mxu0
    %v1629 = vld [vmem:[#allocation17 + $0x100] sm:$0xff]
    %v1630 = vld [vmem:[#allocation17 + $0x108] sm:$0xff]
    %v1631 = vld [vmem:[#allocation17 + $0x110] sm:$0xff]
    %v1632 = vld [vmem:[#allocation17 + $0x118] sm:$0xff]
    %v1633 = vld [vmem:[#allocation17 + $0x120] sm:$0xff]
    %v1634 = vld [vmem:[#allocation17 + $0x128] sm:$0xff]
    %v1635 = vld [vmem:[#allocation17 + $0x130] sm:$0xff]
    %v1636 = vld [vmem:[#allocation17 + $0x138] sm:$0xff]
    %v1637 = vld [vmem:[#allocation17 + $0x140] sm:$0xff]
    %v1638 = vld [vmem:[#allocation17 + $0x148] sm:$0xff]
    %v1639 = vld [vmem:[#allocation17 + $0x150] sm:$0xff]
    %v1640 = vld [vmem:[#allocation17 + $0x158] sm:$0xff]
    %v1641 = vld [vmem:[#allocation17 + $0x160] sm:$0xff]
    %v1642 = vld [vmem:[#allocation17 + $0x168] sm:$0xff]
    %v1643 = vld [vmem:[#allocation17 + $0x170] sm:$0xff]
    %v1644 = vld [vmem:[#allocation17 + $0x178] sm:$0xff]
    %v1645 = vpack.c.bf16 %v1298, %v1298
    %v1662 = vunpack.c.l.b16 %v1629
    %v1663 = vunpack.c.h.b16 %v1629
    %v1664 = vunpack.c.l.b16 %v1630
    %v1665 = vunpack.c.h.b16 %v1630
    %v1666 = vunpack.c.l.b16 %v1631
    %v1667 = vunpack.c.h.b16 %v1631
    %v1668 = vunpack.c.l.b16 %v1632
    %v1669 = vunpack.c.h.b16 %v1632
    %v1670 = vunpack.c.l.b16 %v1633
    %v1671 = vunpack.c.h.b16 %v1633
    %v1672 = vunpack.c.l.b16 %v1634
    %v1673 = vunpack.c.h.b16 %v1634
    %v1674 = vunpack.c.l.b16 %v1635
    %v1675 = vunpack.c.h.b16 %v1635
    %v1676 = vunpack.c.l.b16 %v1636
    %v1677 = vunpack.c.h.b16 %v1636
    %v1678 = vunpack.c.l.b16 %v1637
    %v1679 = vunpack.c.h.b16 %v1637
    %v1680 = vunpack.c.l.b16 %v1638
    %v1681 = vunpack.c.h.b16 %v1638
    %v1682 = vunpack.c.l.b16 %v1639
    %v1683 = vunpack.c.h.b16 %v1639
    %v1684 = vunpack.c.l.b16 %v1640
    %v1685 = vunpack.c.h.b16 %v1640
    %v1686 = vunpack.c.l.b16 %v1641
    %v1687 = vunpack.c.h.b16 %v1641
    %v1688 = vunpack.c.l.b16 %v1642
    %v1689 = vunpack.c.h.b16 %v1642
    %v1690 = vunpack.c.l.b16 %v1643
    %v1691 = vunpack.c.h.b16 %v1643
    %v1692 = vunpack.c.l.b16 %v1644
    %v1693 = vunpack.c.h.b16 %v1644
    %v1694 = vpack.c.b16 %v1664, %v1662
    %v1695 = vpack.c.b16 %v1665, %v1663
    %v1696 = vpack.c.b16 %v1668, %v1666
    %v1697 = vpack.c.b16 %v1669, %v1667
    %v1698 = vpack.c.b16 %v1672, %v1670
    %v1699 = vpack.c.b16 %v1673, %v1671
    %v1700 = vpack.c.b16 %v1676, %v1674
    %v1701 = vpack.c.b16 %v1677, %v1675
    %v1702 = vpack.c.b16 %v1680, %v1678
    %v1703 = vpack.c.b16 %v1681, %v1679
    %v1704 = vpack.c.b16 %v1684, %v1682
    %v1705 = vpack.c.b16 %v1685, %v1683
    %v1706 = vpack.c.b16 %v1688, %v1686
    %v1707 = vpack.c.b16 %v1689, %v1687
    %v1708 = vpack.c.b16 %v1692, %v1690
    %v1709 = vpack.c.b16 %v1693, %v1691
    %1726 = vmatpush.bf16.msra.mxu0 %v1708
    %1727 = vmatpush.bf16.msra.mxu0 %v1706
    %1728 = vmatpush.bf16.msra.mxu0 %v1704
    %1729 = vmatpush.bf16.msra.mxu0 %v1702
    %1730 = vmatpush.bf16.msra.mxu0 %v1700
    %1731 = vmatpush.bf16.msra.mxu0 %v1698
    %1732 = vmatpush.bf16.msra.mxu0 %v1696
    %1733 = vmatpush.bf16.msra.mxu0 %v1694
    %1734 = vmatmul.bf16.gmra.mxu0 %v1645
    %v1735 = vpop.f32.mrf.mxu0
    %v1736 = vadd.f32 0.0, %v1735
    %v1737 = vpop.f32.mrf.mxu0
    %1738 = vdwg.mxu0
    %1739 = vmatpush.bf16.msra.mxu0 %v1709
    %1740 = vmatpush.bf16.msra.mxu0 %v1707
    %1741 = vmatpush.bf16.msra.mxu0 %v1705
    %1742 = vmatpush.bf16.msra.mxu0 %v1703
    %1743 = vmatpush.bf16.msra.mxu0 %v1701
    %1744 = vmatpush.bf16.msra.mxu0 %v1699
    %1745 = vmatpush.bf16.msra.mxu0 %v1697
    %1746 = vmatpush.bf16.msra.mxu0 %v1695
    %1747 = vmatmul.bf16.gmra.mxu0 %v1645
    %v1748 = vpop.f32.mrf.mxu0
    %v1749 = vadd.f32 0.0, %v1748
    %v1750 = vpop.f32.mrf.mxu0
    %1751 = vdwg.mxu0
    %v1752 = vadd.f32 %v1613, %v1736
    %v1753 = vadd.f32 %v1626, %v1749
    %v1754 = vld [vmem:[%s11] sm:$0x3]
    %v1756 = vperm.slane %v1754, 0
    %v1757 = vperm.slane %v1754, 1
    %v1760 = vadd.f32 %v1752, %v1756
    %v1761 = vadd.f32 %v1753, %v1757
    %vm1762 = vcmask 23552
    %v1763 = vsel %vm1762, %v1761, -inf
    %1764 = vmax.xlane.f32.xlu0 %v1763
    %v1765 = vpop.xlane.xlu0 %1764
    %v1766 = vsub.f32 %v1761, %v1765
    %v1767 = vmul.f32 %v1766, 1.442695
    %v1768 = vpow.pop %v1767
    %v1769 = vsel %vm1762, %v1768, 0.0
    %1770 = vadd.xlane.f32.xlu0 %v1769
    %v1771 = vpop.xlane.xlu0 %1770
    %v1772 = vrcp.pop %v1771
    %v1773 = vmul.f32 %v1771, %v1772
    %v1774 = vsub.f32 1.0, %v1773
    %v1775 = vmul.f32 %v1772, %v1774
    %v1776 = vadd.f32 %v1772, %v1775
    %vm1777 = vweird.f32 %v1771
    %vm1778 = vweird.f32 %v1772
    %vm1779 = vmor %vm1777, %vm1778
    %v1780 = vsel %vm1779, %v1772, %v1776
    %v1781 = vand.u32 2147483647, %v1771
    %vm1782 = vcmp.eq.f32.partialorder %v1781, 8.507059e+37
    %v1783 = vand.u32 %v1771, 2147483648
    %v1784 = vor.u32 1.1754944e-38, %v1783
    %v1785 = vsel %vm1782, %v1784, %v1780
    %v1786 = vmul.f32 %v1768, %v1785
    %v1787 = vlaneseq
    %v1788 = vand.u32 %v1787, 127
    %vm1789 = vcmp.lt.s32.totalorder %v1788, 32
    %v1790 = vsel %vm1789, %v1760, 0.0
    %1791 = vadd.xlane.f32.xlu0 %v1790
    %v1792 = vpop.xlane.xlu0 %1791
    %v1793 = vmul.f32 %v1792, 0.03125
    %v1794 = vsub.f32 %v1790, %v1793
    %v1795 = vsel %vm1789, %v1794, 0.0
    %v1796 = vmul.f32 %v1795, %v1795
    %1797 = vadd.xlane.f32.xlu0 %v1796
    %v1798 = vpop.xlane.xlu0 %1797
    %v1799 = vmul.f32 %v1798, 0.03125
    %v1800 = vadd.f32 %v1799, 1e-05
    %v1801 = vrsqrt.pop %v1800
    %v1802 = vmul.f32 %v1801, %v1800
    %v1803 = vmul.f32 %v1802, %v1801
    %v1804 = vmul.f32 0.5, %v1803
    %v1805 = vsub.f32 1.5, %v1804
    %v1806 = vmul.f32 %v1801, %v1805
    %vm1807 = vweird.f32 %v1800
    %vm1808 = vweird.f32 %v1801
    %vm1809 = vmor %vm1807, %vm1808
    %v1810 = vsel %vm1809, %v1801, %v1806
    %v1811 = vmul.f32 %v1795, %v1810
    %v1812 = vld [vmem:[%s12] sm:$0x1]
    %v1814 = vperm.slane %v1812, 0
    %v1816 = vmul.f32 %v1811, %v1814
    %v1817 = vld [vmem:[%s13] sm:$0x1]
    %v1819 = vperm.slane %v1817, 0
    %v1821 = vadd.f32 %v1816, %v1819
    %v1822 = vld [vmem:[#allocation19] sm:$0xff]
    %v1823 = vld [vmem:[#allocation19 + $0x8] sm:$0xff]
    %v1824 = vld [vmem:[#allocation19 + $0x10] sm:$0xff]
    %v1825 = vld [vmem:[#allocation19 + $0x18] sm:$0xff]
    %v1826 = vld [vmem:[#allocation19 + $0x20] sm:$0xff]
    %v1827 = vld [vmem:[#allocation19 + $0x28] sm:$0xff]
    %v1828 = vld [vmem:[#allocation19 + $0x30] sm:$0xff]
    %v1829 = vld [vmem:[#allocation19 + $0x38] sm:$0xff]
    %v1830 = vld [vmem:[#allocation19 + $0x40] sm:$0xff]
    %v1831 = vld [vmem:[#allocation19 + $0x48] sm:$0xff]
    %v1832 = vld [vmem:[#allocation19 + $0x50] sm:$0xff]
    %v1833 = vld [vmem:[#allocation19 + $0x58] sm:$0xff]
    %v1834 = vld [vmem:[#allocation19 + $0x60] sm:$0xff]
    %v1835 = vld [vmem:[#allocation19 + $0x68] sm:$0xff]
    %v1836 = vld [vmem:[#allocation19 + $0x70] sm:$0xff]
    %v1837 = vld [vmem:[#allocation19 + $0x78] sm:$0xff]
    %v1838 = vpack.c.bf16 %v1821, %v1821
    %v1839 = vld [vmem:[%s15] sm:$0x3]
    %v1841 = vperm.slane %v1839, 0
    %v1842 = vperm.slane %v1839, 1
    %v1861 = vunpack.c.l.b16 %v1822
    %v1862 = vunpack.c.h.b16 %v1822
    %v1863 = vunpack.c.l.b16 %v1823
    %v1864 = vunpack.c.h.b16 %v1823
    %v1865 = vunpack.c.l.b16 %v1824
    %v1866 = vunpack.c.h.b16 %v1824
    %v1867 = vunpack.c.l.b16 %v1825
    %v1868 = vunpack.c.h.b16 %v1825
    %v1869 = vunpack.c.l.b16 %v1826
    %v1870 = vunpack.c.h.b16 %v1826
    %v1871 = vunpack.c.l.b16 %v1827
    %v1872 = vunpack.c.h.b16 %v1827
    %v1873 = vunpack.c.l.b16 %v1828
    %v1874 = vunpack.c.h.b16 %v1828
    %v1875 = vunpack.c.l.b16 %v1829
    %v1876 = vunpack.c.h.b16 %v1829
    %v1877 = vunpack.c.l.b16 %v1830
    %v1878 = vunpack.c.h.b16 %v1830
    %v1879 = vunpack.c.l.b16 %v1831
    %v1880 = vunpack.c.h.b16 %v1831
    %v1881 = vunpack.c.l.b16 %v1832
    %v1882 = vunpack.c.h.b16 %v1832
    %v1883 = vunpack.c.l.b16 %v1833
    %v1884 = vunpack.c.h.b16 %v1833
    %v1885 = vunpack.c.l.b16 %v1834
    %v1886 = vunpack.c.h.b16 %v1834
    %v1887 = vunpack.c.l.b16 %v1835
    %v1888 = vunpack.c.h.b16 %v1835
    %v1889 = vunpack.c.l.b16 %v1836
    %v1890 = vunpack.c.h.b16 %v1836
    %v1891 = vunpack.c.l.b16 %v1837
    %v1892 = vunpack.c.h.b16 %v1837
    %v1893 = vpack.c.b16 %v1863, %v1861
    %v1894 = vpack.c.b16 %v1864, %v1862
    %v1895 = vpack.c.b16 %v1867, %v1865
    %v1896 = vpack.c.b16 %v1868, %v1866
    %v1897 = vpack.c.b16 %v1871, %v1869
    %v1898 = vpack.c.b16 %v1872, %v1870
    %v1899 = vpack.c.b16 %v1875, %v1873
    %v1900 = vpack.c.b16 %v1876, %v1874
    %v1901 = vpack.c.b16 %v1879, %v1877
    %v1902 = vpack.c.b16 %v1880, %v1878
    %v1903 = vpack.c.b16 %v1883, %v1881
    %v1904 = vpack.c.b16 %v1884, %v1882
    %v1905 = vpack.c.b16 %v1887, %v1885
    %v1906 = vpack.c.b16 %v1888, %v1886
    %v1907 = vpack.c.b16 %v1891, %v1889
    %v1908 = vpack.c.b16 %v1892, %v1890
    %1925 = vmatpush.bf16.msra.mxu0 %v1907
    %1926 = vmatpush.bf16.msra.mxu0 %v1905
    %1927 = vmatpush.bf16.msra.mxu0 %v1903
    %1928 = vmatpush.bf16.msra.mxu0 %v1901
    %1929 = vmatpush.bf16.msra.mxu0 %v1899
    %1930 = vmatpush.bf16.msra.mxu0 %v1897
    %1931 = vmatpush.bf16.msra.mxu0 %v1895
    %1932 = vmatpush.bf16.msra.mxu0 %v1893
    %1933 = vmatmul.bf16.gmra.mxu0 %v1838
    %v1934 = vpop.f32.mrf.mxu0
    %v1935 = vadd.f32 %v1841, %v1934
    %v1936 = vpop.f32.mrf.mxu0
    %1937 = vdwg.mxu0
    %1938 = vmatpush.bf16.msra.mxu0 %v1908
    %1939 = vmatpush.bf16.msra.mxu0 %v1906
    %1940 = vmatpush.bf16.msra.mxu0 %v1904
    %1941 = vmatpush.bf16.msra.mxu0 %v1902
    %1942 = vmatpush.bf16.msra.mxu0 %v1900
    %1943 = vmatpush.bf16.msra.mxu0 %v1898
    %1944 = vmatpush.bf16.msra.mxu0 %v1896
    %1945 = vmatpush.bf16.msra.mxu0 %v1894
    %1946 = vmatmul.bf16.gmra.mxu0 %v1838
    %v1947 = vpop.f32.mrf.mxu0
    %v1948 = vadd.f32 %v1842, %v1947
    %v1949 = vpop.f32.mrf.mxu0
    %1950 = vdwg.mxu0
    %v1951 = vxor.u32 %v1935, 2147483648
    %v1952 = vmul.f32 %v1951, 1.442695
    %v1953 = vpow.pop %v1952
    %v1954 = vadd.f32 %v1953, 1.0
    %v1955 = vrcp.pop %v1954
    %v1956 = vmul.f32 %v1954, %v1955
    %v1957 = vsub.f32 1.0, %v1956
    %v1958 = vmul.f32 %v1955, %v1957
    %v1959 = vadd.f32 %v1955, %v1958
    %vm1960 = vweird.f32 %v1954
    %vm1961 = vweird.f32 %v1955
    %vm1962 = vmor %vm1960, %vm1961
    %v1963 = vsel %vm1962, %v1955, %v1959
    %v1964 = vand.u32 2147483647, %v1954
    %vm1965 = vcmp.eq.f32.partialorder %v1964, 8.507059e+37
    %v1966 = vand.u32 %v1954, 2147483648
    %v1967 = vor.u32 1.1754944e-38, %v1966
    %v1968 = vsel %vm1965, %v1967, %v1963
    %v1969 = vmul.f32 1.0, %v1968
    %v1970 = vmul.f32 %v1935, %v1969
    %v1971 = vmul.f32 %v1970, %v1948
    %v1972 = vld [vmem:[#allocation20] sm:$0xf]
    %v1973 = vld [vmem:[#allocation20 + $0x4] sm:$0xf]
    %v1974 = vld [vmem:[#allocation20 + $0x8] sm:$0xf]
    %v1975 = vld [vmem:[#allocation20 + $0xc] sm:$0xf]
    %v1976 = vld [vmem:[#allocation20 + $0x10] sm:$0xf]
    %v1977 = vld [vmem:[#allocation20 + $0x14] sm:$0xf]
    %v1978 = vld [vmem:[#allocation20 + $0x18] sm:$0xf]
    %v1979 = vld [vmem:[#allocation20 + $0x1c] sm:$0xf]
    %v1980 = vld [vmem:[#allocation20 + $0x20] sm:$0xf]
    %v1981 = vld [vmem:[#allocation20 + $0x24] sm:$0xf]
    %v1982 = vld [vmem:[#allocation20 + $0x28] sm:$0xf]
    %v1983 = vld [vmem:[#allocation20 + $0x2c] sm:$0xf]
    %v1984 = vld [vmem:[#allocation20 + $0x30] sm:$0xf]
    %v1985 = vld [vmem:[#allocation20 + $0x34] sm:$0xf]
    %v1986 = vld [vmem:[#allocation20 + $0x38] sm:$0xf]
    %v1987 = vld [vmem:[#allocation20 + $0x3c] sm:$0xf]
    %v1988 = vpack.c.bf16 %v1971, %v1971
    %v1989 = vld [vmem:[%s17] sm:$0x1]
    %v1991 = vperm.slane %v1989, 0
    %v2009 = vunpack.c.l.b16 %v1972
    %v2010 = vunpack.c.l.b16 %v1973
    %v2011 = vunpack.c.l.b16 %v1974
    %v2012 = vunpack.c.l.b16 %v1975
    %v2013 = vunpack.c.l.b16 %v1976
    %v2014 = vunpack.c.l.b16 %v1977
    %v2015 = vunpack.c.l.b16 %v1978
    %v2016 = vunpack.c.l.b16 %v1979
    %v2017 = vunpack.c.l.b16 %v1980
    %v2018 = vunpack.c.l.b16 %v1981
    %v2019 = vunpack.c.l.b16 %v1982
    %v2020 = vunpack.c.l.b16 %v1983
    %v2021 = vunpack.c.l.b16 %v1984
    %v2022 = vunpack.c.l.b16 %v1985
    %v2023 = vunpack.c.l.b16 %v1986
    %v2024 = vunpack.c.l.b16 %v1987
    %v2025 = vpack.c.b16 %v2010, %v2009
    %v2026 = vpack.c.b16 %v2012, %v2011
    %v2027 = vpack.c.b16 %v2014, %v2013
    %v2028 = vpack.c.b16 %v2016, %v2015
    %v2029 = vpack.c.b16 %v2018, %v2017
    %v2030 = vpack.c.b16 %v2020, %v2019
    %v2031 = vpack.c.b16 %v2022, %v2021
    %v2032 = vpack.c.b16 %v2024, %v2023
    %2041 = vmatpush.bf16.msra.mxu0 %v2032
    %2042 = vmatpush.bf16.msra.mxu0 %v2031
    %2043 = vmatpush.bf16.msra.mxu0 %v2030
    %2044 = vmatpush.bf16.msra.mxu0 %v2029
    %2045 = vmatpush.bf16.msra.mxu0 %v2028
    %2046 = vmatpush.bf16.msra.mxu0 %v2027
    %2047 = vmatpush.bf16.msra.mxu0 %v2026
    %2048 = vmatpush.bf16.msra.mxu0 %v2025
    %2049 = vmatmul.bf16.gmra.mxu0 %v1988
    %v2050 = vpop.f32.mrf.mxu0
    %v2051 = vadd.f32 %v1991, %v2050
    %v2052 = vpop.f32.mrf.mxu0
    %2053 = vdwg.mxu0
    %2055 = vset.pattern.permute.xlu0 0
    %2056 = vperm.xlu0 %2055, %v1786
    %v2057 = vpop.permute.xlu0 %2056
    %v2059 = vmul.f32 %v2057, %v571
    %2060 = vset.pattern.permute.xlu0 1
    %2061 = vperm.xlu0 %2060, %v1786
    %v2062 = vpop.permute.xlu0 %2061
    %v2064 = vmul.f32 %v2062, %v1380
    %v2065 = vadd.f32 %v2059, %v2064
    %2066 = vset.pattern.permute.xlu0 2
    %2067 = vperm.xlu0 %2066, %v1786
    %v2068 = vpop.permute.xlu0 %2067
    %v2070 = vmul.f32 %v2068, %v2051
    %v2071 = vadd.f32 %v2065, %v2070
    %2072 = vst [vmem:[#allocation22] sm:$0xff] %v2071
    // Predicated region
    $region122: #{tpu_custom_call.1} parent=1 // pred_check
      _
    $region123: #{tpu_custom_call.1} parent=1 // pred_check_branch
      %2074 = sbr.rel (0) target = $region125
    $region124: #{tpu_custom_call.1} parent=1 // pred_region
      %2076 = vsyncadd [#allocation4], 0
      %s2078 = sshll.u32 [#allocation22], 4
      %s2079 = int_to_ptr.vmem [resolvable:$true] %s2078
      %s2080 = sshll.u32 %s18, 4
      %s2081 = int_to_ptr.hbm [resolvable:$true] %s2080
      %2083 = dma.vmem_to_hbm [thread:$0]  %s2079, 128, %s2081, [#allocation4]
    $region125: #{tpu_custom_call.1} parent=1 // pred_fallthru
      _
    // Predicated region
    $region126: #{tpu_custom_call.1} parent=1 // pred_check
      _
    $region127: #{tpu_custom_call.1} parent=1 // pred_check_branch
      %2085 = sbr.rel (0) target = $region129
    $region128: #{tpu_custom_call.1} parent=1 // pred_region
      %2087 = dma.done [#allocation4], 128
    $region129: #{tpu_custom_call.1} parent=1 // pred_fallthru
      _
    %2088 = vsyncpa [#allocation3], 1
    %2089 = vsyncpa [#allocation6], 1
    %2090 = vsyncpa [#allocation9], 1
    %2091 = vsyncpa [#allocation12], 1
    %2092 = vsyncpa [#allocation15], 1
    %2093 = vsyncpa [#allocation18], 1
    %2094 = vsyncpa [#allocation21], 1
    %2095 = vsyncpa [#allocation4], 1

// kernel: tpu_custom_call.1
$region0: #{tpu_custom_call.1}
  #allocation0 [shape = 'u32[]', space=smem, size = 0x4, offset = 0x4, fixed_abs, tag = 'smem constant byte address 0x4 - core index']
  #allocation1 [shape = 'u32[72,128]{1,0:T(1,128)}', space=vmem, size = 0x9000, scoped, tag = 'internal scratch']
  %s0 = inlined_call_operand.hbm [shape: f32[8,128], index: 0, kind: input, shape index: {}]
  %s1 = inlined_call_operand.hbm [shape: bf16[128,640], index: 1, kind: input, shape index: {}]
  %s2 = inlined_call_operand.hbm [shape: f32[1,640], index: 2, kind: input, shape index: {}]
  %s3 = inlined_call_operand.hbm [shape: bf16[128,512], index: 3, kind: input, shape index: {}]
  %s4 = inlined_call_operand.hbm [shape: bf16[512,128], index: 4, kind: input, shape index: {}]
  %s5 = inlined_call_operand.vmem [shape: f32[1,512], index: 5, kind: input, shape index: {}]
  %s6 = inlined_call_operand.hbm [shape: bf16[128,128], index: 6, kind: input, shape index: {}]
  %s7 = inlined_call_operand.hbm [shape: f32[1,128], index: 7, kind: input, shape index: {}]
  %s8 = inlined_call_operand.hbm [shape: bf16[128,128], index: 8, kind: input, shape index: {}]
  %s9 = inlined_call_operand.hbm [shape: f32[1,128], index: 9, kind: input, shape index: {}]
  %s10 = inlined_call_operand.hbm [shape: bf16[384,256], index: 10, kind: input, shape index: {}]
  %s11 = inlined_call_operand.vmem [shape: f32[1,256], index: 11, kind: input, shape index: {}]
  %s12 = inlined_call_operand.vmem [shape: f32[1,128], index: 12, kind: input, shape index: {}]
  %s13 = inlined_call_operand.vmem [shape: f32[1,128], index: 13, kind: input, shape index: {}]
  %s14 = inlined_call_operand.hbm [shape: bf16[128,256], index: 14, kind: input, shape index: {}]
  %s15 = inlined_call_operand.vmem [shape: f32[1,256], index: 15, kind: input, shape index: {}]
  %s16 = inlined_call_operand.hbm [shape: bf16[128,128], index: 16, kind: input, shape index: {}]
  %s17 = inlined_call_operand.vmem [shape: f32[1,128], index: 17, kind: input, shape index: {}]
  %s18 = inlined_call_operand.hbm [shape: f32[8,128], index: 18, kind: output, shape index: {}]
  %s19 = sld [smem:[#allocation0]]
  $region130: #{tpu_custom_call.1} parent=0
    _
  %s21 = ssub.s32 1, %s19
  %s22 = scalar_select 0, %s21, %s19
  $region1: #{tpu_custom_call.1} parent=0
    #allocation2 [shape = 'u8[4096]{0}', space=vmem, size = 0x1000, scoped, tag = 'input window, operand 0, single buffered']
    #allocation3 [shape = 's32[1]{0}', space=sflag, size = 0x4, scoped, tag = 'scoped memory for tpu_custom_call.1']
    #allocation4 [shape = 's32[1]{0}', space=sflag, size = 0x4, scoped, tag = 'scoped memory for tpu_custom_call.1']
    #allocation5 [shape = 'u8[163840]{0}', space=vmem, size = 0x28000, scoped, tag = 'input window, operand 1, single buffered']
    #allocation6 [shape = 's32[1]{0}', space=sflag, size = 0x4, scoped, tag = 'scoped memory for tpu_custom_call.1']
    #allocation7 [shape = 'u8[2560]{0}', space=vmem, size = 0xc00, scoped, tag = 'input window, operand 2, single buffered']
    #allocation8 [shape = 'u8[131072]{0}', space=vmem, size = 0x20000, scoped, tag = 'input window, operand 3, single buffered']
    #allocation9 [shape = 's32[1]{0}', space=sflag, size = 0x4, scoped, tag = 'scoped memory for tpu_custom_call.1']
    #allocation10 [shape = 'u8[131072]{0}', space=vmem, size = 0x20000, scoped, tag = 'input window, operand 4, single buffered']
    #allocation11 [shape = 'u8[32768]{0}', space=vmem, size = 0x8000, scoped, tag = 'input window, operand 6, single buffered']
    #allocation12 [shape = 's32[1]{0}', space=sflag, size = 0x4, scoped, tag = 'scoped memory for tpu_custom_call.1']
    #allocation13 [shape = 'u8[512]{0}', space=vmem, size = 0x400, scoped, tag = 'input window, operand 7, single buffered']
    #allocation14 [shape = 'u8[32768]{0}', space=vmem, size = 0x8000, scoped, tag = 'input window, operand 8, single buffered']
    #allocation15 [shape = 's32[1]{0}', space=sflag, size = 0x4, scoped, tag = 'scoped memory for tpu_custom_call.1']
    #allocation16 [shape = 'u8[512]{0}', space=vmem, size = 0x400, scoped, tag = 'input window, operand 9, single buffered']
    #allocation17 [shape = 'u8[196608]{0}', space=vmem, size = 0x30000, scoped, tag = 'input window, operand 10, single buffered']
    #allocation18 [shape = 's32[1]{0}', space=sflag, size = 0x4, scoped, tag = 'scoped memory for tpu_custom_call.1']
    #allocation19 [shape = 'u8[65536]{0}', space=vmem, size = 0x10000, scoped, tag = 'input window, operand 14, single buffered']
    #allocation20 [shape = 'u8[32768]{0}', space=vmem, size = 0x8000, scoped, tag = 'input window, operand 16, single buffered']
    #allocation21 [shape = 's32[1]{0}', space=sflag, size = 0x4, scoped, tag = 'scoped memory for tpu_custom_call.1']
    #allocation22 [shape = 'u8[4096]{0}', space=vmem, size = 0x1000, scoped, tag = 'output window, operand 0, single buffered']
    %23 = vsyncpa [#allocation3], 0
    %24 = vsyncpa [#allocation6], 0
    %25 = vsyncpa [#allocation9], 0
    %26 = vsyncpa [#allocation12], 0
    %27 = vsyncpa [#allocation15], 0
    %28 = vsyncpa [#allocation18], 0
    %29 = vsyncpa [#allocation21], 0
    %30 = vsyncpa [#allocation4], 0
    // Predicated region
    $region2: #{tpu_custom_call.1} parent=1 // pred_check
      _
    $region3: #{tpu_custom_call.1} parent=1 // pred_check_branch
      %32 = sbr.rel (0) target = $region5
    $region4: #{tpu_custom_call.1} parent=1 // pred_region
      %34 = vsyncadd [#allocation3], 0
      %s36 = sshll.u32 %s0, 4
      %s37 = int_to_ptr.hbm [resolvable:$true] %s36
      %s38 = sshll.u32 [#allocation2], 4
      %s39 = int_to_ptr.vmem [resolvable:$true] %s38
      %41 = dma.hbm_to_vmem [thread:$0]  %s37, 128, %s39, [#allocation3]
    $region5: #{tpu_custom_call.1} parent=1 // pred_fallthru
      _
    // Predicated region
    $region6: #{tpu_custom_call.1} parent=1 // pred_check
      _
    $region7: #{tpu_custom_call.1} parent=1 // pred_check_branch
      %43 = sbr.rel (0) target = $region9
    $region8: #{tpu_custom_call.1} parent=1 // pred_region
      %45 = vsyncadd [#allocation6], 0
      %s46 = sshll.u32 %s1, 4
      %s47 = int_to_ptr.hbm [resolvable:$true] %s46
      %s48 = sshll.u32 [#allocation5], 4
      %s49 = int_to_ptr.vmem [resolvable:$true] %s48
      %54 = dma.hbm_to_vmem [thread:$0]  %s47, 5120, %s49, [#allocation6], 320, 320, 20
    $region9: #{tpu_custom_call.1} parent=1 // pred_fallthru
      _
    // Predicated region
    $region10: #{tpu_custom_call.1} parent=1 // pred_check
      _
    $region11: #{tpu_custom_call.1} parent=1 // pred_check_branch
      %56 = sbr.rel (0) target = $region13
    $region12: #{tpu_custom_call.1} parent=1 // pred_region
      %58 = vsyncadd [#allocation6], 0
      %s60 = sshll.u32 %s2, 4
      %s61 = int_to_ptr.hbm [resolvable:$true] %s60
      %s62 = sshll.u32 [#allocation7], 4
      %s63 = int_to_ptr.vmem [resolvable:$true] %s62
      %65 = dma.hbm_to_vmem [thread:$0]  %s61, 80, %s63, [#allocation6]
    $region13: #{tpu_custom_call.1} parent=1 // pred_fallthru
      _
    // Predicated region
    $region14: #{tpu_custom_call.1} parent=1 // pred_check
      _
    $region15: #{tpu_custom_call.1} parent=1 // pred_check_branch
      %67 = sbr.rel (0) target = $region17
    $region16: #{tpu_custom_call.1} parent=1 // pred_region
      %69 = vsyncadd [#allocation9], 0
      %s70 = sshll.u32 %s3, 4
      %s71 = int_to_ptr.hbm [resolvable:$true] %s70
      %s72 = sshll.u32 [#allocation8], 4
      %s73 = int_to_ptr.vmem [resolvable:$true] %s72
      %78 = dma.hbm_to_vmem [thread:$0]  %s71, 4096, %s73, [#allocation9], 256, 256, 16
    $region17: #{tpu_custom_call.1} parent=1 // pred_fallthru
      _
    // Predicated region
    $region18: #{tpu_custom_call.1} parent=1 // pred_check
      _
    $region19: #{tpu_custom_call.1} parent=1 // pred_check_branch
      %80 = sbr.rel (0) target = $region21
    $region20: #{tpu_custom_call.1} parent=1 // pred_region
      %82 = vsyncadd [#allocation9], 0
      %s83 = sshll.u32 %s4, 4
      %s84 = int_to_ptr.hbm [resolvable:$true] %s83
      %s85 = sshll.u32 [#allocation10], 4
      %s86 = int_to_ptr.vmem [resolvable:$true] %s85
      %91 = dma.hbm_to_vmem [thread:$0]  %s84, 4096, %s86, [#allocation9], 64, 64, 4
    $region21: #{tpu_custom_call.1} parent=1 // pred_fallthru
      _
    // Predicated region
    $region22: #{tpu_custom_call.1} parent=1 // pred_check
      _
    $region23: #{tpu_custom_call.1} parent=1 // pred_check_branch
      %93 = sbr.rel (0) target = $region25
    $region24: #{tpu_custom_call.1} parent=1 // pred_region
      _
    $region25: #{tpu_custom_call.1} parent=1 // pred_fallthru
      _
    // Predicated region
    $region26: #{tpu_custom_call.1} parent=1 // pred_check
      _
    $region27: #{tpu_custom_call.1} parent=1 // pred_check_branch
      %95 = sbr.rel (0) target = $region29
    $region28: #{tpu_custom_call.1} parent=1 // pred_region
      %97 = vsyncadd [#allocation12], 0
      %s98 = sshll.u32 %s6, 4
      %s99 = int_to_ptr.hbm [resolvable:$true] %s98
      %s100 = sshll.u32 [#allocation11], 4
      %s101 = int_to_ptr.vmem [resolvable:$true] %s100
      %106 = dma.hbm_to_vmem [thread:$0]  %s99, 1024, %s101, [#allocation12], 64, 64, 4
    $region29: #{tpu_custom_call.1} parent=1 // pred_fallthru
      _
    // Predicated region
    $region30: #{tpu_custom_call.1} parent=1 // pred_check
      _
    $region31: #{tpu_custom_call.1} parent=1 // pred_check_branch
      %108 = sbr.rel (0) target = $region33
    $region32: #{tpu_custom_call.1} parent=1 // pred_region
      %110 = vsyncadd [#allocation12], 0
      %s112 = sshll.u32 %s7, 4
      %s113 = int_to_ptr.hbm [resolvable:$true] %s112
      %s114 = sshll.u32 [#allocation13], 4
      %s115 = int_to_ptr.vmem [resolvable:$true] %s114
      %117 = dma.hbm_to_vmem [thread:$0]  %s113, 16, %s115, [#allocation12]
    $region33: #{tpu_custom_call.1} parent=1 // pred_fallthru
      _
    // Predicated region
    $region34: #{tpu_custom_call.1} parent=1 // pred_check
      _
    $region35: #{tpu_custom_call.1} parent=1 // pred_check_branch
      %119 = sbr.rel (0) target = $region37
    $region36: #{tpu_custom_call.1} parent=1 // pred_region
      %121 = vsyncadd [#allocation15], 0
      %s122 = sshll.u32 %s8, 4
      %s123 = int_to_ptr.hbm [resolvable:$true] %s122
      %s124 = sshll.u32 [#allocation14], 4
      %s125 = int_to_ptr.vmem [resolvable:$true] %s124
      %130 = dma.hbm_to_vmem [thread:$0]  %s123, 1024, %s125, [#allocation15], 64, 64, 4
    $region37: #{tpu_custom_call.1} parent=1 // pred_fallthru
      _
    // Predicated region
    $region38: #{tpu_custom_call.1} parent=1 // pred_check
      _
    $region39: #{tpu_custom_call.1} parent=1 // pred_check_branch
      %132 = sbr.rel (0) target = $region41
    $region40: #{tpu_custom_call.1} parent=1 // pred_region
      %134 = vsyncadd [#allocation15], 0
      %s136 = sshll.u32 %s9, 4
      %s137 = int_to_ptr.hbm [resolvable:$true] %s136
      %s138 = sshll.u32 [#allocation16], 4
      %s139 = int_to_ptr.vmem [resolvable:$true] %s138
      %141 = dma.hbm_to_vmem [thread:$0]  %s137, 16, %s139, [#allocation15]
    $region41: #{tpu_custom_call.1} parent=1 // pred_fallthru
      _
    // Predicated region
    $region42: #{tpu_custom_call.1} parent=1 // pred_check
      _
    $region43: #{tpu_custom_call.1} parent=1 // pred_check_branch
      %143 = sbr.rel (0) target = $region45
    $region44: #{tpu_custom_call.1} parent=1 // pred_region
      %145 = vsyncadd [#allocation18], 0
      %s146 = sshll.u32 %s10, 4
      %s147 = int_to_ptr.hbm [resolvable:$true] %s146
      %s148 = sshll.u32 [#allocation17], 4
      %s149 = int_to_ptr.vmem [resolvable:$true] %s148
      %154 = dma.hbm_to_vmem [thread:$0]  %s147, 6144, %s149, [#allocation18], 128, 128, 8
    $region45: #{tpu_custom_call.1} parent=1 // pred_fallthru
      _
    // Predicated region
    $region46: #{tpu_custom_call.1} parent=1 // pred_check
      _
    $region47: #{tpu_custom_call.1} parent=1 // pred_check_branch
      %156 = sbr.rel (0) target = $region49
    $region48: #{tpu_custom_call.1} parent=1 // pred_region
      _
    $region49: #{tpu_custom_call.1} parent=1 // pred_fallthru
      _
    // Predicated region
    $region50: #{tpu_custom_call.1} parent=1 // pred_check
      _
    $region51: #{tpu_custom_call.1} parent=1 // pred_check_branch
      %158 = sbr.rel (0) target = $region53
    $region52: #{tpu_custom_call.1} parent=1 // pred_region
      _
    $region53: #{tpu_custom_call.1} parent=1 // pred_fallthru
      _
    // Predicated region
    $region54: #{tpu_custom_call.1} parent=1 // pred_check
      _
    $region55: #{tpu_custom_call.1} parent=1 // pred_check_branch
      %160 = sbr.rel (0) target = $region57
    $region56: #{tpu_custom_call.1} parent=1 // pred_region
      _
    $region57: #{tpu_custom_call.1} parent=1 // pred_fallthru
      _
    // Predicated region
    $region58: #{tpu_custom_call.1} parent=1 // pred_check
      _
    $region59: #{tpu_custom_call.1} parent=1 // pred_check_branch
      %162 = sbr.rel (0) target = $region61
    $region60: #{tpu_custom_call.1} parent=1 // pred_region
      %164 = vsyncadd [#allocation18], 0
      %s165 = sshll.u32 %s14, 4
      %s166 = int_to_ptr.hbm [resolvable:$true] %s165
      %s167 = sshll.u32 [#allocation19], 4
      %s168 = int_to_ptr.vmem [resolvable:$true] %s167
      %173 = dma.hbm_to_vmem [thread:$0]  %s166, 2048, %s168, [#allocation18], 128, 128, 8
    $region61: #{tpu_custom_call.1} parent=1 // pred_fallthru
      _
    // Predicated region
    $region62: #{tpu_custom_call.1} parent=1 // pred_check
      _
    $region63: #{tpu_custom_call.1} parent=1 // pred_check_branch
      %175 = sbr.rel (0) target = $region65
    $region64: #{tpu_custom_call.1} parent=1 // pred_region
      _
    $region65: #{tpu_custom_call.1} parent=1 // pred_fallthru
      _
    // Predicated region
    $region66: #{tpu_custom_call.1} parent=1 // pred_check
      _
    $region67: #{tpu_custom_call.1} parent=1 // pred_check_branch
      %177 = sbr.rel (0) target = $region69
    $region68: #{tpu_custom_call.1} parent=1 // pred_region
      %179 = vsyncadd [#allocation21], 0
      %s180 = sshll.u32 %s16, 4
      %s181 = int_to_ptr.hbm [resolvable:$true] %s180
      %s182 = sshll.u32 [#allocation20], 4
      %s183 = int_to_ptr.vmem [resolvable:$true] %s182
      %188 = dma.hbm_to_vmem [thread:$0]  %s181, 1024, %s183, [#allocation21], 64, 64, 4
    $region69: #{tpu_custom_call.1} parent=1 // pred_fallthru
      _
    // Predicated region
    $region70: #{tpu_custom_call.1} parent=1 // pred_check
      _
    $region71: #{tpu_custom_call.1} parent=1 // pred_check_branch
      %190 = sbr.rel (0) target = $region73
    $region72: #{tpu_custom_call.1} parent=1 // pred_region
      _
    $region73: #{tpu_custom_call.1} parent=1 // pred_fallthru
      _
    // Predicated region
    $region74: #{tpu_custom_call.1} parent=1 // pred_check
      _
    $region75: #{tpu_custom_call.1} parent=1 // pred_check_branch
      %192 = sbr.rel (0) target = $region77
    $region76: #{tpu_custom_call.1} parent=1 // pred_region
      %194 = dma.done [#allocation3], 128
    $region77: #{tpu_custom_call.1} parent=1 // pred_fallthru
      _
    // Predicated region
    $region78: #{tpu_custom_call.1} parent=1 // pred_check
      _
    $region79: #{tpu_custom_call.1} parent=1 // pred_check_branch
      %196 = sbr.rel (0) target = $region81
    $region80: #{tpu_custom_call.1} parent=1 // pred_region
      %198 = dma.done [#allocation6], 5120
    $region81: #{tpu_custom_call.1} parent=1 // pred_fallthru
      _
    // Predicated region
    $region82: #{tpu_custom_call.1} parent=1 // pred_check
      _
    $region83: #{tpu_custom_call.1} parent=1 // pred_check_branch
      %200 = sbr.rel (0) target = $region85
    $region84: #{tpu_custom_call.1} parent=1 // pred_region
      %202 = dma.done [#allocation6], 80
    $region85: #{tpu_custom_call.1} parent=1 // pred_fallthru
      _
    // Predicated region
    $region86: #{tpu_custom_call.1} parent=1 // pred_check
      _
    $region87: #{tpu_custom_call.1} parent=1 // pred_check_branch
      %204 = sbr.rel (0) target = $region89
    $region88: #{tpu_custom_call.1} parent=1 // pred_region
      %206 = dma.done [#allocation9], 4096
    $region89: #{tpu_custom_call.1} parent=1 // pred_fallthru
      _
    // Predicated region
    $region90: #{tpu_custom_call.1} parent=1 // pred_check
      _
    $region91: #{tpu_custom_call.1} parent=1 // pred_check_branch
      %208 = sbr.rel (0) target = $region93
    $region92: #{tpu_custom_call.1} parent=1 // pred_region
      %210 = dma.done [#allocation9], 4096
    $region93: #{tpu_custom_call.1} parent=1 // pred_fallthru
      _
    // Predicated region
    $region94: #{tpu_custom_call.1} parent=1 // pred_check
      _
    $region95: #{tpu_custom_call.1} parent=1 // pred_check_branch
      %212 = sbr.rel (0) target = $region97
    $region96: #{tpu_custom_call.1} parent=1 // pred_region
      %214 = dma.done [#allocation12], 1024
    $region97: #{tpu_custom_call.1} parent=1 // pred_fallthru
      _
    // Predicated region
    $region98: #{tpu_custom_call.1} parent=1 // pred_check
      _
    $region99: #{tpu_custom_call.1} parent=1 // pred_check_branch
      %216 = sbr.rel (0) target = $region101
    $region100: #{tpu_custom_call.1} parent=1 // pred_region
      %218 = dma.done [#allocation12], 16
    $region101: #{tpu_custom_call.1} parent=1 // pred_fallthru
      _
    // Predicated region
    $region102: #{tpu_custom_call.1} parent=1 // pred_check
      _
    $region103: #{tpu_custom_call.1} parent=1 // pred_check_branch
      %220 = sbr.rel (0) target = $region105
    $region104: #{tpu_custom_call.1} parent=1 // pred_region
      %222 = dma.done [#allocation15], 1024
    $region105: #{tpu_custom_call.1} parent=1 // pred_fallthru
      _
    // Predicated region
    $region106: #{tpu_custom_call.1} parent=1 // pred_check
      _
    $region107: #{tpu_custom_call.1} parent=1 // pred_check_branch
      %224 = sbr.rel (0) target = $region109
    $region108: #{tpu_custom_call.1} parent=1 // pred_region
      %226 = dma.done [#allocation15], 16
    $region109: #{tpu_custom_call.1} parent=1 // pred_fallthru
      _
    // Predicated region
    $region110: #{tpu_custom_call.1} parent=1 // pred_check
      _
    $region111: #{tpu_custom_call.1} parent=1 // pred_check_branch
      %228 = sbr.rel (0) target = $region113
    $region112: #{tpu_custom_call.1} parent=1 // pred_region
      %230 = dma.done [#allocation18], 6144
    $region113: #{tpu_custom_call.1} parent=1 // pred_fallthru
      _
    // Predicated region
    $region114: #{tpu_custom_call.1} parent=1 // pred_check
      _
    $region115: #{tpu_custom_call.1} parent=1 // pred_check_branch
      %232 = sbr.rel (0) target = $region117
    $region116: #{tpu_custom_call.1} parent=1 // pred_region
      %234 = dma.done [#allocation18], 2048
    $region117: #{tpu_custom_call.1} parent=1 // pred_fallthru
      _
    // Predicated region
    $region118: #{tpu_custom_call.1} parent=1 // pred_check
      _
    $region119: #{tpu_custom_call.1} parent=1 // pred_check_branch
      %236 = sbr.rel (0) target = $region121
    $region120: #{tpu_custom_call.1} parent=1 // pred_region
      %238 = dma.done [#allocation21], 1024
    $region121: #{tpu_custom_call.1} parent=1 // pred_fallthru
      _
    %v239 = vld [vmem:[#allocation2] sm:$0xff]
    %v240 = vld [vmem:[#allocation5] sm:$0xff]
    %v241 = vld [vmem:[#allocation5 + $0x8] sm:$0xff]
    %v242 = vld [vmem:[#allocation5 + $0x10] sm:$0xf]
    %v243 = vld [vmem:[#allocation5 + $0x14] sm:$0xff]
    %v244 = vld [vmem:[#allocation5 + $0x1c] sm:$0xff]
    %v245 = vld [vmem:[#allocation5 + $0x24] sm:$0xf]
    %v246 = vld [vmem:[#allocation5 + $0x28] sm:$0xff]
    %v247 = vld [vmem:[#allocation5 + $0x30] sm:$0xff]
    %v248 = vld [vmem:[#allocation5 + $0x38] sm:$0xf]
    %v249 = vld [vmem:[#allocation5 + $0x3c] sm:$0xff]
    %v250 = vld [vmem:[#allocation5 + $0x44] sm:$0xff]
    %v251 = vld [vmem:[#allocation5 + $0x4c] sm:$0xf]
    %v252 = vld [vmem:[#allocation5 + $0x50] sm:$0xff]
    %v253 = vld [vmem:[#allocation5 + $0x58] sm:$0xff]
    %v254 = vld [vmem:[#allocation5 + $0x60] sm:$0xf]
    %v255 = vld [vmem:[#allocation5 + $0x64] sm:$0xff]
    %v256 = vld [vmem:[#allocation5 + $0x6c] sm:$0xff]
    %v257 = vld [vmem:[#allocation5 + $0x74] sm:$0xf]
    %v258 = vld [vmem:[#allocation5 + $0x78] sm:$0xff]
    %v259 = vld [vmem:[#allocation5 + $0x80] sm:$0xff]
    %v260 = vld [vmem:[#allocation5 + $0x88] sm:$0xf]
    %v261 = vld [vmem:[#allocation5 + $0x8c] sm:$0xff]
    %v262 = vld [vmem:[#allocation5 + $0x94] sm:$0xff]
    %v263 = vld [vmem:[#allocation5 + $0x9c] sm:$0xf]
    %v264 = vld [vmem:[#allocation5 + $0xa0] sm:$0xff]
    %v265 = vld [vmem:[#allocation5 + $0xa8] sm:$0xff]
    %v266 = vld [vmem:[#allocation5 + $0xb0] sm:$0xf]
    %v267 = vld [vmem:[#allocation5 + $0xb4] sm:$0xff]
    %v268 = vld [vmem:[#allocation5 + $0xbc] sm:$0xff]
    %v269 = vld [vmem:[#allocation5 + $0xc4] sm:$0xf]
    %v270 = vld [vmem:[#allocation5 + $0xc8] sm:$0xff]
    %v271 = vld [vmem:[#allocation5 + $0xd0] sm:$0xff]
    %v272 = vld [vmem:[#allocation5 + $0xd8] sm:$0xf]
    %v273 = vld [vmem:[#allocation5 + $0xdc] sm:$0xff]
    %v274 = vld [vmem:[#allocation5 + $0xe4] sm:$0xff]
    %v275 = vld [vmem:[#allocation5 + $0xec] sm:$0xf]
    %v276 = vld [vmem:[#allocation5 + $0xf0] sm:$0xff]
    %v277 = vld [vmem:[#allocation5 + $0xf8] sm:$0xff]
    %v278 = vld [vmem:[#allocation5 + $0x100] sm:$0xf]
    %v279 = vld [vmem:[#allocation5 + $0x104] sm:$0xff]
    %v280 = vld [vmem:[#allocation5 + $0x10c] sm:$0xff]
    %v281 = vld [vmem:[#allocation5 + $0x114] sm:$0xf]
    %v282 = vld [vmem:[#allocation5 + $0x118] sm:$0xff]
    %v283 = vld [vmem:[#allocation5 + $0x120] sm:$0xff]
    %v284 = vld [vmem:[#allocation5 + $0x128] sm:$0xf]
    %v285 = vld [vmem:[#allocation5 + $0x12c] sm:$0xff]
    %v286 = vld [vmem:[#allocation5 + $0x134] sm:$0xff]
    %v287 = vld [vmem:[#allocation5 + $0x13c] sm:$0xf]
    %v288 = vpack.c.bf16 %v239, %v239
    %v289 = vld [vmem:[#allocation7] sm:$0x1f]
    %v291 = vperm.slane %v289, 0
    %v292 = vperm.slane %v289, 1
    %v293 = vperm.slane %v289, 2
    %v294 = vperm.slane %v289, 3
    %v295 = vperm.slane %v289, 4
    %v349 = vunpack.c.l.b16 %v240
    %v350 = vunpack.c.h.b16 %v240
    %v351 = vunpack.c.l.b16 %v241
    %v352 = vunpack.c.h.b16 %v241
    %v353 = vunpack.c.l.b16 %v242
    %v354 = vunpack.c.l.b16 %v243
    %v355 = vunpack.c.h.b16 %v243
    %v356 = vunpack.c.l.b16 %v244
    %v357 = vunpack.c.h.b16 %v244
    %v358 = vunpack.c.l.b16 %v245
    %v359 = vunpack.c.l.b16 %v246
    %v360 = vunpack.c.h.b16 %v246
    %v361 = vunpack.c.l.b16 %v247
    %v362 = vunpack.c.h.b16 %v247
    %v363 = vunpack.c.l.b16 %v248
    %v364 = vunpack.c.l.b16 %v249
    %v365 = vunpack.c.h.b16 %v249
    %v366 = vunpack.c.l.b16 %v250
    %v367 = vunpack.c.h.b16 %v250
    %v368 = vunpack.c.l.b16 %v251
    %v369 = vunpack.c.l.b16 %v252
    %v370 = vunpack.c.h.b16 %v252
    %v371 = vunpack.c.l.b16 %v253
    %v372 = vunpack.c.h.b16 %v253
    %v373 = vunpack.c.l.b16 %v254
    %v374 = vunpack.c.l.b16 %v255
    %v375 = vunpack.c.h.b16 %v255
    %v376 = vunpack.c.l.b16 %v256
    %v377 = vunpack.c.h.b16 %v256
    %v378 = vunpack.c.l.b16 %v257
    %v379 = vunpack.c.l.b16 %v258
    %v380 = vunpack.c.h.b16 %v258
    %v381 = vunpack.c.l.b16 %v259
    %v382 = vunpack.c.h.b16 %v259
    %v383 = vunpack.c.l.b16 %v260
    %v384 = vunpack.c.l.b16 %v261
    %v385 = vunpack.c.h.b16 %v261
    %v386 = vunpack.c.l.b16 %v262
    %v387 = vunpack.c.h.b16 %v262
    %v388 = vunpack.c.l.b16 %v263
    %v389 = vunpack.c.l.b16 %v264
    %v390 = vunpack.c.h.b16 %v264
    %v391 = vunpack.c.l.b16 %v265
    %v392 = vunpack.c.h.b16 %v265
    %v393 = vunpack.c.l.b16 %v266
    %v394 = vunpack.c.l.b16 %v267
    %v395 = vunpack.c.h.b16 %v267
    %v396 = vunpack.c.l.b16 %v268
    %v397 = vunpack.c.h.b16 %v268
    %v398 = vunpack.c.l.b16 %v269
    %v399 = vunpack.c.l.b16 %v270
    %v400 = vunpack.c.h.b16 %v270
    %v401 = vunpack.c.l.b16 %v271
    %v402 = vunpack.c.h.b16 %v271
    %v403 = vunpack.c.l.b16 %v272
    %v404 = vunpack.c.l.b16 %v273
    %v405 = vunpack.c.h.b16 %v273
    %v406 = vunpack.c.l.b16 %v274
    %v407 = vunpack.c.h.b16 %v274
    %v408 = vunpack.c.l.b16 %v275
    %v409 = vunpack.c.l.b16 %v276
    %v410 = vunpack.c.h.b16 %v276
    %v411 = vunpack.c.l.b16 %v277
    %v412 = vunpack.c.h.b16 %v277
    %v413 = vunpack.c.l.b16 %v278
    %v414 = vunpack.c.l.b16 %v279
    %v415 = vunpack.c.h.b16 %v279
    %v416 = vunpack.c.l.b16 %v280
    %v417 = vunpack.c.h.b16 %v280
    %v418 = vunpack.c.l.b16 %v281
    %v419 = vunpack.c.l.b16 %v282
    %v420 = vunpack.c.h.b16 %v282
    %v421 = vunpack.c.l.b16 %v283
    %v422 = vunpack.c.h.b16 %v283
    %v423 = vunpack.c.l.b16 %v284
    %v424 = vunpack.c.l.b16 %v285
    %v425 = vunpack.c.h.b16 %v285
    %v426 = vunpack.c.l.b16 %v286
    %v427 = vunpack.c.h.b16 %v286
    %v428 = vunpack.c.l.b16 %v287
    %v429 = vpack.c.b16 %v354, %v349
    %v430 = vpack.c.b16 %v355, %v350
    %v431 = vpack.c.b16 %v356, %v351
    %v432 = vpack.c.b16 %v357, %v352
    %v433 = vpack.c.b16 %v358, %v353
    %v434 = vpack.c.b16 %v364, %v359
    %v435 = vpack.c.b16 %v365, %v360
    %v436 = vpack.c.b16 %v366, %v361
    %v437 = vpack.c.b16 %v367, %v362
    %v438 = vpack.c.b16 %v368, %v363
    %v439 = vpack.c.b16 %v374, %v369
    %v440 = vpack.c.b16 %v375, %v370
    %v441 = vpack.c.b16 %v376, %v371
    %v442 = vpack.c.b16 %v377, %v372
    %v443 = vpack.c.b16 %v378, %v373
    %v444 = vpack.c.b16 %v384, %v379
    %v445 = vpack.c.b16 %v385, %v380
    %v446 = vpack.c.b16 %v386, %v381
    %v447 = vpack.c.b16 %v387, %v382
    %v448 = vpack.c.b16 %v388, %v383
    %v449 = vpack.c.b16 %v394, %v389
    %v450 = vpack.c.b16 %v395, %v390
    %v451 = vpack.c.b16 %v396, %v391
    %v452 = vpack.c.b16 %v397, %v392
    %v453 = vpack.c.b16 %v398, %v393
    %v454 = vpack.c.b16 %v404, %v399
    %v455 = vpack.c.b16 %v405, %v400
    %v456 = vpack.c.b16 %v406, %v401
    %v457 = vpack.c.b16 %v407, %v402
    %v458 = vpack.c.b16 %v408, %v403
    %v459 = vpack.c.b16 %v414, %v409
    %v460 = vpack.c.b16 %v415, %v410
    %v461 = vpack.c.b16 %v416, %v411
    %v462 = vpack.c.b16 %v417, %v412
    %v463 = vpack.c.b16 %v418, %v413
    %v464 = vpack.c.b16 %v424, %v419
    %v465 = vpack.c.b16 %v425, %v420
    %v466 = vpack.c.b16 %v426, %v421
    %v467 = vpack.c.b16 %v427, %v422
    %v468 = vpack.c.b16 %v428, %v423
    %509 = vmatpush.bf16.msra.mxu0 %v464
    %510 = vmatpush.bf16.msra.mxu0 %v459
    %511 = vmatpush.bf16.msra.mxu0 %v454
    %512 = vmatpush.bf16.msra.mxu0 %v449
    %513 = vmatpush.bf16.msra.mxu0 %v444
    %514 = vmatpush.bf16.msra.mxu0 %v439
    %515 = vmatpush.bf16.msra.mxu0 %v434
    %516 = vmatpush.bf16.msra.mxu0 %v429
    %517 = vmatmul.bf16.gmra.mxu0 %v288
    %v518 = vpop.f32.mrf.mxu0
    %v519 = vadd.f32 %v291, %v518
    %v520 = vpop.f32.mrf.mxu0
    %521 = vdwg.mxu0
    %522 = vmatpush.bf16.msra.mxu0 %v465
    %523 = vmatpush.bf16.msra.mxu0 %v460
    %524 = vmatpush.bf16.msra.mxu0 %v455
    %525 = vmatpush.bf16.msra.mxu0 %v450
    %526 = vmatpush.bf16.msra.mxu0 %v445
    %527 = vmatpush.bf16.msra.mxu0 %v440
    %528 = vmatpush.bf16.msra.mxu0 %v435
    %529 = vmatpush.bf16.msra.mxu0 %v430
    %530 = vmatmul.bf16.gmra.mxu0 %v288
    %v531 = vpop.f32.mrf.mxu0
    %v532 = vadd.f32 %v292, %v531
    %v533 = vpop.f32.mrf.mxu0
    %534 = vdwg.mxu0
    %535 = vmatpush.bf16.msra.mxu0 %v466
    %536 = vmatpush.bf16.msra.mxu0 %v461
    %537 = vmatpush.bf16.msra.mxu0 %v456
    %538 = vmatpush.bf16.msra.mxu0 %v451
    %539 = vmatpush.bf16.msra.mxu0 %v446
    %540 = vmatpush.bf16.msra.mxu0 %v441
    %541 = vmatpush.bf16.msra.mxu0 %v436
    %542 = vmatpush.bf16.msra.mxu0 %v431
    %543 = vmatmul.bf16.gmra.mxu0 %v288
    %v544 = vpop.f32.mrf.mxu0
    %v545 = vadd.f32 %v293, %v544
    %v546 = vpop.f32.mrf.mxu0
    %547 = vdwg.mxu0
    %548 = vmatpush.bf16.msra.mxu0 %v467
    %549 = vmatpush.bf16.msra.mxu0 %v462
    %550 = vmatpush.bf16.msra.mxu0 %v457
    %551 = vmatpush.bf16.msra.mxu0 %v452
    %552 = vmatpush.bf16.msra.mxu0 %v447
    %553 = vmatpush.bf16.msra.mxu0 %v442
    %554 = vmatpush.bf16.msra.mxu0 %v437
    %555 = vmatpush.bf16.msra.mxu0 %v432
    %556 = vmatmul.bf16.gmra.mxu0 %v288
    %v557 = vpop.f32.mrf.mxu0
    %v558 = vadd.f32 %v294, %v557
    %v559 = vpop.f32.mrf.mxu0
    %560 = vdwg.mxu0
    %561 = vmatpush.bf16.msra.mxu0 %v468
    %562 = vmatpush.bf16.msra.mxu0 %v463
    %563 = vmatpush.bf16.msra.mxu0 %v458
    %564 = vmatpush.bf16.msra.mxu0 %v453
    %565 = vmatpush.bf16.msra.mxu0 %v448
    %566 = vmatpush.bf16.msra.mxu0 %v443
    %567 = vmatpush.bf16.msra.mxu0 %v438
    %568 = vmatpush.bf16.msra.mxu0 %v433
    %569 = vmatmul.bf16.gmra.mxu0 %v288
    %v570 = vpop.f32.mrf.mxu0
    %v571 = vadd.f32 %v295, %v570
    %v572 = vpop.f32.mrf.mxu0
    %573 = vdwg.mxu0
    %v574 = vxor.u32 %v519, 2147483648
    %v575 = vmul.f32 %v574, 1.442695
    %v576 = vpow.pop %v575
    %v577 = vadd.f32 %v576, 1.0
    %v578 = vrcp.pop %v577
    %v579 = vmul.f32 %v577, %v578
    %v580 = vsub.f32 1.0, %v579
    %v581 = vmul.f32 %v578, %v580
    %v582 = vadd.f32 %v578, %v581
    %vm583 = vweird.f32 %v577
    %vm584 = vweird.f32 %v578
    %vm585 = vmor %vm583, %vm584
    %v586 = vsel %vm585, %v578, %v582
    %v587 = vand.u32 2147483647, %v577
    %vm588 = vcmp.eq.f32.partialorder %v587, 8.507059e+37
    %v589 = vand.u32 %v577, 2147483648
    %v590 = vor.u32 1.1754944e-38, %v589
    %v591 = vsel %vm588, %v590, %v586
    %v592 = vmul.f32 1.0, %v591
    %v593 = vxor.u32 %v532, 2147483648
    %v594 = vmul.f32 %v593, 1.442695
    %v595 = vpow.pop %v594
    %v596 = vadd.f32 %v595, 1.0
    %v597 = vrcp.pop %v596
    %v598 = vmul.f32 %v596, %v597
    %v599 = vsub.f32 1.0, %v598
    %v600 = vmul.f32 %v597, %v599
    %v601 = vadd.f32 %v597, %v600
    %vm602 = vweird.f32 %v596
    %vm603 = vweird.f32 %v597
    %vm604 = vmor %vm602, %vm603
    %v605 = vsel %vm604, %v597, %v601
    %v606 = vand.u32 2147483647, %v596
    %vm607 = vcmp.eq.f32.partialorder %v606, 8.507059e+37
    %v608 = vand.u32 %v596, 2147483648
    %v609 = vor.u32 1.1754944e-38, %v608
    %v610 = vsel %vm607, %v609, %v605
    %v611 = vmul.f32 1.0, %v610
    %v612 = vtanh.pop %v545
    %v613 = vmul.f32 %v592, %v612
    %v614 = vtanh.pop %v613
    %v615 = vmul.f32 %v611, %v614
    %v616 = vld [vmem:[#allocation8] sm:$0xff]
    %v617 = vld [vmem:[#allocation8 + $0x8] sm:$0xff]
    %v618 = vld [vmem:[#allocation8 + $0x10] sm:$0xff]
    %v619 = vld [vmem:[#allocation8 + $0x18] sm:$0xff]
    %v620 = vld [vmem:[#allocation8 + $0x20] sm:$0xff]
    %v621 = vld [vmem:[#allocation8 + $0x28] sm:$0xff]
    %v622 = vld [vmem:[#allocation8 + $0x30] sm:$0xff]
    %v623 = vld [vmem:[#allocation8 + $0x38] sm:$0xff]
    %v624 = vld [vmem:[#allocation8 + $0x40] sm:$0xff]
    %v625 = vld [vmem:[#allocation8 + $0x48] sm:$0xff]
    %v626 = vld [vmem:[#allocation8 + $0x50] sm:$0xff]
    %v627 = vld [vmem:[#allocation8 + $0x58] sm:$0xff]
    %v628 = vld [vmem:[#allocation8 + $0x60] sm:$0xff]
    %v629 = vld [vmem:[#allocation8 + $0x68] sm:$0xff]
    %v630 = vld [vmem:[#allocation8 + $0x70] sm:$0xff]
    %v631 = vld [vmem:[#allocation8 + $0x78] sm:$0xff]
    %v632 = vld [vmem:[#allocation8 + $0x80] sm:$0xff]
    %v633 = vld [vmem:[#allocation8 + $0x88] sm:$0xff]
    %v634 = vld [vmem:[#allocation8 + $0x90] sm:$0xff]
    %v635 = vld [vmem:[#allocation8 + $0x98] sm:$0xff]
    %v636 = vld [vmem:[#allocation8 + $0xa0] sm:$0xff]
    %v637 = vld [vmem:[#allocation8 + $0xa8] sm:$0xff]
    %v638 = vld [vmem:[#allocation8 + $0xb0] sm:$0xff]
    %v639 = vld [vmem:[#allocation8 + $0xb8] sm:$0xff]
    %v640 = vld [vmem:[#allocation8 + $0xc0] sm:$0xff]
    %v641 = vld [vmem:[#allocation8 + $0xc8] sm:$0xff]
    %v642 = vld [vmem:[#allocation8 + $0xd0] sm:$0xff]
    %v643 = vld [vmem:[#allocation8 + $0xd8] sm:$0xff]
    %v644 = vld [vmem:[#allocation8 + $0xe0] sm:$0xff]
    %v645 = vld [vmem:[#allocation8 + $0xe8] sm:$0xff]
    %v646 = vld [vmem:[#allocation8 + $0xf0] sm:$0xff]
    %v647 = vld [vmem:[#allocation8 + $0xf8] sm:$0xff]
    %v648 = vpack.c.bf16 %v558, %v558
    %v649 = vld [vmem:[%s5] sm:$0xf]
    %v651 = vperm.slane %v649, 0
    %v652 = vperm.slane %v649, 1
    %v653 = vperm.slane %v649, 2
    %v654 = vperm.slane %v649, 3
    %v691 = vunpack.c.l.b16 %v616
    %v692 = vunpack.c.h.b16 %v616
    %v693 = vunpack.c.l.b16 %v617
    %v694 = vunpack.c.h.b16 %v617
    %v695 = vunpack.c.l.b16 %v618
    %v696 = vunpack.c.h.b16 %v618
    %v697 = vunpack.c.l.b16 %v619
    %v698 = vunpack.c.h.b16 %v619
    %v699 = vunpack.c.l.b16 %v620
    %v700 = vunpack.c.h.b16 %v620
    %v701 = vunpack.c.l.b16 %v621
    %v702 = vunpack.c.h.b16 %v621
    %v703 = vunpack.c.l.b16 %v622
    %v704 = vunpack.c.h.b16 %v622
    %v705 = vunpack.c.l.b16 %v623
    %v706 = vunpack.c.h.b16 %v623
    %v707 = vunpack.c.l.b16 %v624
    %v708 = vunpack.c.h.b16 %v624
    %v709 = vunpack.c.l.b16 %v625
    %v710 = vunpack.c.h.b16 %v625
    %v711 = vunpack.c.l.b16 %v626
    %v712 = vunpack.c.h.b16 %v626
    %v713 = vunpack.c.l.b16 %v627
    %v714 = vunpack.c.h.b16 %v627
    %v715 = vunpack.c.l.b16 %v628
    %v716 = vunpack.c.h.b16 %v628
    %v717 = vunpack.c.l.b16 %v629
    %v718 = vunpack.c.h.b16 %v629
    %v719 = vunpack.c.l.b16 %v630
    %v720 = vunpack.c.h.b16 %v630
    %v721 = vunpack.c.l.b16 %v631
    %v722 = vunpack.c.h.b16 %v631
    %v723 = vunpack.c.l.b16 %v632
    %v724 = vunpack.c.h.b16 %v632
    %v725 = vunpack.c.l.b16 %v633
    %v726 = vunpack.c.h.b16 %v633
    %v727 = vunpack.c.l.b16 %v634
    %v728 = vunpack.c.h.b16 %v634
    %v729 = vunpack.c.l.b16 %v635
    %v730 = vunpack.c.h.b16 %v635
    %v731 = vunpack.c.l.b16 %v636
    %v732 = vunpack.c.h.b16 %v636
    %v733 = vunpack.c.l.b16 %v637
    %v734 = vunpack.c.h.b16 %v637
    %v735 = vunpack.c.l.b16 %v638
    %v736 = vunpack.c.h.b16 %v638
    %v737 = vunpack.c.l.b16 %v639
    %v738 = vunpack.c.h.b16 %v639
    %v739 = vunpack.c.l.b16 %v640
    %v740 = vunpack.c.h.b16 %v640
    %v741 = vunpack.c.l.b16 %v641
    %v742 = vunpack.c.h.b16 %v641
    %v743 = vunpack.c.l.b16 %v642
    %v744 = vunpack.c.h.b16 %v642
    %v745 = vunpack.c.l.b16 %v643
    %v746 = vunpack.c.h.b16 %v643
    %v747 = vunpack.c.l.b16 %v644
    %v748 = vunpack.c.h.b16 %v644
    %v749 = vunpack.c.l.b16 %v645
    %v750 = vunpack.c.h.b16 %v645
    %v751 = vunpack.c.l.b16 %v646
    %v752 = vunpack.c.h.b16 %v646
    %v753 = vunpack.c.l.b16 %v647
    %v754 = vunpack.c.h.b16 %v647
    %v755 = vpack.c.b16 %v695, %v691
    %v756 = vpack.c.b16 %v696, %v692
    %v757 = vpack.c.b16 %v697, %v693
    %v758 = vpack.c.b16 %v698, %v694
    %v759 = vpack.c.b16 %v703, %v699
    %v760 = vpack.c.b16 %v704, %v700
    %v761 = vpack.c.b16 %v705, %v701
    %v762 = vpack.c.b16 %v706, %v702
    %v763 = vpack.c.b16 %v711, %v707
    %v764 = vpack.c.b16 %v712, %v708
    %v765 = vpack.c.b16 %v713, %v709
    %v766 = vpack.c.b16 %v714, %v710
    %v767 = vpack.c.b16 %v719, %v715
    %v768 = vpack.c.b16 %v720, %v716
    %v769 = vpack.c.b16 %v721, %v717
    %v770 = vpack.c.b16 %v722, %v718
    %v771 = vpack.c.b16 %v727, %v723
    %v772 = vpack.c.b16 %v728, %v724
    %v773 = vpack.c.b16 %v729, %v725
    %v774 = vpack.c.b16 %v730, %v726
    %v775 = vpack.c.b16 %v735, %v731
    %v776 = vpack.c.b16 %v736, %v732
    %v777 = vpack.c.b16 %v737, %v733
    %v778 = vpack.c.b16 %v738, %v734
    %v779 = vpack.c.b16 %v743, %v739
    %v780 = vpack.c.b16 %v744, %v740
    %v781 = vpack.c.b16 %v745, %v741
    %v782 = vpack.c.b16 %v746, %v742
    %v783 = vpack.c.b16 %v751, %v747
    %v784 = vpack.c.b16 %v752, %v748
    %v785 = vpack.c.b16 %v753, %v749
    %v786 = vpack.c.b16 %v754, %v750
    %819 = vmatpush.bf16.msra.mxu0 %v783
    %820 = vmatpush.bf16.msra.mxu0 %v779
    %821 = vmatpush.bf16.msra.mxu0 %v775
    %822 = vmatpush.bf16.msra.mxu0 %v771
    %823 = vmatpush.bf16.msra.mxu0 %v767
    %824 = vmatpush.bf16.msra.mxu0 %v763
    %825 = vmatpush.bf16.msra.mxu0 %v759
    %826 = vmatpush.bf16.msra.mxu0 %v755
    %827 = vmatmul.bf16.gmra.mxu0 %v648
    %v828 = vpop.f32.mrf.mxu0
    %v829 = vadd.f32 %v651, %v828
    %v830 = vpop.f32.mrf.mxu0
    %831 = vdwg.mxu0
    %832 = vmatpush.bf16.msra.mxu0 %v784
    %833 = vmatpush.bf16.msra.mxu0 %v780
    %834 = vmatpush.bf16.msra.mxu0 %v776
    %835 = vmatpush.bf16.msra.mxu0 %v772
    %836 = vmatpush.bf16.msra.mxu0 %v768
    %837 = vmatpush.bf16.msra.mxu0 %v764
    %838 = vmatpush.bf16.msra.mxu0 %v760
    %839 = vmatpush.bf16.msra.mxu0 %v756
    %840 = vmatmul.bf16.gmra.mxu0 %v648
    %v841 = vpop.f32.mrf.mxu0
    %v842 = vadd.f32 %v652, %v841
    %v843 = vpop.f32.mrf.mxu0
    %844 = vdwg.mxu0
    %845 = vmatpush.bf16.msra.mxu0 %v785
    %846 = vmatpush.bf16.msra.mxu0 %v781
    %847 = vmatpush.bf16.msra.mxu0 %v777
    %848 = vmatpush.bf16.msra.mxu0 %v773
    %849 = vmatpush.bf16.msra.mxu0 %v769
    %850 = vmatpush.bf16.msra.mxu0 %v765
    %851 = vmatpush.bf16.msra.mxu0 %v761
    %852 = vmatpush.bf16.msra.mxu0 %v757
    %853 = vmatmul.bf16.gmra.mxu0 %v648
    %v854 = vpop.f32.mrf.mxu0
    %v855 = vadd.f32 %v653, %v854
    %v856 = vpop.f32.mrf.mxu0
    %857 = vdwg.mxu0
    %858 = vmatpush.bf16.msra.mxu0 %v786
    %859 = vmatpush.bf16.msra.mxu0 %v782
    %860 = vmatpush.bf16.msra.mxu0 %v778
    %861 = vmatpush.bf16.msra.mxu0 %v774
    %862 = vmatpush.bf16.msra.mxu0 %v770
    %863 = vmatpush.bf16.msra.mxu0 %v766
    %864 = vmatpush.bf16.msra.mxu0 %v762
    %865 = vmatpush.bf16.msra.mxu0 %v758
    %866 = vmatmul.bf16.gmra.mxu0 %v648
    %v867 = vpop.f32.mrf.mxu0
    %v868 = vadd.f32 %v654, %v867
    %v869 = vpop.f32.mrf.mxu0
    %870 = vdwg.mxu0
    %871 = vmax.xlane.f32.xlu0 %v829
    %v872 = vpop.xlane.xlu0 %871
    %v873 = vsub.f32 %v829, %v872
    %v874 = vmul.f32 %v873, 1.442695
    %v875 = vpow.pop %v874
    %876 = vadd.xlane.f32.xlu0 %v875
    %v877 = vpop.xlane.xlu0 %876
    %v878 = vrcp.pop %v877
    %v879 = vmul.f32 %v875, %v878
    %880 = vmax.xlane.f32.xlu0 %v842
    %v881 = vpop.xlane.xlu0 %880
    %v882 = vsub.f32 %v842, %v881
    %v883 = vmul.f32 %v882, 1.442695
    %v884 = vpow.pop %v883
    %885 = vadd.xlane.f32.xlu0 %v884
    %v886 = vpop.xlane.xlu0 %885
    %v887 = vrcp.pop %v886
    %v888 = vmul.f32 %v884, %v887
    %889 = vmax.xlane.f32.xlu0 %v855
    %v890 = vpop.xlane.xlu0 %889
    %v891 = vsub.f32 %v855, %v890
    %v892 = vmul.f32 %v891, 1.442695
    %v893 = vpow.pop %v892
    %894 = vadd.xlane.f32.xlu0 %v893
    %v895 = vpop.xlane.xlu0 %894
    %v896 = vrcp.pop %v895
    %v897 = vmul.f32 %v893, %v896
    %898 = vmax.xlane.f32.xlu0 %v868
    %v899 = vpop.xlane.xlu0 %898
    %v900 = vsub.f32 %v868, %v899
    %v901 = vmul.f32 %v900, 1.442695
    %v902 = vpow.pop %v901
    %903 = vadd.xlane.f32.xlu0 %v902
    %v904 = vpop.xlane.xlu0 %903
    %v905 = vrcp.pop %v904
    %v906 = vmul.f32 %v902, %v905
    %v907 = vld [vmem:[#allocation10] sm:$0xf]
    %v908 = vld [vmem:[#allocation10 + $0x4] sm:$0xf]
    %v909 = vld [vmem:[#allocation10 + $0x8] sm:$0xf]
    %v910 = vld [vmem:[#allocation10 + $0xc] sm:$0xf]
    %v911 = vld [vmem:[#allocation10 + $0x10] sm:$0xf]
    %v912 = vld [vmem:[#allocation10 + $0x14] sm:$0xf]
    %v913 = vld [vmem:[#allocation10 + $0x18] sm:$0xf]
    %v914 = vld [vmem:[#allocation10 + $0x1c] sm:$0xf]
    %v915 = vld [vmem:[#allocation10 + $0x20] sm:$0xf]
    %v916 = vld [vmem:[#allocation10 + $0x24] sm:$0xf]
    %v917 = vld [vmem:[#allocation10 + $0x28] sm:$0xf]
    %v918 = vld [vmem:[#allocation10 + $0x2c] sm:$0xf]
    %v919 = vld [vmem:[#allocation10 + $0x30] sm:$0xf]
    %v920 = vld [vmem:[#allocation10 + $0x34] sm:$0xf]
    %v921 = vld [vmem:[#allocation10 + $0x38] sm:$0xf]
    %v922 = vld [vmem:[#allocation10 + $0x3c] sm:$0xf]
    %v923 = vld [vmem:[#allocation10 + $0x40] sm:$0xf]
    %v924 = vld [vmem:[#allocation10 + $0x44] sm:$0xf]
    %v925 = vld [vmem:[#allocation10 + $0x48] sm:$0xf]
    %v926 = vld [vmem:[#allocation10 + $0x4c] sm:$0xf]
    %v927 = vld [vmem:[#allocation10 + $0x50] sm:$0xf]
    %v928 = vld [vmem:[#allocation10 + $0x54] sm:$0xf]
    %v929 = vld [vmem:[#allocation10 + $0x58] sm:$0xf]
    %v930 = vld [vmem:[#allocation10 + $0x5c] sm:$0xf]
    %v931 = vld [vmem:[#allocation10 + $0x60] sm:$0xf]
    %v932 = vld [vmem:[#allocation10 + $0x64] sm:$0xf]
    %v933 = vld [vmem:[#allocation10 + $0x68] sm:$0xf]
    %v934 = vld [vmem:[#allocation10 + $0x6c] sm:$0xf]
    %v935 = vld [vmem:[#allocation10 + $0x70] sm:$0xf]
    %v936 = vld [vmem:[#allocation10 + $0x74] sm:$0xf]
    %v937 = vld [vmem:[#allocation10 + $0x78] sm:$0xf]
    %v938 = vld [vmem:[#allocation10 + $0x7c] sm:$0xf]
    %v939 = vld [vmem:[#allocation10 + $0x80] sm:$0xf]
    %v940 = vld [vmem:[#allocation10 + $0x84] sm:$0xf]
    %v941 = vld [vmem:[#allocation10 + $0x88] sm:$0xf]
    %v942 = vld [vmem:[#allocation10 + $0x8c] sm:$0xf]
    %v943 = vld [vmem:[#allocation10 + $0x90] sm:$0xf]
    %v944 = vld [vmem:[#allocation10 + $0x94] sm:$0xf]
    %v945 = vld [vmem:[#allocation10 + $0x98] sm:$0xf]
    %v946 = vld [vmem:[#allocation10 + $0x9c] sm:$0xf]
    %v947 = vld [vmem:[#allocation10 + $0xa0] sm:$0xf]
    %v948 = vld [vmem:[#allocation10 + $0xa4] sm:$0xf]
    %v949 = vld [vmem:[#allocation10 + $0xa8] sm:$0xf]
    %v950 = vld [vmem:[#allocation10 + $0xac] sm:$0xf]
    %v951 = vld [vmem:[#allocation10 + $0xb0] sm:$0xf]
    %v952 = vld [vmem:[#allocation10 + $0xb4] sm:$0xf]
    %v953 = vld [vmem:[#allocation10 + $0xb8] sm:$0xf]
    %v954 = vld [vmem:[#allocation10 + $0xbc] sm:$0xf]
    %v955 = vld [vmem:[#allocation10 + $0xc0] sm:$0xf]
    %v956 = vld [vmem:[#allocation10 + $0xc4] sm:$0xf]
    %v957 = vld [vmem:[#allocation10 + $0xc8] sm:$0xf]
    %v958 = vld [vmem:[#allocation10 + $0xcc] sm:$0xf]
    %v959 = vld [vmem:[#allocation10 + $0xd0] sm:$0xf]
    %v960 = vld [vmem:[#allocation10 + $0xd4] sm:$0xf]
    %v961 = vld [vmem:[#allocation10 + $0xd8] sm:$0xf]
    %v962 = vld [vmem:[#allocation10 + $0xdc] sm:$0xf]
    %v963 = vld [vmem:[#allocation10 + $0xe0] sm:$0xf]
    %v964 = vld [vmem:[#allocation10 + $0xe4] sm:$0xf]
    %v965 = vld [vmem:[#allocation10 + $0xe8] sm:$0xf]
    %v966 = vld [vmem:[#allocation10 + $0xec] sm:$0xf]
    %v967 = vld [vmem:[#allocation10 + $0xf0] sm:$0xf]
    %v968 = vld [vmem:[#allocation10 + $0xf4] sm:$0xf]
    %v969 = vld [vmem:[#allocation10 + $0xf8] sm:$0xf]
    %v970 = vld [vmem:[#allocation10 + $0xfc] sm:$0xf]
    %v971 = vpack.c.bf16 %v879, %v879
    %v972 = vpack.c.bf16 %v888, %v888
    %v973 = vpack.c.bf16 %v897, %v897
    %v974 = vpack.c.bf16 %v906, %v906
    %v1039 = vunpack.c.l.b16 %v907
    %v1040 = vunpack.c.l.b16 %v908
    %v1041 = vunpack.c.l.b16 %v909
    %v1042 = vunpack.c.l.b16 %v910
    %v1043 = vunpack.c.l.b16 %v911
    %v1044 = vunpack.c.l.b16 %v912
    %v1045 = vunpack.c.l.b16 %v913
    %v1046 = vunpack.c.l.b16 %v914
    %v1047 = vunpack.c.l.b16 %v915
    %v1048 = vunpack.c.l.b16 %v916
    %v1049 = vunpack.c.l.b16 %v917
    %v1050 = vunpack.c.l.b16 %v918
    %v1051 = vunpack.c.l.b16 %v919
    %v1052 = vunpack.c.l.b16 %v920
    %v1053 = vunpack.c.l.b16 %v921
    %v1054 = vunpack.c.l.b16 %v922
    %v1055 = vunpack.c.l.b16 %v923
    %v1056 = vunpack.c.l.b16 %v924
    %v1057 = vunpack.c.l.b16 %v925
    %v1058 = vunpack.c.l.b16 %v926
    %v1059 = vunpack.c.l.b16 %v927
    %v1060 = vunpack.c.l.b16 %v928
    %v1061 = vunpack.c.l.b16 %v929
    %v1062 = vunpack.c.l.b16 %v930
    %v1063 = vunpack.c.l.b16 %v931
    %v1064 = vunpack.c.l.b16 %v932
    %v1065 = vunpack.c.l.b16 %v933
    %v1066 = vunpack.c.l.b16 %v934
    %v1067 = vunpack.c.l.b16 %v935
    %v1068 = vunpack.c.l.b16 %v936
    %v1069 = vunpack.c.l.b16 %v937
    %v1070 = vunpack.c.l.b16 %v938
    %v1071 = vunpack.c.l.b16 %v939
    %v1072 = vunpack.c.l.b16 %v940
    %v1073 = vunpack.c.l.b16 %v941
    %v1074 = vunpack.c.l.b16 %v942
    %v1075 = vunpack.c.l.b16 %v943
    %v1076 = vunpack.c.l.b16 %v944
    %v1077 = vunpack.c.l.b16 %v945
    %v1078 = vunpack.c.l.b16 %v946
    %v1079 = vunpack.c.l.b16 %v947
    %v1080 = vunpack.c.l.b16 %v948
    %v1081 = vunpack.c.l.b16 %v949
    %v1082 = vunpack.c.l.b16 %v950
    %v1083 = vunpack.c.l.b16 %v951
    %v1084 = vunpack.c.l.b16 %v952
    %v1085 = vunpack.c.l.b16 %v953
    %v1086 = vunpack.c.l.b16 %v954
    %v1087 = vunpack.c.l.b16 %v955
    %v1088 = vunpack.c.l.b16 %v956
    %v1089 = vunpack.c.l.b16 %v957
    %v1090 = vunpack.c.l.b16 %v958
    %v1091 = vunpack.c.l.b16 %v959
    %v1092 = vunpack.c.l.b16 %v960
    %v1093 = vunpack.c.l.b16 %v961
    %v1094 = vunpack.c.l.b16 %v962
    %v1095 = vunpack.c.l.b16 %v963
    %v1096 = vunpack.c.l.b16 %v964
    %v1097 = vunpack.c.l.b16 %v965
    %v1098 = vunpack.c.l.b16 %v966
    %v1099 = vunpack.c.l.b16 %v967
    %v1100 = vunpack.c.l.b16 %v968
    %v1101 = vunpack.c.l.b16 %v969
    %v1102 = vunpack.c.l.b16 %v970
    %v1103 = vpack.c.b16 %v1040, %v1039
    %v1104 = vpack.c.b16 %v1042, %v1041
    %v1105 = vpack.c.b16 %v1044, %v1043
    %v1106 = vpack.c.b16 %v1046, %v1045
    %v1107 = vpack.c.b16 %v1048, %v1047
    %v1108 = vpack.c.b16 %v1050, %v1049
    %v1109 = vpack.c.b16 %v1052, %v1051
    %v1110 = vpack.c.b16 %v1054, %v1053
    %v1111 = vpack.c.b16 %v1056, %v1055
    %v1112 = vpack.c.b16 %v1058, %v1057
    %v1113 = vpack.c.b16 %v1060, %v1059
    %v1114 = vpack.c.b16 %v1062, %v1061
    %v1115 = vpack.c.b16 %v1064, %v1063
    %v1116 = vpack.c.b16 %v1066, %v1065
    %v1117 = vpack.c.b16 %v1068, %v1067
    %v1118 = vpack.c.b16 %v1070, %v1069
    %v1119 = vpack.c.b16 %v1072, %v1071
    %v1120 = vpack.c.b16 %v1074, %v1073
    %v1121 = vpack.c.b16 %v1076, %v1075
    %v1122 = vpack.c.b16 %v1078, %v1077
    %v1123 = vpack.c.b16 %v1080, %v1079
    %v1124 = vpack.c.b16 %v1082, %v1081
    %v1125 = vpack.c.b16 %v1084, %v1083
    %v1126 = vpack.c.b16 %v1086, %v1085
    %v1127 = vpack.c.b16 %v1088, %v1087
    %v1128 = vpack.c.b16 %v1090, %v1089
    %v1129 = vpack.c.b16 %v1092, %v1091
    %v1130 = vpack.c.b16 %v1094, %v1093
    %v1131 = vpack.c.b16 %v1096, %v1095
    %v1132 = vpack.c.b16 %v1098, %v1097
    %v1133 = vpack.c.b16 %v1100, %v1099
    %v1134 = vpack.c.b16 %v1102, %v1101
    %1167 = vmatpush.bf16.msra.mxu0 %v1110
    %1168 = vmatpush.bf16.msra.mxu0 %v1109
    %1169 = vmatpush.bf16.msra.mxu0 %v1108
    %1170 = vmatpush.bf16.msra.mxu0 %v1107
    %1171 = vmatpush.bf16.msra.mxu0 %v1106
    %1172 = vmatpush.bf16.msra.mxu0 %v1105
    %1173 = vmatpush.bf16.msra.mxu0 %v1104
    %1174 = vmatpush.bf16.msra.mxu0 %v1103
    %1175 = vmatmul.bf16.gmra.mxu0 %v971
    %v1176 = vpop.f32.mrf.mxu0
    %v1177 = vadd.f32 0.0, %v1176
    %v1178 = vpop.f32.mrf.mxu0
    %1179 = vdwg.mxu0
    %1180 = vmatpush.bf16.msra.mxu0 %v1118
    %1181 = vmatpush.bf16.msra.mxu0 %v1117
    %1182 = vmatpush.bf16.msra.mxu0 %v1116
    %1183 = vmatpush.bf16.msra.mxu0 %v1115
    %1184 = vmatpush.bf16.msra.mxu0 %v1114
    %1185 = vmatpush.bf16.msra.mxu0 %v1113
    %1186 = vmatpush.bf16.msra.mxu0 %v1112
    %1187 = vmatpush.bf16.msra.mxu0 %v1111
    %1188 = vmatmul.bf16.gmra.mxu0 %v972
    %v1189 = vpop.f32.mrf.mxu0
    %v1190 = vadd.f32 %v1177, %v1189
    %v1191 = vpop.f32.mrf.mxu0
    %1192 = vdwg.mxu0
    %1193 = vmatpush.bf16.msra.mxu0 %v1126
    %1194 = vmatpush.bf16.msra.mxu0 %v1125
    %1195 = vmatpush.bf16.msra.mxu0 %v1124
    %1196 = vmatpush.bf16.msra.mxu0 %v1123
    %1197 = vmatpush.bf16.msra.mxu0 %v1122
    %1198 = vmatpush.bf16.msra.mxu0 %v1121
    %1199 = vmatpush.bf16.msra.mxu0 %v1120
    %1200 = vmatpush.bf16.msra.mxu0 %v1119
    %1201 = vmatmul.bf16.gmra.mxu0 %v973
    %v1202 = vpop.f32.mrf.mxu0
    %v1203 = vadd.f32 %v1190, %v1202
    %v1204 = vpop.f32.mrf.mxu0
    %1205 = vdwg.mxu0
    %1206 = vmatpush.bf16.msra.mxu0 %v1134
    %1207 = vmatpush.bf16.msra.mxu0 %v1133
    %1208 = vmatpush.bf16.msra.mxu0 %v1132
    %1209 = vmatpush.bf16.msra.mxu0 %v1131
    %1210 = vmatpush.bf16.msra.mxu0 %v1130
    %1211 = vmatpush.bf16.msra.mxu0 %v1129
    %1212 = vmatpush.bf16.msra.mxu0 %v1128
    %1213 = vmatpush.bf16.msra.mxu0 %v1127
    %1214 = vmatmul.bf16.gmra.mxu0 %v974
    %v1215 = vpop.f32.mrf.mxu0
    %v1216 = vadd.f32 %v1203, %v1215
    %v1217 = vpop.f32.mrf.mxu0
    %1218 = vdwg.mxu0
    %v1219 = vld [vmem:[#allocation11] sm:$0xf]
    %v1220 = vld [vmem:[#allocation11 + $0x4] sm:$0xf]
    %v1221 = vld [vmem:[#allocation11 + $0x8] sm:$0xf]
    %v1222 = vld [vmem:[#allocation11 + $0xc] sm:$0xf]
    %v1223 = vld [vmem:[#allocation11 + $0x10] sm:$0xf]
    %v1224 = vld [vmem:[#allocation11 + $0x14] sm:$0xf]
    %v1225 = vld [vmem:[#allocation11 + $0x18] sm:$0xf]
    %v1226 = vld [vmem:[#allocation11 + $0x1c] sm:$0xf]
    %v1227 = vld [vmem:[#allocation11 + $0x20] sm:$0xf]
    %v1228 = vld [vmem:[#allocation11 + $0x24] sm:$0xf]
    %v1229 = vld [vmem:[#allocation11 + $0x28] sm:$0xf]
    %v1230 = vld [vmem:[#allocation11 + $0x2c] sm:$0xf]
    %v1231 = vld [vmem:[#allocation11 + $0x30] sm:$0xf]
    %v1232 = vld [vmem:[#allocation11 + $0x34] sm:$0xf]
    %v1233 = vld [vmem:[#allocation11 + $0x38] sm:$0xf]
    %v1234 = vld [vmem:[#allocation11 + $0x3c] sm:$0xf]
    %v1235 = vpack.c.bf16 %v1216, %v1216
    %v1236 = vld [vmem:[#allocation13] sm:$0x1]
    %v1238 = vperm.slane %v1236, 0
    %v1256 = vunpack.c.l.b16 %v1219
    %v1257 = vunpack.c.l.b16 %v1220
    %v1258 = vunpack.c.l.b16 %v1221
    %v1259 = vunpack.c.l.b16 %v1222
    %v1260 = vunpack.c.l.b16 %v1223
    %v1261 = vunpack.c.l.b16 %v1224
    %v1262 = vunpack.c.l.b16 %v1225
    %v1263 = vunpack.c.l.b16 %v1226
    %v1264 = vunpack.c.l.b16 %v1227
    %v1265 = vunpack.c.l.b16 %v1228
    %v1266 = vunpack.c.l.b16 %v1229
    %v1267 = vunpack.c.l.b16 %v1230
    %v1268 = vunpack.c.l.b16 %v1231
    %v1269 = vunpack.c.l.b16 %v1232
    %v1270 = vunpack.c.l.b16 %v1233
    %v1271 = vunpack.c.l.b16 %v1234
    %v1272 = vpack.c.b16 %v1257, %v1256
    %v1273 = vpack.c.b16 %v1259, %v1258
    %v1274 = vpack.c.b16 %v1261, %v1260
    %v1275 = vpack.c.b16 %v1263, %v1262
    %v1276 = vpack.c.b16 %v1265, %v1264
    %v1277 = vpack.c.b16 %v1267, %v1266
    %v1278 = vpack.c.b16 %v1269, %v1268
    %v1279 = vpack.c.b16 %v1271, %v1270
    %1288 = vmatpush.bf16.msra.mxu0 %v1279
    %1289 = vmatpush.bf16.msra.mxu0 %v1278
    %1290 = vmatpush.bf16.msra.mxu0 %v1277
    %1291 = vmatpush.bf16.msra.mxu0 %v1276
    %1292 = vmatpush.bf16.msra.mxu0 %v1275
    %1293 = vmatpush.bf16.msra.mxu0 %v1274
    %1294 = vmatpush.bf16.msra.mxu0 %v1273
    %1295 = vmatpush.bf16.msra.mxu0 %v1272
    %1296 = vmatmul.bf16.gmra.mxu0 %v1235
    %v1297 = vpop.f32.mrf.mxu0
    %v1298 = vadd.f32 %v1238, %v1297
    %v1299 = vpop.f32.mrf.mxu0
    %1300 = vdwg.mxu0
    %v1301 = vld [vmem:[#allocation14] sm:$0xf]
    %v1302 = vld [vmem:[#allocation14 + $0x4] sm:$0xf]
    %v1303 = vld [vmem:[#allocation14 + $0x8] sm:$0xf]
    %v1304 = vld [vmem:[#allocation14 + $0xc] sm:$0xf]
    %v1305 = vld [vmem:[#allocation14 + $0x10] sm:$0xf]
    %v1306 = vld [vmem:[#allocation14 + $0x14] sm:$0xf]
    %v1307 = vld [vmem:[#allocation14 + $0x18] sm:$0xf]
    %v1308 = vld [vmem:[#allocation14 + $0x1c] sm:$0xf]
    %v1309 = vld [vmem:[#allocation14 + $0x20] sm:$0xf]
    %v1310 = vld [vmem:[#allocation14 + $0x24] sm:$0xf]
    %v1311 = vld [vmem:[#allocation14 + $0x28] sm:$0xf]
    %v1312 = vld [vmem:[#allocation14 + $0x2c] sm:$0xf]
    %v1313 = vld [vmem:[#allocation14 + $0x30] sm:$0xf]
    %v1314 = vld [vmem:[#allocation14 + $0x34] sm:$0xf]
    %v1315 = vld [vmem:[#allocation14 + $0x38] sm:$0xf]
    %v1316 = vld [vmem:[#allocation14 + $0x3c] sm:$0xf]
    %v1317 = vpack.c.bf16 %v615, %v615
    %v1318 = vld [vmem:[#allocation16] sm:$0x1]
    %v1320 = vperm.slane %v1318, 0
    %v1338 = vunpack.c.l.b16 %v1301
    %v1339 = vunpack.c.l.b16 %v1302
    %v1340 = vunpack.c.l.b16 %v1303
    %v1341 = vunpack.c.l.b16 %v1304
    %v1342 = vunpack.c.l.b16 %v1305
    %v1343 = vunpack.c.l.b16 %v1306
    %v1344 = vunpack.c.l.b16 %v1307
    %v1345 = vunpack.c.l.b16 %v1308
    %v1346 = vunpack.c.l.b16 %v1309
    %v1347 = vunpack.c.l.b16 %v1310
    %v1348 = vunpack.c.l.b16 %v1311
    %v1349 = vunpack.c.l.b16 %v1312
    %v1350 = vunpack.c.l.b16 %v1313
    %v1351 = vunpack.c.l.b16 %v1314
    %v1352 = vunpack.c.l.b16 %v1315
    %v1353 = vunpack.c.l.b16 %v1316
    %v1354 = vpack.c.b16 %v1339, %v1338
    %v1355 = vpack.c.b16 %v1341, %v1340
    %v1356 = vpack.c.b16 %v1343, %v1342
    %v1357 = vpack.c.b16 %v1345, %v1344
    %v1358 = vpack.c.b16 %v1347, %v1346
    %v1359 = vpack.c.b16 %v1349, %v1348
    %v1360 = vpack.c.b16 %v1351, %v1350
    %v1361 = vpack.c.b16 %v1353, %v1352
    %1370 = vmatpush.bf16.msra.mxu0 %v1361
    %1371 = vmatpush.bf16.msra.mxu0 %v1360
    %1372 = vmatpush.bf16.msra.mxu0 %v1359
    %1373 = vmatpush.bf16.msra.mxu0 %v1358
    %1374 = vmatpush.bf16.msra.mxu0 %v1357
    %1375 = vmatpush.bf16.msra.mxu0 %v1356
    %1376 = vmatpush.bf16.msra.mxu0 %v1355
    %1377 = vmatpush.bf16.msra.mxu0 %v1354
    %1378 = vmatmul.bf16.gmra.mxu0 %v1317
    %v1379 = vpop.f32.mrf.mxu0
    %v1380 = vadd.f32 %v1320, %v1379
    %v1381 = vpop.f32.mrf.mxu0
    %1382 = vdwg.mxu0
    %v1383 = vld [vmem:[#allocation17] sm:$0xff]
    %v1384 = vld [vmem:[#allocation17 + $0x8] sm:$0xff]
    %v1385 = vld [vmem:[#allocation17 + $0x10] sm:$0xff]
    %v1386 = vld [vmem:[#allocation17 + $0x18] sm:$0xff]
    %v1387 = vld [vmem:[#allocation17 + $0x20] sm:$0xff]
    %v1388 = vld [vmem:[#allocation17 + $0x28] sm:$0xff]
    %v1389 = vld [vmem:[#allocation17 + $0x30] sm:$0xff]
    %v1390 = vld [vmem:[#allocation17 + $0x38] sm:$0xff]
    %v1391 = vld [vmem:[#allocation17 + $0x40] sm:$0xff]
    %v1392 = vld [vmem:[#allocation17 + $0x48] sm:$0xff]
    %v1393 = vld [vmem:[#allocation17 + $0x50] sm:$0xff]
    %v1394 = vld [vmem:[#allocation17 + $0x58] sm:$0xff]
    %v1395 = vld [vmem:[#allocation17 + $0x60] sm:$0xff]
    %v1396 = vld [vmem:[#allocation17 + $0x68] sm:$0xff]
    %v1397 = vld [vmem:[#allocation17 + $0x70] sm:$0xff]
    %v1398 = vld [vmem:[#allocation17 + $0x78] sm:$0xff]
    %v1399 = vpack.c.bf16 %v571, %v571
    %v1400 = vld [vmem:[#allocation17 + $0x80] sm:$0xff]
    %v1401 = vld [vmem:[#allocation17 + $0x88] sm:$0xff]
    %v1402 = vld [vmem:[#allocation17 + $0x90] sm:$0xff]
    %v1403 = vld [vmem:[#allocation17 + $0x98] sm:$0xff]
    %v1404 = vld [vmem:[#allocation17 + $0xa0] sm:$0xff]
    %v1405 = vld [vmem:[#allocation17 + $0xa8] sm:$0xff]
    %v1406 = vld [vmem:[#allocation17 + $0xb0] sm:$0xff]
    %v1407 = vld [vmem:[#allocation17 + $0xb8] sm:$0xff]
    %v1408 = vld [vmem:[#allocation17 + $0xc0] sm:$0xff]
    %v1409 = vld [vmem:[#allocation17 + $0xc8] sm:$0xff]
    %v1410 = vld [vmem:[#allocation17 + $0xd0] sm:$0xff]
    %v1411 = vld [vmem:[#allocation17 + $0xd8] sm:$0xff]
    %v1412 = vld [vmem:[#allocation17 + $0xe0] sm:$0xff]
    %v1413 = vld [vmem:[#allocation17 + $0xe8] sm:$0xff]
    %v1414 = vld [vmem:[#allocation17 + $0xf0] sm:$0xff]
    %v1415 = vld [vmem:[#allocation17 + $0xf8] sm:$0xff]
    %v1416 = vpack.c.bf16 %v1380, %v1380
    %v1433 = vunpack.c.l.b16 %v1400
    %v1434 = vunpack.c.h.b16 %v1400
    %v1435 = vunpack.c.l.b16 %v1401
    %v1436 = vunpack.c.h.b16 %v1401
    %v1437 = vunpack.c.l.b16 %v1402
    %v1438 = vunpack.c.h.b16 %v1402
    %v1439 = vunpack.c.l.b16 %v1403
    %v1440 = vunpack.c.h.b16 %v1403
    %v1441 = vunpack.c.l.b16 %v1404
    %v1442 = vunpack.c.h.b16 %v1404
    %v1443 = vunpack.c.l.b16 %v1405
    %v1444 = vunpack.c.h.b16 %v1405
    %v1445 = vunpack.c.l.b16 %v1406
    %v1446 = vunpack.c.h.b16 %v1406
    %v1447 = vunpack.c.l.b16 %v1407
    %v1448 = vunpack.c.h.b16 %v1407
    %v1449 = vunpack.c.l.b16 %v1408
    %v1450 = vunpack.c.h.b16 %v1408
    %v1451 = vunpack.c.l.b16 %v1409
    %v1452 = vunpack.c.h.b16 %v1409
    %v1453 = vunpack.c.l.b16 %v1410
    %v1454 = vunpack.c.h.b16 %v1410
    %v1455 = vunpack.c.l.b16 %v1411
    %v1456 = vunpack.c.h.b16 %v1411
    %v1457 = vunpack.c.l.b16 %v1412
    %v1458 = vunpack.c.h.b16 %v1412
    %v1459 = vunpack.c.l.b16 %v1413
    %v1460 = vunpack.c.h.b16 %v1413
    %v1461 = vunpack.c.l.b16 %v1414
    %v1462 = vunpack.c.h.b16 %v1414
    %v1463 = vunpack.c.l.b16 %v1415
    %v1464 = vunpack.c.h.b16 %v1415
    %v1465 = vpack.c.b16 %v1435, %v1433
    %v1466 = vpack.c.b16 %v1436, %v1434
    %v1467 = vpack.c.b16 %v1439, %v1437
    %v1468 = vpack.c.b16 %v1440, %v1438
    %v1469 = vpack.c.b16 %v1443, %v1441
    %v1470 = vpack.c.b16 %v1444, %v1442
    %v1471 = vpack.c.b16 %v1447, %v1445
    %v1472 = vpack.c.b16 %v1448, %v1446
    %v1473 = vpack.c.b16 %v1451, %v1449
    %v1474 = vpack.c.b16 %v1452, %v1450
    %v1475 = vpack.c.b16 %v1455, %v1453
    %v1476 = vpack.c.b16 %v1456, %v1454
    %v1477 = vpack.c.b16 %v1459, %v1457
    %v1478 = vpack.c.b16 %v1460, %v1458
    %v1479 = vpack.c.b16 %v1463, %v1461
    %v1480 = vpack.c.b16 %v1464, %v1462
    %1497 = vmatpush.bf16.msra.mxu0 %v1479
    %1498 = vmatpush.bf16.msra.mxu0 %v1477
    %1499 = vmatpush.bf16.msra.mxu0 %v1475
    %1500 = vmatpush.bf16.msra.mxu0 %v1473
    %1501 = vmatpush.bf16.msra.mxu0 %v1471
    %1502 = vmatpush.bf16.msra.mxu0 %v1469
    %1503 = vmatpush.bf16.msra.mxu0 %v1467
    %1504 = vmatpush.bf16.msra.mxu0 %v1465
    %1505 = vmatmul.bf16.gmra.mxu0 %v1416
    %v1506 = vpop.f32.mrf.mxu0
    %v1507 = vadd.f32 0.0, %v1506
    %v1508 = vpop.f32.mrf.mxu0
    %1509 = vdwg.mxu0
    %1510 = vmatpush.bf16.msra.mxu0 %v1480
    %1511 = vmatpush.bf16.msra.mxu0 %v1478
    %1512 = vmatpush.bf16.msra.mxu0 %v1476
    %1513 = vmatpush.bf16.msra.mxu0 %v1474
    %1514 = vmatpush.bf16.msra.mxu0 %v1472
    %1515 = vmatpush.bf16.msra.mxu0 %v1470
    %1516 = vmatpush.bf16.msra.mxu0 %v1468
    %1517 = vmatpush.bf16.msra.mxu0 %v1466
    %1518 = vmatmul.bf16.gmra.mxu0 %v1416
    %v1519 = vpop.f32.mrf.mxu0
    %v1520 = vadd.f32 0.0, %v1519
    %v1521 = vpop.f32.mrf.mxu0
    %1522 = vdwg.mxu0
    %v1539 = vunpack.c.l.b16 %v1383
    %v1540 = vunpack.c.h.b16 %v1383
    %v1541 = vunpack.c.l.b16 %v1384
    %v1542 = vunpack.c.h.b16 %v1384
    %v1543 = vunpack.c.l.b16 %v1385
    %v1544 = vunpack.c.h.b16 %v1385
    %v1545 = vunpack.c.l.b16 %v1386
    %v1546 = vunpack.c.h.b16 %v1386
    %v1547 = vunpack.c.l.b16 %v1387
    %v1548 = vunpack.c.h.b16 %v1387
    %v1549 = vunpack.c.l.b16 %v1388
    %v1550 = vunpack.c.h.b16 %v1388
    %v1551 = vunpack.c.l.b16 %v1389
    %v1552 = vunpack.c.h.b16 %v1389
    %v1553 = vunpack.c.l.b16 %v1390
    %v1554 = vunpack.c.h.b16 %v1390
    %v1555 = vunpack.c.l.b16 %v1391
    %v1556 = vunpack.c.h.b16 %v1391
    %v1557 = vunpack.c.l.b16 %v1392
    %v1558 = vunpack.c.h.b16 %v1392
    %v1559 = vunpack.c.l.b16 %v1393
    %v1560 = vunpack.c.h.b16 %v1393
    %v1561 = vunpack.c.l.b16 %v1394
    %v1562 = vunpack.c.h.b16 %v1394
    %v1563 = vunpack.c.l.b16 %v1395
    %v1564 = vunpack.c.h.b16 %v1395
    %v1565 = vunpack.c.l.b16 %v1396
    %v1566 = vunpack.c.h.b16 %v1396
    %v1567 = vunpack.c.l.b16 %v1397
    %v1568 = vunpack.c.h.b16 %v1397
    %v1569 = vunpack.c.l.b16 %v1398
    %v1570 = vunpack.c.h.b16 %v1398
    %v1571 = vpack.c.b16 %v1541, %v1539
    %v1572 = vpack.c.b16 %v1542, %v1540
    %v1573 = vpack.c.b16 %v1545, %v1543
    %v1574 = vpack.c.b16 %v1546, %v1544
    %v1575 = vpack.c.b16 %v1549, %v1547
    %v1576 = vpack.c.b16 %v1550, %v1548
    %v1577 = vpack.c.b16 %v1553, %v1551
    %v1578 = vpack.c.b16 %v1554, %v1552
    %v1579 = vpack.c.b16 %v1557, %v1555
    %v1580 = vpack.c.b16 %v1558, %v1556
    %v1581 = vpack.c.b16 %v1561, %v1559
    %v1582 = vpack.c.b16 %v1562, %v1560
    %v1583 = vpack.c.b16 %v1565, %v1563
    %v1584 = vpack.c.b16 %v1566, %v1564
    %v1585 = vpack.c.b16 %v1569, %v1567
    %v1586 = vpack.c.b16 %v1570, %v1568
    %1603 = vmatpush.bf16.msra.mxu0 %v1585
    %1604 = vmatpush.bf16.msra.mxu0 %v1583
    %1605 = vmatpush.bf16.msra.mxu0 %v1581
    %1606 = vmatpush.bf16.msra.mxu0 %v1579
    %1607 = vmatpush.bf16.msra.mxu0 %v1577
    %1608 = vmatpush.bf16.msra.mxu0 %v1575
    %1609 = vmatpush.bf16.msra.mxu0 %v1573
    %1610 = vmatpush.bf16.msra.mxu0 %v1571
    %1611 = vmatmul.bf16.gmra.mxu0 %v1399
    %v1612 = vpop.f32.mrf.mxu0
    %v1613 = vadd.f32 %v1507, %v1612
    %v1614 = vpop.f32.mrf.mxu0
    %1615 = vdwg.mxu0
    %1616 = vmatpush.bf16.msra.mxu0 %v1586
    %1617 = vmatpush.bf16.msra.mxu0 %v1584
    %1618 = vmatpush.bf16.msra.mxu0 %v1582
    %1619 = vmatpush.bf16.msra.mxu0 %v1580
    %1620 = vmatpush.bf16.msra.mxu0 %v1578
    %1621 = vmatpush.bf16.msra.mxu0 %v1576
    %1622 = vmatpush.bf16.msra.mxu0 %v1574
    %1623 = vmatpush.bf16.msra.mxu0 %v1572
    %1624 = vmatmul.bf16.gmra.mxu0 %v1399
    %v1625 = vpop.f32.mrf.mxu0
    %v1626 = vadd.f32 %v1520, %v1625
    %v1627 = vpop.f32.mrf.mxu0
    %1628 = vdwg.mxu0
    %v1629 = vld [vmem:[#allocation17 + $0x100] sm:$0xff]
    %v1630 = vld [vmem:[#allocation17 + $0x108] sm:$0xff]
    %v1631 = vld [vmem:[#allocation17 + $0x110] sm:$0xff]
    %v1632 = vld [vmem:[#allocation17 + $0x118] sm:$0xff]
    %v1633 = vld [vmem:[#allocation17 + $0x120] sm:$0xff]
    %v1634 = vld [vmem:[#allocation17 + $0x128] sm:$0xff]
    %v1635 = vld [vmem:[#allocation17 + $0x130] sm:$0xff]
    %v1636 = vld [vmem:[#allocation17 + $0x138] sm:$0xff]
    %v1637 = vld [vmem:[#allocation17 + $0x140] sm:$0xff]
    %v1638 = vld [vmem:[#allocation17 + $0x148] sm:$0xff]
    %v1639 = vld [vmem:[#allocation17 + $0x150] sm:$0xff]
    %v1640 = vld [vmem:[#allocation17 + $0x158] sm:$0xff]
    %v1641 = vld [vmem:[#allocation17 + $0x160] sm:$0xff]
    %v1642 = vld [vmem:[#allocation17 + $0x168] sm:$0xff]
    %v1643 = vld [vmem:[#allocation17 + $0x170] sm:$0xff]
    %v1644 = vld [vmem:[#allocation17 + $0x178] sm:$0xff]
    %v1645 = vpack.c.bf16 %v1298, %v1298
    %v1662 = vunpack.c.l.b16 %v1629
    %v1663 = vunpack.c.h.b16 %v1629
    %v1664 = vunpack.c.l.b16 %v1630
    %v1665 = vunpack.c.h.b16 %v1630
    %v1666 = vunpack.c.l.b16 %v1631
    %v1667 = vunpack.c.h.b16 %v1631
    %v1668 = vunpack.c.l.b16 %v1632
    %v1669 = vunpack.c.h.b16 %v1632
    %v1670 = vunpack.c.l.b16 %v1633
    %v1671 = vunpack.c.h.b16 %v1633
    %v1672 = vunpack.c.l.b16 %v1634
    %v1673 = vunpack.c.h.b16 %v1634
    %v1674 = vunpack.c.l.b16 %v1635
    %v1675 = vunpack.c.h.b16 %v1635
    %v1676 = vunpack.c.l.b16 %v1636
    %v1677 = vunpack.c.h.b16 %v1636
    %v1678 = vunpack.c.l.b16 %v1637
    %v1679 = vunpack.c.h.b16 %v1637
    %v1680 = vunpack.c.l.b16 %v1638
    %v1681 = vunpack.c.h.b16 %v1638
    %v1682 = vunpack.c.l.b16 %v1639
    %v1683 = vunpack.c.h.b16 %v1639
    %v1684 = vunpack.c.l.b16 %v1640
    %v1685 = vunpack.c.h.b16 %v1640
    %v1686 = vunpack.c.l.b16 %v1641
    %v1687 = vunpack.c.h.b16 %v1641
    %v1688 = vunpack.c.l.b16 %v1642
    %v1689 = vunpack.c.h.b16 %v1642
    %v1690 = vunpack.c.l.b16 %v1643
    %v1691 = vunpack.c.h.b16 %v1643
    %v1692 = vunpack.c.l.b16 %v1644
    %v1693 = vunpack.c.h.b16 %v1644
    %v1694 = vpack.c.b16 %v1664, %v1662
    %v1695 = vpack.c.b16 %v1665, %v1663
    %v1696 = vpack.c.b16 %v1668, %v1666
    %v1697 = vpack.c.b16 %v1669, %v1667
    %v1698 = vpack.c.b16 %v1672, %v1670
    %v1699 = vpack.c.b16 %v1673, %v1671
    %v1700 = vpack.c.b16 %v1676, %v1674
    %v1701 = vpack.c.b16 %v1677, %v1675
    %v1702 = vpack.c.b16 %v1680, %v1678
    %v1703 = vpack.c.b16 %v1681, %v1679
    %v1704 = vpack.c.b16 %v1684, %v1682
    %v1705 = vpack.c.b16 %v1685, %v1683
    %v1706 = vpack.c.b16 %v1688, %v1686
    %v1707 = vpack.c.b16 %v1689, %v1687
    %v1708 = vpack.c.b16 %v1692, %v1690
    %v1709 = vpack.c.b16 %v1693, %v1691
    %1726 = vmatpush.bf16.msra.mxu0 %v1708
    %1727 = vmatpush.bf16.msra.mxu0 %v1706
    %1728 = vmatpush.bf16.msra.mxu0 %v1704
    %1729 = vmatpush.bf16.msra.mxu0 %v1702
    %1730 = vmatpush.bf16.msra.mxu0 %v1700
    %1731 = vmatpush.bf16.msra.mxu0 %v1698
    %1732 = vmatpush.bf16.msra.mxu0 %v1696
    %1733 = vmatpush.bf16.msra.mxu0 %v1694
    %1734 = vmatmul.bf16.gmra.mxu0 %v1645
    %v1735 = vpop.f32.mrf.mxu0
    %v1736 = vadd.f32 0.0, %v1735
    %v1737 = vpop.f32.mrf.mxu0
    %1738 = vdwg.mxu0
    %1739 = vmatpush.bf16.msra.mxu0 %v1709
    %1740 = vmatpush.bf16.msra.mxu0 %v1707
    %1741 = vmatpush.bf16.msra.mxu0 %v1705
    %1742 = vmatpush.bf16.msra.mxu0 %v1703
    %1743 = vmatpush.bf16.msra.mxu0 %v1701
    %1744 = vmatpush.bf16.msra.mxu0 %v1699
    %1745 = vmatpush.bf16.msra.mxu0 %v1697
    %1746 = vmatpush.bf16.msra.mxu0 %v1695
    %1747 = vmatmul.bf16.gmra.mxu0 %v1645
    %v1748 = vpop.f32.mrf.mxu0
    %v1749 = vadd.f32 0.0, %v1748
    %v1750 = vpop.f32.mrf.mxu0
    %1751 = vdwg.mxu0
    %v1752 = vadd.f32 %v1613, %v1736
    %v1753 = vadd.f32 %v1626, %v1749
    %v1754 = vld [vmem:[%s11] sm:$0x3]
    %v1756 = vperm.slane %v1754, 0
    %v1757 = vperm.slane %v1754, 1
    %v1760 = vadd.f32 %v1752, %v1756
    %v1761 = vadd.f32 %v1753, %v1757
    %vm1762 = vcmask 23552
    %v1763 = vsel %vm1762, %v1761, -inf
    %1764 = vmax.xlane.f32.xlu0 %v1763
    %v1765 = vpop.xlane.xlu0 %1764
    %v1766 = vsub.f32 %v1761, %v1765
    %v1767 = vmul.f32 %v1766, 1.442695
    %v1768 = vpow.pop %v1767
    %v1769 = vsel %vm1762, %v1768, 0.0
    %1770 = vadd.xlane.f32.xlu0 %v1769
    %v1771 = vpop.xlane.xlu0 %1770
    %v1772 = vrcp.pop %v1771
    %v1773 = vmul.f32 %v1771, %v1772
    %v1774 = vsub.f32 1.0, %v1773
    %v1775 = vmul.f32 %v1772, %v1774
    %v1776 = vadd.f32 %v1772, %v1775
    %vm1777 = vweird.f32 %v1771
    %vm1778 = vweird.f32 %v1772
    %vm1779 = vmor %vm1777, %vm1778
    %v1780 = vsel %vm1779, %v1772, %v1776
    %v1781 = vand.u32 2147483647, %v1771
    %vm1782 = vcmp.eq.f32.partialorder %v1781, 8.507059e+37
    %v1783 = vand.u32 %v1771, 2147483648
    %v1784 = vor.u32 1.1754944e-38, %v1783
    %v1785 = vsel %vm1782, %v1784, %v1780
    %v1786 = vmul.f32 %v1768, %v1785
    %v1787 = vlaneseq
    %v1788 = vand.u32 %v1787, 127
    %vm1789 = vcmp.lt.s32.totalorder %v1788, 32
    %v1790 = vsel %vm1789, %v1760, 0.0
    %1791 = vadd.xlane.f32.xlu0 %v1790
    %v1792 = vpop.xlane.xlu0 %1791
    %v1793 = vmul.f32 %v1792, 0.03125
    %v1794 = vsub.f32 %v1790, %v1793
    %v1795 = vsel %vm1789, %v1794, 0.0
    %v1796 = vmul.f32 %v1795, %v1795
    %1797 = vadd.xlane.f32.xlu0 %v1796
    %v1798 = vpop.xlane.xlu0 %1797
    %v1799 = vmul.f32 %v1798, 0.03125
    %v1800 = vadd.f32 %v1799, 1e-05
    %v1801 = vrsqrt.pop %v1800
    %v1802 = vmul.f32 %v1801, %v1800
    %v1803 = vmul.f32 %v1802, %v1801
    %v1804 = vmul.f32 0.5, %v1803
    %v1805 = vsub.f32 1.5, %v1804
    %v1806 = vmul.f32 %v1801, %v1805
    %vm1807 = vweird.f32 %v1800
    %vm1808 = vweird.f32 %v1801
    %vm1809 = vmor %vm1807, %vm1808
    %v1810 = vsel %vm1809, %v1801, %v1806
    %v1811 = vmul.f32 %v1795, %v1810
    %v1812 = vld [vmem:[%s12] sm:$0x1]
    %v1814 = vperm.slane %v1812, 0
    %v1816 = vmul.f32 %v1811, %v1814
    %v1817 = vld [vmem:[%s13] sm:$0x1]
    %v1819 = vperm.slane %v1817, 0
    %v1821 = vadd.f32 %v1816, %v1819
    %v1822 = vld [vmem:[#allocation19] sm:$0xff]
    %v1823 = vld [vmem:[#allocation19 + $0x8] sm:$0xff]
    %v1824 = vld [vmem:[#allocation19 + $0x10] sm:$0xff]
    %v1825 = vld [vmem:[#allocation19 + $0x18] sm:$0xff]
    %v1826 = vld [vmem:[#allocation19 + $0x20] sm:$0xff]
    %v1827 = vld [vmem:[#allocation19 + $0x28] sm:$0xff]
    %v1828 = vld [vmem:[#allocation19 + $0x30] sm:$0xff]
    %v1829 = vld [vmem:[#allocation19 + $0x38] sm:$0xff]
    %v1830 = vld [vmem:[#allocation19 + $0x40] sm:$0xff]
    %v1831 = vld [vmem:[#allocation19 + $0x48] sm:$0xff]
    %v1832 = vld [vmem:[#allocation19 + $0x50] sm:$0xff]
    %v1833 = vld [vmem:[#allocation19 + $0x58] sm:$0xff]
    %v1834 = vld [vmem:[#allocation19 + $0x60] sm:$0xff]
    %v1835 = vld [vmem:[#allocation19 + $0x68] sm:$0xff]
    %v1836 = vld [vmem:[#allocation19 + $0x70] sm:$0xff]
    %v1837 = vld [vmem:[#allocation19 + $0x78] sm:$0xff]
    %v1838 = vpack.c.bf16 %v1821, %v1821
    %v1839 = vld [vmem:[%s15] sm:$0x3]
    %v1841 = vperm.slane %v1839, 0
    %v1842 = vperm.slane %v1839, 1
    %v1861 = vunpack.c.l.b16 %v1822
    %v1862 = vunpack.c.h.b16 %v1822
    %v1863 = vunpack.c.l.b16 %v1823
    %v1864 = vunpack.c.h.b16 %v1823
    %v1865 = vunpack.c.l.b16 %v1824
    %v1866 = vunpack.c.h.b16 %v1824
    %v1867 = vunpack.c.l.b16 %v1825
    %v1868 = vunpack.c.h.b16 %v1825
    %v1869 = vunpack.c.l.b16 %v1826
    %v1870 = vunpack.c.h.b16 %v1826
    %v1871 = vunpack.c.l.b16 %v1827
    %v1872 = vunpack.c.h.b16 %v1827
    %v1873 = vunpack.c.l.b16 %v1828
    %v1874 = vunpack.c.h.b16 %v1828
    %v1875 = vunpack.c.l.b16 %v1829
    %v1876 = vunpack.c.h.b16 %v1829
    %v1877 = vunpack.c.l.b16 %v1830
    %v1878 = vunpack.c.h.b16 %v1830
    %v1879 = vunpack.c.l.b16 %v1831
    %v1880 = vunpack.c.h.b16 %v1831
    %v1881 = vunpack.c.l.b16 %v1832
    %v1882 = vunpack.c.h.b16 %v1832
    %v1883 = vunpack.c.l.b16 %v1833
    %v1884 = vunpack.c.h.b16 %v1833
    %v1885 = vunpack.c.l.b16 %v1834
    %v1886 = vunpack.c.h.b16 %v1834
    %v1887 = vunpack.c.l.b16 %v1835
    %v1888 = vunpack.c.h.b16 %v1835
    %v1889 = vunpack.c.l.b16 %v1836
    %v1890 = vunpack.c.h.b16 %v1836
    %v1891 = vunpack.c.l.b16 %v1837
    %v1892 = vunpack.c.h.b16 %v1837
    %v1893 = vpack.c.b16 %v1863, %v1861
    %v1894 = vpack.c.b16 %v1864, %v1862
    %v1895 = vpack.c.b16 %v1867, %v1865
    %v1896 = vpack.c.b16 %v1868, %v1866
    %v1897 = vpack.c.b16 %v1871, %v1869
    %v1898 = vpack.c.b16 %v1872, %v1870
    %v1899 = vpack.c.b16 %v1875, %v1873
    %v1900 = vpack.c.b16 %v1876, %v1874
    %v1901 = vpack.c.b16 %v1879, %v1877
    %v1902 = vpack.c.b16 %v1880, %v1878
    %v1903 = vpack.c.b16 %v1883, %v1881
    %v1904 = vpack.c.b16 %v1884, %v1882
    %v1905 = vpack.c.b16 %v1887, %v1885
    %v1906 = vpack.c.b16 %v1888, %v1886
    %v1907 = vpack.c.b16 %v1891, %v1889
    %v1908 = vpack.c.b16 %v1892, %v1890
    %1925 = vmatpush.bf16.msra.mxu0 %v1907
    %1926 = vmatpush.bf16.msra.mxu0 %v1905
    %1927 = vmatpush.bf16.msra.mxu0 %v1903
    %1928 = vmatpush.bf16.msra.mxu0 %v1901
    %1929 = vmatpush.bf16.msra.mxu0 %v1899
    %1930 = vmatpush.bf16.msra.mxu0 %v1897
    %1931 = vmatpush.bf16.msra.mxu0 %v1895
    %1932 = vmatpush.bf16.msra.mxu0 %v1893
    %1933 = vmatmul.bf16.gmra.mxu0 %v1838
    %v1934 = vpop.f32.mrf.mxu0
    %v1935 = vadd.f32 %v1841, %v1934
    %v1936 = vpop.f32.mrf.mxu0
    %1937 = vdwg.mxu0
    %1938 = vmatpush.bf16.msra.mxu0 %v1908
    %1939 = vmatpush.bf16.msra.mxu0 %v1906
    %1940 = vmatpush.bf16.msra.mxu0 %v1904
    %1941 = vmatpush.bf16.msra.mxu0 %v1902
    %1942 = vmatpush.bf16.msra.mxu0 %v1900
    %1943 = vmatpush.bf16.msra.mxu0 %v1898
    %1944 = vmatpush.bf16.msra.mxu0 %v1896
    %1945 = vmatpush.bf16.msra.mxu0 %v1894
    %1946 = vmatmul.bf16.gmra.mxu0 %v1838
    %v1947 = vpop.f32.mrf.mxu0
    %v1948 = vadd.f32 %v1842, %v1947
    %v1949 = vpop.f32.mrf.mxu0
    %1950 = vdwg.mxu0
    %v1951 = vxor.u32 %v1935, 2147483648
    %v1952 = vmul.f32 %v1951, 1.442695
    %v1953 = vpow.pop %v1952
    %v1954 = vadd.f32 %v1953, 1.0
    %v1955 = vrcp.pop %v1954
    %v1956 = vmul.f32 %v1954, %v1955
    %v1957 = vsub.f32 1.0, %v1956
    %v1958 = vmul.f32 %v1955, %v1957
    %v1959 = vadd.f32 %v1955, %v1958
    %vm1960 = vweird.f32 %v1954
    %vm1961 = vweird.f32 %v1955
    %vm1962 = vmor %vm1960, %vm1961
    %v1963 = vsel %vm1962, %v1955, %v1959
    %v1964 = vand.u32 2147483647, %v1954
    %vm1965 = vcmp.eq.f32.partialorder %v1964, 8.507059e+37
    %v1966 = vand.u32 %v1954, 2147483648
    %v1967 = vor.u32 1.1754944e-38, %v1966
    %v1968 = vsel %vm1965, %v1967, %v1963
    %v1969 = vmul.f32 1.0, %v1968
    %v1970 = vmul.f32 %v1935, %v1969
    %v1971 = vmul.f32 %v1970, %v1948
    %v1972 = vld [vmem:[#allocation20] sm:$0xf]
    %v1973 = vld [vmem:[#allocation20 + $0x4] sm:$0xf]
    %v1974 = vld [vmem:[#allocation20 + $0x8] sm:$0xf]
    %v1975 = vld [vmem:[#allocation20 + $0xc] sm:$0xf]
    %v1976 = vld [vmem:[#allocation20 + $0x10] sm:$0xf]
    %v1977 = vld [vmem:[#allocation20 + $0x14] sm:$0xf]
    %v1978 = vld [vmem:[#allocation20 + $0x18] sm:$0xf]
    %v1979 = vld [vmem:[#allocation20 + $0x1c] sm:$0xf]
    %v1980 = vld [vmem:[#allocation20 + $0x20] sm:$0xf]
    %v1981 = vld [vmem:[#allocation20 + $0x24] sm:$0xf]
    %v1982 = vld [vmem:[#allocation20 + $0x28] sm:$0xf]
    %v1983 = vld [vmem:[#allocation20 + $0x2c] sm:$0xf]
    %v1984 = vld [vmem:[#allocation20 + $0x30] sm:$0xf]
    %v1985 = vld [vmem:[#allocation20 + $0x34] sm:$0xf]
    %v1986 = vld [vmem:[#allocation20 + $0x38] sm:$0xf]
    %v1987 = vld [vmem:[#allocation20 + $0x3c] sm:$0xf]
    %v1988 = vpack.c.bf16 %v1971, %v1971
    %v1989 = vld [vmem:[%s17] sm:$0x1]
    %v1991 = vperm.slane %v1989, 0
    %v2009 = vunpack.c.l.b16 %v1972
    %v2010 = vunpack.c.l.b16 %v1973
    %v2011 = vunpack.c.l.b16 %v1974
    %v2012 = vunpack.c.l.b16 %v1975
    %v2013 = vunpack.c.l.b16 %v1976
    %v2014 = vunpack.c.l.b16 %v1977
    %v2015 = vunpack.c.l.b16 %v1978
    %v2016 = vunpack.c.l.b16 %v1979
    %v2017 = vunpack.c.l.b16 %v1980
    %v2018 = vunpack.c.l.b16 %v1981
    %v2019 = vunpack.c.l.b16 %v1982
    %v2020 = vunpack.c.l.b16 %v1983
    %v2021 = vunpack.c.l.b16 %v1984
    %v2022 = vunpack.c.l.b16 %v1985
    %v2023 = vunpack.c.l.b16 %v1986
    %v2024 = vunpack.c.l.b16 %v1987
    %v2025 = vpack.c.b16 %v2010, %v2009
    %v2026 = vpack.c.b16 %v2012, %v2011
    %v2027 = vpack.c.b16 %v2014, %v2013
    %v2028 = vpack.c.b16 %v2016, %v2015
    %v2029 = vpack.c.b16 %v2018, %v2017
    %v2030 = vpack.c.b16 %v2020, %v2019
    %v2031 = vpack.c.b16 %v2022, %v2021
    %v2032 = vpack.c.b16 %v2024, %v2023
    %2041 = vmatpush.bf16.msra.mxu0 %v2032
    %2042 = vmatpush.bf16.msra.mxu0 %v2031
    %2043 = vmatpush.bf16.msra.mxu0 %v2030
    %2044 = vmatpush.bf16.msra.mxu0 %v2029
    %2045 = vmatpush.bf16.msra.mxu0 %v2028
    %2046 = vmatpush.bf16.msra.mxu0 %v2027
    %2047 = vmatpush.bf16.msra.mxu0 %v2026
    %2048 = vmatpush.bf16.msra.mxu0 %v2025
    %2049 = vmatmul.bf16.gmra.mxu0 %v1988
    %v2050 = vpop.f32.mrf.mxu0
    %v2051 = vadd.f32 %v1991, %v2050
    %v2052 = vpop.f32.mrf.mxu0
    %2053 = vdwg.mxu0
    %2055 = vset.pattern.permute.xlu0 0
    %2056 = vperm.xlu0 %2055, %v1786
    %v2057 = vpop.permute.xlu0 %2056
    %v2059 = vmul.f32 %v2057, %v571
    %2060 = vset.pattern.permute.xlu0 1
    %2061 = vperm.xlu0 %2060, %v1786
    %v2062 = vpop.permute.xlu0 %2061
    %v2064 = vmul.f32 %v2062, %v1380
    %v2065 = vadd.f32 %v2059, %v2064
    %2066 = vset.pattern.permute.xlu0 2
    %2067 = vperm.xlu0 %2066, %v1786
    %v2068 = vpop.permute.xlu0 %2067
    %v2070 = vmul.f32 %v2068, %v2051
    %v2071 = vadd.f32 %v2065, %v2070
    %2072 = vst [vmem:[#allocation22] sm:$0xff] %v2071
    // Predicated region
    $region122: #{tpu_custom_call.1} parent=1 // pred_check
      _
    $region123: #{tpu_custom_call.1} parent=1 // pred_check_branch
      %2074 = sbr.rel (0) target = $region125
    $region124: #{tpu_custom_call.1} parent=1 // pred_region
      %2076 = vsyncadd [#allocation4], 0
      %s2078 = sshll.u32 [#allocation22], 4
      %s2079 = int_to_ptr.vmem [resolvable:$true] %s2078
      %s2080 = sshll.u32 %s18, 4
      %s2081 = int_to_ptr.hbm [resolvable:$true] %s2080
      %2083 = dma.vmem_to_hbm [thread:$0]  %s2079, 128, %s2081, [#allocation4]
    $region125: #{tpu_custom_call.1} parent=1 // pred_fallthru
      _
    // Predicated region
    $region126: #{tpu_custom_call.1} parent=1 // pred_check
      _
    $region127: #{tpu_custom_call.1} parent=1 // pred_check_branch
      %2085 = sbr.rel (0) target = $region129
    $region128: #{tpu_custom_call.1} parent=1 // pred_region
      %2087 = dma.done [#allocation4], 128
    $region129: #{tpu_custom_call.1} parent=1 // pred_fallthru
      _
    %2088 = vsyncpa [#allocation3], 1
    %2089 = vsyncpa [#allocation6], 1
    %2090 = vsyncpa [#allocation9], 1
    %2091 = vsyncpa [#allocation12], 1
    %2092 = vsyncpa [#allocation15], 1
    %2093 = vsyncpa [#allocation18], 1
    %2094 = vsyncpa [#allocation21], 1
    %2095 = vsyncpa [#allocation4], 1

</llo_original>
